<compile_context>
chip_gen: v7x
topology: tpu7x:2x2x1
jax: 0.10.0
libtpu: 0.0.40
codegen_flags: <defaults>
</compile_context>

<pallas_src>
import jax
import jax.numpy as jnp
from jax.experimental import pallas as pl
from jax.experimental.pallas import tpu as pltpu

# ---------------------------------------------------------------- constants
C = 5            # num_channels (hard-coded to 5 in SeHGNN.__init__)
C_PAD = 8        # padded channel count -> 256 lanes everywhere
B = 64           # nodes per grid step (one BatchNorm / attention-mean batch)
NB = 4           # independent node-batches in the demo
FIN = 32         # raw feature dim (data_size[k], same for every node type)
NFEAT = 32       # nfeat
HIDDEN = 32      # hidden
NCLASS = 8       # nclass
LN_EPS = 1e-5
BN_EPS = 1e-5

CF = C * FIN             # 160 real feature lanes
CH = C * HIDDEN          # 160 real hidden lanes
CF_PAD = C_PAD * FIN     # 256
CH_PAD = C_PAD * HIDDEN  # 256
OUT_PAD = 128            # lane-dense tail / output width
ROWS_R = 16              # rows slab sublane count

# sw slab row offsets (multiples of 128)
_WF_R = 0                    # layer_final weight   (128,128) zero-padded
_WL1_R = 128                 # lr_output Linear 1   (128,128)
_WL2_R = 256                 # lr_output Linear 2   (128,128)
_FOLD_R = 384                # beta fold constant   (256,128)
SW_ROWS = _FOLD_R + CH_PAD   # 640


# ---------------------------------------------------------------- kernel
def sehgnn_kernel(slopes_ref, x_ref, wmx_ref, rows_ref, sw_ref, out_ref):
    x = x_ref[...]                       # (B, 256) f32, channel-packed, padded lanes 0
    rows = rows_ref[...]                 # (16, 256) f32

    a1 = slopes_ref[0]                   # PReLU slopes (layers[2], layers[6],
    a2 = slopes_ref[1]                   #  self.prelu, lr_output PReLU)
    a3 = slopes_ref[2]
    a4 = slopes_ref[3]

    b1, ln1w, ln1b = rows[0:1], rows[1:2], rows[2:3]
    b2, ln2w, ln2b = rows[3:4], rows[4:5], rows[5:6]
    bp1 = rows[6:7]                      # attention projection bias, tiled per channel
    ln_mask = rows[7:8]                  # 1.0 on real lanes, 0.0 on padded
    logit_mask = rows[8:9]               # 0.0 on real lanes, -1e30 on padded
    bf = rows[9:10, 0:OUT_PAD]           # layer_final bias (padded to 128)
    bl1 = rows[10:11, 0:OUT_PAD]         # lr_output Linear 1 bias

    emb_bd = wmx_ref[0]                  # (256, 256) bf16 block-diagonal embedding
    w1_bd = wmx_ref[1]                   # Conv1d1x1 #1
    w2_bd = wmx_ref[2]                   # Conv1d1x1 #2
    wp1_bd = wmx_ref[3]                  # attention projection (repeated per channel)
    wsel = wmx_ref[4]                    # lane-tiled channel selector (wp2/B folded in)

    def layernorm(h, w, b):
        # nn.LayerNorm([C, HIDDEN]) on the packed (B, 256) layout: one lane
        # reduce over the 160 real lanes (padded lanes of h are exactly 0).
        mean = jnp.sum(h, axis=-1, keepdims=True) * (1.0 / CH)
        d = (h - mean) * ln_mask
        var = jnp.sum(d * d, axis=-1, keepdims=True) * (1.0 / CH)
        return (h - mean) * jax.lax.rsqrt(var + LN_EPS) * w + b

    def batchnorm(t):
        # BatchNorm1d(affine=False, track_running_stats=False): batch stats,
        # biased variance. Zero-padded columns map to exactly 0.
        mean = jnp.mean(t, axis=0, keepdims=True)
        var = jnp.mean((t - mean) * (t - mean), axis=0, keepdims=True)
        return (t - mean) * jax.lax.rsqrt(var + BN_EPS)

    # ---- per-type embedding matmul (input_drop = identity): one MXU push
    feats = jnp.dot(x.astype(jnp.bfloat16), emb_bd,
                    preferred_element_type=jnp.float32)             # (B, 256)

    # ---- Conv1d1x1 #1 (grouped, block-diag) + LayerNorm([C,H]) + PReLU
    h = jnp.dot(feats.astype(jnp.bfloat16), w1_bd,
                preferred_element_type=jnp.float32) + b1
    h = layernorm(h, ln1w, ln1b)
    h = jnp.where(h > 0, h, a1 * h)

    # ---- Conv1d1x1 #2 + LayerNorm + PReLU
    h = jnp.dot(h.astype(jnp.bfloat16), w2_bd,
                preferred_element_type=jnp.float32) + b2
    h = layernorm(h, ln2w, ln2b)
    z = jnp.where(h > 0, h, a2 * h)                                  # (B, 256), padded lanes = 0

    # ---- SemanticAttention (mean over batch folded into MXU, lane-tiled softmax)
    t = jnp.tanh(jnp.dot(z.astype(jnp.bfloat16), wp1_bd,
                         preferred_element_type=jnp.float32) + bp1)  # (B, 256)
    ones_b = jnp.ones((1, B), jnp.bfloat16)
    sum_t = jnp.dot(ones_b, t.astype(jnp.bfloat16),
                    preferred_element_type=jnp.float32)              # (1, 256)
    logits = jnp.dot(sum_t.astype(jnp.bfloat16), wsel,
                     preferred_element_type=jnp.float32) + logit_mask  # (1, 256), lane-tiled per channel
    m = jnp.max(logits, axis=-1, keepdims=True)
    e = jnp.exp(logits - m)                                          # padded lanes -> 0
    denom = jnp.sum(e, axis=-1, keepdims=True)                       # = HIDDEN * sum_c exp(.)
    beta_row = e * (float(HIDDEN) / denom)                           # (1, 256), softmax over channels

    fold = sw_ref[pl.ds(_FOLD_R, CH_PAD), :]                         # (256, 128) bf16 0/1
    feat = jnp.dot((z * beta_row).astype(jnp.bfloat16), fold,
                   preferred_element_type=jnp.float32)               # (B, 128) = (beta*z).sum(channels)

    # ---- layer_final Linear + self.prelu (dropout = identity)
    wf = sw_ref[pl.ds(_WF_R, OUT_PAD), :]                            # (128, 128) bf16
    out = jnp.dot(feat.astype(jnp.bfloat16), wf,
                  preferred_element_type=jnp.float32) + bf
    out = jnp.where(out > 0, out, a3 * out)

    # ---- lr_output: Linear -> BatchNorm1d -> PReLU -> Linear(no bias) -> BatchNorm1d
    wl1 = sw_ref[pl.ds(_WL1_R, OUT_PAD), :]
    wl2 = sw_ref[pl.ds(_WL2_R, OUT_PAD), :]
    h1 = jnp.dot(out.astype(jnp.bfloat16), wl1,
                 preferred_element_type=jnp.float32) + bl1
    h1 = batchnorm(h1)
    h1 = jnp.where(h1 > 0, h1, a4 * h1)
    h2 = jnp.dot(h1.astype(jnp.bfloat16), wl2,
                 preferred_element_type=jnp.float32)                 # cols NCLASS..127 are 0
    out_ref[...] = batchnorm(h2)                                     # lane-dense (B, 128) store


# ---------------------------------------------------------------- packing
def _block_diag(blocks, c_pad):
    """(c_real, din, dout) -> (c_pad*din, c_pad*dout) block-diagonal, padded blocks zero."""
    c_real, din, dout = blocks.shape
    out = jnp.zeros((c_pad * din, c_pad * dout), jnp.float32)
    for i in range(c_real):
        out = out.at[i * din:(i + 1) * din, i * dout:(i + 1) * dout].set(blocks[i])
    return out


def pack_params(p):
    """One-time host-side packing of all parameters into 3 slabs + SMEM scalars."""
    # Slab 1: block-diagonal MXU weights + lane-tiled attention selector, bf16.
    emb_bd = _block_diag(p["emb"], C_PAD)
    w1_bd = _block_diag(p["w1"], C_PAD)
    w2_bd = _block_diag(p["w2"], C_PAD)
    wp1_bd = _block_diag(jnp.broadcast_to(p["wp1"], (C, HIDDEN, HIDDEN)), C_PAD)
    wsel = jnp.zeros((CH_PAD, CH_PAD), jnp.float32)
    blk = jnp.broadcast_to(p["wp2"].reshape(HIDDEN, 1) / float(B), (HIDDEN, HIDDEN))
    for c in range(C):
        wsel = wsel.at[c * HIDDEN:(c + 1) * HIDDEN, c * HIDDEN:(c + 1) * HIDDEN].set(blk)
    wmx = jnp.stack([emb_bd, w1_bd, w2_bd, wp1_bd, wsel]).astype(jnp.bfloat16)  # (5,256,256)

    # Slab 2: lane-dense f32 rows: biases, LN affine, tiled bp1, masks, tail biases.
    def pack_row(a):
        return jnp.zeros((CH_PAD,), jnp.float32).at[:CH].set(a.reshape(-1))

    rows = jnp.zeros((ROWS_R, CH_PAD), jnp.float32)
    rows = rows.at[0].set(pack_row(p["b1"]))
    rows = rows.at[1].set(pack_row(p["ln1w"]))
    rows = rows.at[2].set(pack_row(p["ln1b"]))
    rows = rows.at[3].set(pack_row(p["b2"]))
    rows = rows.at[4].set(pack_row(p["ln2w"]))
    rows = rows.at[5].set(pack_row(p["ln2b"]))
    rows = rows.at[6].set(pack_row(jnp.tile(p["bp1"], (C, 1))))
    rows = rows.at[7, :CH].set(1.0)                       # LayerNorm lane mask
    rows = rows.at[8, CH:].set(-1e30)                     # softmax pad mask
    rows = rows.at[9, :HIDDEN].set(p["bf"].reshape(-1))
    rows = rows.at[10, :HIDDEN].set(p["bl1"].reshape(-1))

    # Slab 3: 128-lane-dense bf16 tail weights + beta fold constant.
    sw = jnp.zeros((SW_ROWS, OUT_PAD), jnp.float32)
    sw = sw.at[_WF_R:_WF_R + HIDDEN, :HIDDEN].set(p["wf"])
    sw = sw.at[_WL1_R:_WL1_R + HIDDEN, :HIDDEN].set(p["wl1"])
    sw = sw.at[_WL2_R:_WL2_R + HIDDEN, :NCLASS].set(p["wl2"])
    fold = jnp.zeros((CH_PAD, OUT_PAD), jnp.float32)
    for c in range(C):
        fold = fold.at[c * HIDDEN:(c + 1) * HIDDEN, :HIDDEN].set(jnp.eye(HIDDEN))
    sw = sw.at[_FOLD_R:_FOLD_R + CH_PAD, :].set(fold)
    sw = sw.astype(jnp.bfloat16)

    slopes = p["prelu"].astype(jnp.float32)               # (4,) SMEM scalars
    return {"wmx": wmx, "rows": rows, "sw": sw, "slopes": slopes}


def pack_x(x_cbf):
    """x_cbf: (C, N, FIN) channel-major stack -> (N, 256) lane-packed, padded lanes 0."""
    n = x_cbf.shape[1]
    xt = jnp.transpose(x_cbf, (1, 0, 2)).reshape(n, CF)
    return jnp.zeros((n, CF_PAD), jnp.float32).at[:, :CF].set(xt)


# ---------------------------------------------------------------- wrapper
def sehgnn_forward(x_packed, packed):
    n = x_packed.shape[0]
    nb = n // B
    out = pl.pallas_call(
        sehgnn_kernel,
        out_shape=jax.ShapeDtypeStruct((n, OUT_PAD), jnp.float32),
        grid=(nb,),
        in_specs=[
            pl.BlockSpec(memory_space=pltpu.MemorySpace.SMEM),           # PReLU slopes
            pl.BlockSpec((B, CF_PAD), lambda i: (i, 0)),                 # node tile
            pl.BlockSpec((5, CF_PAD, CH_PAD), lambda i: (0, 0, 0)),      # resident MXU weights
            pl.BlockSpec((ROWS_R, CH_PAD), lambda i: (0, 0)),            # resident bias/LN rows
            pl.BlockSpec((SW_ROWS, OUT_PAD), lambda i: (0, 0)),          # resident tail weights
        ],
        out_specs=pl.BlockSpec((B, OUT_PAD), lambda i: (i, 0)),
        compiler_params=pltpu.CompilerParams(dimension_semantics=("parallel",)),
    )(packed["slopes"], x_packed, packed["wmx"], packed["rows"], packed["sw"])
    # idx=None -> full batch; lane-dense output sliced to NCLASS host-side.
    return out[:, :NCLASS]


# ---------------------------------------------------------------- params
def init_params(key):
    ks = jax.random.split(key, 9)
    gain = jnp.sqrt(2.0)  # nn.init.calculate_gain('relu')

    def xavier(k, shape):
        fan_in, fan_out = shape[-2], shape[-1]
        a = gain * jnp.sqrt(6.0 / (fan_in + fan_out))
        return jax.random.uniform(k, shape, jnp.float32, -a, a)

    bound = 1.0 / jnp.sqrt(float(HIDDEN))  # default nn.Linear init (not reset)
    p = {}
    p["emb"] = jax.random.uniform(ks[0], (C, FIN, NFEAT), jnp.float32, -0.5, 0.5)
    p["w1"] = xavier(ks[1], (C, NFEAT, HIDDEN))
    p["b1"] = jnp.zeros((C, HIDDEN), jnp.float32)
    p["ln1w"] = jnp.ones((C, HIDDEN), jnp.float32)
    p["ln1b"] = jnp.zeros((C, HIDDEN), jnp.float32)
    p["w2"] = xavier(ks[2], (C, HIDDEN, HIDDEN))
    p["b2"] = jnp.zeros((C, HIDDEN), jnp.float32)
    p["ln2w"] = jnp.ones((C, HIDDEN), jnp.float32)
    p["ln2b"] = jnp.zeros((C, HIDDEN), jnp.float32)
    # SemanticAttention.project (keeps default nn.Linear init)
    p["wp1"] = jax.random.uniform(ks[3], (HIDDEN, HIDDEN), jnp.float32, -bound, bound)
    p["bp1"] = jax.random.uniform(ks[4], (1, HIDDEN), jnp.float32, -bound, bound)
    p["wp2"] = jax.random.uniform(ks[5], (1, HIDDEN), jnp.float32, -bound, bound)
    # layer_final / lr_output (xavier, zero bias per reset_parameters)
    p["wf"] = xavier(ks[6], (HIDDEN, HIDDEN))
    p["bf"] = jnp.zeros((1, HIDDEN), jnp.float32)
    p["wl1"] = xavier(ks[7], (HIDDEN, HIDDEN))
    p["bl1"] = jnp.zeros((1, HIDDEN), jnp.float32)
    p["wl2"] = xavier(ks[8], (HIDDEN, NCLASS))
    # PReLU slopes: layers[2], layers[6], self.prelu, lr_output PReLU (default 0.25)
    p["prelu"] = jnp.full((4,), 0.25, jnp.float32)
    return p


if __name__ == "__main__":
    key = jax.random.PRNGKey(0)
    kx, kp = jax.random.split(key)
    ntotal = NB * B
    # feature_dict: 5 node types, each (N, FIN); stacked channel-major -> (C, N, FIN)
    x = jax.random.normal(kx, (C, ntotal, FIN), jnp.float32)
    params = init_params(kp)
    packed = pack_params(params)          # one-time weight packing
    x_packed = pack_x(x)
    out = sehgnn_forward(x_packed, packed)  # (NB*B, NCLASS)
    jax.block_until_ready(out)
    assert out.shape == (ntotal, NCLASS)
    assert bool(jnp.all(jnp.isfinite(out)))
    print("KERNEL_OK")
</pallas_src>

<mosaic_0001>
module attributes {stable_mosaic.version = 11 : i64} {
  func.func @sehgnn_kernel(%arg0: i32, %arg1: memref<4xf32, #tpu.memory_space<smem>>, %arg2: memref<64x256xf32, #tpu.memory_space<vmem>>, %arg3: memref<5x256x256xbf16, #tpu.memory_space<vmem>>, %arg4: memref<16x256xf32, #tpu.memory_space<vmem>>, %arg5: memref<640x128xbf16, #tpu.memory_space<vmem>>, %arg6: memref<64x128xf32, #tpu.memory_space<vmem>>) attributes {dimension_semantics = [#tpu.dimension_semantics<parallel>], iteration_bounds = array<i64: 4>, scalar_prefetch = 0 : i64, scratch_operands = 0 : i64, tpu.core_type = #tpu.core_type<tc>, window_params = [{transform_indices = @transform_0, window_bounds = array<i64: 4>}, {transform_indices = @transform_1, window_bounds = array<i64: 64, 256>}, {pipeline_mode = #tpu.pipeline_mode<synchronous>, transform_indices = @transform_2, window_bounds = array<i64: 5, 256, 256>}, {pipeline_mode = #tpu.pipeline_mode<synchronous>, transform_indices = @transform_3, window_bounds = array<i64: 16, 256>}, {pipeline_mode = #tpu.pipeline_mode<synchronous>, transform_indices = @transform_4, window_bounds = array<i64: 640, 128>}, {transform_indices = @transform_5, window_bounds = array<i64: 64, 128>}]} {
    %c0 = arith.constant 0 : index
    %c0_0 = arith.constant 0 : index
    %0 = vector.load %arg2[%c0, %c0_0] : memref<64x256xf32, #tpu.memory_space<vmem>>, vector<64x256xf32>
    %c0_1 = arith.constant 0 : index
    %c0_2 = arith.constant 0 : index
    %1 = vector.load %arg4[%c0_1, %c0_2] : memref<16x256xf32, #tpu.memory_space<vmem>>, vector<16x256xf32>
    %c0_3 = arith.constant 0 : index
    %2 = memref.load %arg1[%c0_3] : memref<4xf32, #tpu.memory_space<smem>>
    %c1 = arith.constant 1 : index
    %3 = memref.load %arg1[%c1] : memref<4xf32, #tpu.memory_space<smem>>
    %c2 = arith.constant 2 : index
    %4 = memref.load %arg1[%c2] : memref<4xf32, #tpu.memory_space<smem>>
    %c3 = arith.constant 3 : index
    %5 = memref.load %arg1[%c3] : memref<4xf32, #tpu.memory_space<smem>>
    %6 = vector.extract_strided_slice %1 {offsets = [0, 0], sizes = [1, 256], strides = [1, 1]} : vector<16x256xf32> to vector<1x256xf32>
    %7 = vector.extract_strided_slice %1 {offsets = [1, 0], sizes = [1, 256], strides = [1, 1]} : vector<16x256xf32> to vector<1x256xf32>
    %8 = vector.extract_strided_slice %1 {offsets = [2, 0], sizes = [1, 256], strides = [1, 1]} : vector<16x256xf32> to vector<1x256xf32>
    %9 = vector.extract_strided_slice %1 {offsets = [3, 0], sizes = [1, 256], strides = [1, 1]} : vector<16x256xf32> to vector<1x256xf32>
    %10 = vector.extract_strided_slice %1 {offsets = [4, 0], sizes = [1, 256], strides = [1, 1]} : vector<16x256xf32> to vector<1x256xf32>
    %11 = vector.extract_strided_slice %1 {offsets = [5, 0], sizes = [1, 256], strides = [1, 1]} : vector<16x256xf32> to vector<1x256xf32>
    %12 = vector.extract_strided_slice %1 {offsets = [6, 0], sizes = [1, 256], strides = [1, 1]} : vector<16x256xf32> to vector<1x256xf32>
    %13 = vector.extract_strided_slice %1 {offsets = [7, 0], sizes = [1, 256], strides = [1, 1]} : vector<16x256xf32> to vector<1x256xf32>
    %14 = vector.extract_strided_slice %1 {offsets = [8, 0], sizes = [1, 256], strides = [1, 1]} : vector<16x256xf32> to vector<1x256xf32>
    %15 = vector.extract_strided_slice %1 {offsets = [9, 0], sizes = [1, 128], strides = [1, 1]} : vector<16x256xf32> to vector<1x128xf32>
    %16 = vector.extract_strided_slice %1 {offsets = [10, 0], sizes = [1, 128], strides = [1, 1]} : vector<16x256xf32> to vector<1x128xf32>
    %c0_4 = arith.constant 0 : index
    %c0_5 = arith.constant 0 : index
    %c0_6 = arith.constant 0 : index
    %17 = vector.load %arg3[%c0_4, %c0_5, %c0_6] : memref<5x256x256xbf16, #tpu.memory_space<vmem>>, vector<1x256x256xbf16>
    %18 = vector.shape_cast %17 : vector<1x256x256xbf16> to vector<256x256xbf16>
    %c1_7 = arith.constant 1 : index
    %c0_8 = arith.constant 0 : index
    %c0_9 = arith.constant 0 : index
    %19 = vector.load %arg3[%c1_7, %c0_8, %c0_9] : memref<5x256x256xbf16, #tpu.memory_space<vmem>>, vector<1x256x256xbf16>
    %20 = vector.shape_cast %19 : vector<1x256x256xbf16> to vector<256x256xbf16>
    %c2_10 = arith.constant 2 : index
    %c0_11 = arith.constant 0 : index
    %c0_12 = arith.constant 0 : index
    %21 = vector.load %arg3[%c2_10, %c0_11, %c0_12] : memref<5x256x256xbf16, #tpu.memory_space<vmem>>, vector<1x256x256xbf16>
    %22 = vector.shape_cast %21 : vector<1x256x256xbf16> to vector<256x256xbf16>
    %c3_13 = arith.constant 3 : index
    %c0_14 = arith.constant 0 : index
    %c0_15 = arith.constant 0 : index
    %23 = vector.load %arg3[%c3_13, %c0_14, %c0_15] : memref<5x256x256xbf16, #tpu.memory_space<vmem>>, vector<1x256x256xbf16>
    %24 = vector.shape_cast %23 : vector<1x256x256xbf16> to vector<256x256xbf16>
    %c4 = arith.constant 4 : index
    %c0_16 = arith.constant 0 : index
    %c0_17 = arith.constant 0 : index
    %25 = vector.load %arg3[%c4, %c0_16, %c0_17] : memref<5x256x256xbf16, #tpu.memory_space<vmem>>, vector<1x256x256xbf16>
    %26 = vector.shape_cast %25 : vector<1x256x256xbf16> to vector<256x256xbf16>
    %27 = arith.truncf %0 : vector<64x256xf32> to vector<64x256xbf16>
    %cst = arith.constant dense<0.000000e+00> : vector<64x256xf32>
    %28 = tpu.matmul %27, %18, %cst {dimension_numbers = #tpu.dot_dimension_numbers<[1], [0], [0], [1], [0, 0, 1, 1], [], []>} : vector<64x256xbf16>, vector<256x256xbf16>, vector<64x256xf32> -> vector<64x256xf32>
    %29 = arith.truncf %28 : vector<64x256xf32> to vector<64x256xbf16>
    %cst_18 = arith.constant dense<0.000000e+00> : vector<64x256xf32>
    %30 = tpu.matmul %29, %20, %cst_18 {dimension_numbers = #tpu.dot_dimension_numbers<[1], [0], [0], [1], [0, 0, 1, 1], [], []>} : vector<64x256xbf16>, vector<256x256xbf16>, vector<64x256xf32> -> vector<64x256xf32>
    %31 = vector.broadcast %6 : vector<1x256xf32> to vector<64x256xf32>
    %32 = arith.addf %30, %31 : vector<64x256xf32>
    %cst_19 = arith.constant dense<0.000000e+00> : vector<64xf32>
    %33 = vector.multi_reduction <add>, %32, %cst_19 [1] : vector<64x256xf32> to vector<64xf32>
    %34 = vector.shape_cast %33 : vector<64xf32> to vector<64x1xf32>
    %cst_20 = arith.constant 6.250000e-03 : f32
    %35 = vector.broadcast %cst_20 : f32 to vector<64x1xf32>
    %36 = arith.mulf %34, %35 : vector<64x1xf32>
    %37 = vector.broadcast %36 : vector<64x1xf32> to vector<64x256xf32>
    %38 = arith.subf %32, %37 : vector<64x256xf32>
    %39 = vector.broadcast %13 : vector<1x256xf32> to vector<64x256xf32>
    %40 = arith.mulf %38, %39 : vector<64x256xf32>
    %41 = arith.mulf %40, %40 : vector<64x256xf32>
    %cst_21 = arith.constant dense<0.000000e+00> : vector<64xf32>
    %42 = vector.multi_reduction <add>, %41, %cst_21 [1] : vector<64x256xf32> to vector<64xf32>
    %43 = vector.shape_cast %42 : vector<64xf32> to vector<64x1xf32>
    %cst_22 = arith.constant 6.250000e-03 : f32
    %44 = vector.broadcast %cst_22 : f32 to vector<64x1xf32>
    %45 = arith.mulf %43, %44 : vector<64x1xf32>
    %46 = vector.broadcast %36 : vector<64x1xf32> to vector<64x256xf32>
    %47 = arith.subf %32, %46 : vector<64x256xf32>
    %cst_23 = arith.constant 9.99999974E-6 : f32
    %48 = vector.broadcast %cst_23 : f32 to vector<64x1xf32>
    %49 = arith.addf %45, %48 : vector<64x1xf32>
    %50 = math.rsqrt %49 : vector<64x1xf32>
    %51 = vector.broadcast %50 : vector<64x1xf32> to vector<64x256xf32>
    %52 = arith.mulf %47, %51 : vector<64x256xf32>
    %53 = vector.broadcast %7 : vector<1x256xf32> to vector<64x256xf32>
    %54 = arith.mulf %52, %53 : vector<64x256xf32>
    %55 = vector.broadcast %8 : vector<1x256xf32> to vector<64x256xf32>
    %56 = arith.addf %54, %55 : vector<64x256xf32>
    %cst_24 = arith.constant 0.000000e+00 : f32
    %57 = vector.broadcast %cst_24 : f32 to vector<64x256xf32>
    %58 = arith.cmpf ogt, %56, %57 : vector<64x256xf32>
    %59 = vector.broadcast %2 : f32 to vector<64x256xf32>
    %60 = arith.mulf %59, %56 : vector<64x256xf32>
    %61 = arith.select %58, %56, %60 : vector<64x256xi1>, vector<64x256xf32>
    %62 = arith.truncf %61 : vector<64x256xf32> to vector<64x256xbf16>
    %cst_25 = arith.constant dense<0.000000e+00> : vector<64x256xf32>
    %63 = tpu.matmul %62, %22, %cst_25 {dimension_numbers = #tpu.dot_dimension_numbers<[1], [0], [0], [1], [0, 0, 1, 1], [], []>} : vector<64x256xbf16>, vector<256x256xbf16>, vector<64x256xf32> -> vector<64x256xf32>
    %64 = vector.broadcast %9 : vector<1x256xf32> to vector<64x256xf32>
    %65 = arith.addf %63, %64 : vector<64x256xf32>
    %cst_26 = arith.constant dense<0.000000e+00> : vector<64xf32>
    %66 = vector.multi_reduction <add>, %65, %cst_26 [1] : vector<64x256xf32> to vector<64xf32>
    %67 = vector.shape_cast %66 : vector<64xf32> to vector<64x1xf32>
    %cst_27 = arith.constant 6.250000e-03 : f32
    %68 = vector.broadcast %cst_27 : f32 to vector<64x1xf32>
    %69 = arith.mulf %67, %68 : vector<64x1xf32>
    %70 = vector.broadcast %69 : vector<64x1xf32> to vector<64x256xf32>
    %71 = arith.subf %65, %70 : vector<64x256xf32>
    %72 = vector.broadcast %13 : vector<1x256xf32> to vector<64x256xf32>
    %73 = arith.mulf %71, %72 : vector<64x256xf32>
    %74 = arith.mulf %73, %73 : vector<64x256xf32>
    %cst_28 = arith.constant dense<0.000000e+00> : vector<64xf32>
    %75 = vector.multi_reduction <add>, %74, %cst_28 [1] : vector<64x256xf32> to vector<64xf32>
    %76 = vector.shape_cast %75 : vector<64xf32> to vector<64x1xf32>
    %cst_29 = arith.constant 6.250000e-03 : f32
    %77 = vector.broadcast %cst_29 : f32 to vector<64x1xf32>
    %78 = arith.mulf %76, %77 : vector<64x1xf32>
    %79 = vector.broadcast %69 : vector<64x1xf32> to vector<64x256xf32>
    %80 = arith.subf %65, %79 : vector<64x256xf32>
    %cst_30 = arith.constant 9.99999974E-6 : f32
    %81 = vector.broadcast %cst_30 : f32 to vector<64x1xf32>
    %82 = arith.addf %78, %81 : vector<64x1xf32>
    %83 = math.rsqrt %82 : vector<64x1xf32>
    %84 = vector.broadcast %83 : vector<64x1xf32> to vector<64x256xf32>
    %85 = arith.mulf %80, %84 : vector<64x256xf32>
    %86 = vector.broadcast %10 : vector<1x256xf32> to vector<64x256xf32>
    %87 = arith.mulf %85, %86 : vector<64x256xf32>
    %88 = vector.broadcast %11 : vector<1x256xf32> to vector<64x256xf32>
    %89 = arith.addf %87, %88 : vector<64x256xf32>
    %cst_31 = arith.constant 0.000000e+00 : f32
    %90 = vector.broadcast %cst_31 : f32 to vector<64x256xf32>
    %91 = arith.cmpf ogt, %89, %90 : vector<64x256xf32>
    %92 = vector.broadcast %3 : f32 to vector<64x256xf32>
    %93 = arith.mulf %92, %89 : vector<64x256xf32>
    %94 = arith.select %91, %89, %93 : vector<64x256xi1>, vector<64x256xf32>
    %95 = arith.truncf %94 : vector<64x256xf32> to vector<64x256xbf16>
    %cst_32 = arith.constant dense<0.000000e+00> : vector<64x256xf32>
    %96 = tpu.matmul %95, %24, %cst_32 {dimension_numbers = #tpu.dot_dimension_numbers<[1], [0], [0], [1], [0, 0, 1, 1], [], []>} : vector<64x256xbf16>, vector<256x256xbf16>, vector<64x256xf32> -> vector<64x256xf32>
    %97 = vector.broadcast %12 : vector<1x256xf32> to vector<64x256xf32>
    %98 = arith.addf %96, %97 : vector<64x256xf32>
    %99 = math.tanh %98 : vector<64x256xf32>
    %cst_33 = arith.constant 1.000000e+00 : bf16
    %100 = vector.broadcast %cst_33 : bf16 to vector<1x64xbf16>
    %101 = arith.truncf %99 : vector<64x256xf32> to vector<64x256xbf16>
    %cst_34 = arith.constant dense<0.000000e+00> : vector<1x256xf32>
    %102 = tpu.matmul %100, %101, %cst_34 {dimension_numbers = #tpu.dot_dimension_numbers<[1], [0], [0], [1], [0, 0, 1, 1], [], []>} : vector<1x64xbf16>, vector<64x256xbf16>, vector<1x256xf32> -> vector<1x256xf32>
    %103 = arith.truncf %102 : vector<1x256xf32> to vector<1x256xbf16>
    %cst_35 = arith.constant dense<0.000000e+00> : vector<1x256xf32>
    %104 = tpu.matmul %103, %26, %cst_35 {dimension_numbers = #tpu.dot_dimension_numbers<[1], [0], [0], [1], [0, 0, 1, 1], [], []>} : vector<1x256xbf16>, vector<256x256xbf16>, vector<1x256xf32> -> vector<1x256xf32>
    %105 = arith.addf %104, %14 : vector<1x256xf32>
    %cst_36 = arith.constant dense<0xFF800000> : vector<1xf32>
    %106 = vector.multi_reduction <maximumf>, %105, %cst_36 [1] : vector<1x256xf32> to vector<1xf32>
    %107 = vector.shape_cast %106 : vector<1xf32> to vector<1x1xf32>
    %108 = vector.broadcast %107 : vector<1x1xf32> to vector<1x256xf32>
    %109 = arith.subf %105, %108 : vector<1x256xf32>
    %110 = math.exp %109 : vector<1x256xf32>
    %cst_37 = arith.constant dense<0.000000e+00> : vector<1xf32>
    %111 = vector.multi_reduction <add>, %110, %cst_37 [1] : vector<1x256xf32> to vector<1xf32>
    %112 = vector.shape_cast %111 : vector<1xf32> to vector<1x1xf32>
    %cst_38 = arith.constant 3.200000e+01 : f32
    %113 = vector.broadcast %cst_38 : f32 to vector<1x1xf32>
    %114 = arith.divf %113, %112 : vector<1x1xf32>
    %115 = vector.broadcast %114 : vector<1x1xf32> to vector<1x256xf32>
    %116 = arith.mulf %110, %115 : vector<1x256xf32>
    %c384 = arith.constant 384 : index
    %c0_39 = arith.constant 0 : index
    %117 = vector.load %arg5[%c384, %c0_39] : memref<640x128xbf16, #tpu.memory_space<vmem>>, vector<256x128xbf16>
    %118 = vector.broadcast %116 : vector<1x256xf32> to vector<64x256xf32>
    %119 = arith.mulf %94, %118 : vector<64x256xf32>
    %120 = arith.truncf %119 : vector<64x256xf32> to vector<64x256xbf16>
    %cst_40 = arith.constant dense<0.000000e+00> : vector<64x128xf32>
    %121 = tpu.matmul %120, %117, %cst_40 {dimension_numbers = #tpu.dot_dimension_numbers<[1], [0], [0], [1], [0, 0, 1, 1], [], []>} : vector<64x256xbf16>, vector<256x128xbf16>, vector<64x128xf32> -> vector<64x128xf32>
    %c0_41 = arith.constant 0 : index
    %c0_42 = arith.constant 0 : index
    %122 = vector.load %arg5[%c0_41, %c0_42] : memref<640x128xbf16, #tpu.memory_space<vmem>>, vector<128x128xbf16>
    %123 = arith.truncf %121 : vector<64x128xf32> to vector<64x128xbf16>
    %cst_43 = arith.constant dense<0.000000e+00> : vector<64x128xf32>
    %124 = tpu.matmul %123, %122, %cst_43 {dimension_numbers = #tpu.dot_dimension_numbers<[1], [0], [0], [1], [0, 0, 1, 1], [], []>} : vector<64x128xbf16>, vector<128x128xbf16>, vector<64x128xf32> -> vector<64x128xf32>
    %125 = vector.broadcast %15 : vector<1x128xf32> to vector<64x128xf32>
    %126 = arith.addf %124, %125 : vector<64x128xf32>
    %cst_44 = arith.constant 0.000000e+00 : f32
    %127 = vector.broadcast %cst_44 : f32 to vector<64x128xf32>
    %128 = arith.cmpf ogt, %126, %127 : vector<64x128xf32>
    %129 = vector.broadcast %4 : f32 to vector<64x128xf32>
    %130 = arith.mulf %129, %126 : vector<64x128xf32>
    %131 = arith.select %128, %126, %130 : vector<64x128xi1>, vector<64x128xf32>
    %c128 = arith.constant 128 : index
    %c0_45 = arith.constant 0 : index
    %132 = vector.load %arg5[%c128, %c0_45] : memref<640x128xbf16, #tpu.memory_space<vmem>>, vector<128x128xbf16>
    %c256 = arith.constant 256 : index
    %c0_46 = arith.constant 0 : index
    %133 = vector.load %arg5[%c256, %c0_46] : memref<640x128xbf16, #tpu.memory_space<vmem>>, vector<128x128xbf16>
    %134 = arith.truncf %131 : vector<64x128xf32> to vector<64x128xbf16>
    %cst_47 = arith.constant dense<0.000000e+00> : vector<64x128xf32>
    %135 = tpu.matmul %134, %132, %cst_47 {dimension_numbers = #tpu.dot_dimension_numbers<[1], [0], [0], [1], [0, 0, 1, 1], [], []>} : vector<64x128xbf16>, vector<128x128xbf16>, vector<64x128xf32> -> vector<64x128xf32>
    %136 = vector.broadcast %16 : vector<1x128xf32> to vector<64x128xf32>
    %137 = arith.addf %135, %136 : vector<64x128xf32>
    %cst_48 = arith.constant dense<0.000000e+00> : vector<128xf32>
    %138 = vector.multi_reduction <add>, %137, %cst_48 [0] : vector<64x128xf32> to vector<128xf32>
    %139 = vector.shape_cast %138 : vector<128xf32> to vector<1x128xf32>
    %cst_49 = arith.constant 6.400000e+01 : f32
    %140 = vector.broadcast %cst_49 : f32 to vector<1x128xf32>
    %141 = arith.divf %139, %140 : vector<1x128xf32>
    %142 = vector.broadcast %141 : vector<1x128xf32> to vector<64x128xf32>
    %143 = arith.subf %137, %142 : vector<64x128xf32>
    %144 = vector.broadcast %141 : vector<1x128xf32> to vector<64x128xf32>
    %145 = arith.subf %137, %144 : vector<64x128xf32>
    %146 = arith.mulf %143, %145 : vector<64x128xf32>
    %cst_50 = arith.constant dense<0.000000e+00> : vector<128xf32>
    %147 = vector.multi_reduction <add>, %146, %cst_50 [0] : vector<64x128xf32> to vector<128xf32>
    %148 = vector.shape_cast %147 : vector<128xf32> to vector<1x128xf32>
    %cst_51 = arith.constant 6.400000e+01 : f32
    %149 = vector.broadcast %cst_51 : f32 to vector<1x128xf32>
    %150 = arith.divf %148, %149 : vector<1x128xf32>
    %151 = vector.broadcast %141 : vector<1x128xf32> to vector<64x128xf32>
    %152 = arith.subf %137, %151 : vector<64x128xf32>
    %cst_52 = arith.constant 9.99999974E-6 : f32
    %153 = vector.broadcast %cst_52 : f32 to vector<1x128xf32>
    %154 = arith.addf %150, %153 : vector<1x128xf32>
    %155 = math.rsqrt %154 : vector<1x128xf32>
    %156 = vector.broadcast %155 : vector<1x128xf32> to vector<64x128xf32>
    %157 = arith.mulf %152, %156 : vector<64x128xf32>
    %cst_53 = arith.constant 0.000000e+00 : f32
    %158 = vector.broadcast %cst_53 : f32 to vector<64x128xf32>
    %159 = arith.cmpf ogt, %157, %158 : vector<64x128xf32>
    %160 = vector.broadcast %5 : f32 to vector<64x128xf32>
    %161 = arith.mulf %160, %157 : vector<64x128xf32>
    %162 = arith.select %159, %157, %161 : vector<64x128xi1>, vector<64x128xf32>
    %163 = arith.truncf %162 : vector<64x128xf32> to vector<64x128xbf16>
    %cst_54 = arith.constant dense<0.000000e+00> : vector<64x128xf32>
    %164 = tpu.matmul %163, %133, %cst_54 {dimension_numbers = #tpu.dot_dimension_numbers<[1], [0], [0], [1], [0, 0, 1, 1], [], []>} : vector<64x128xbf16>, vector<128x128xbf16>, vector<64x128xf32> -> vector<64x128xf32>
    %cst_55 = arith.constant dense<0.000000e+00> : vector<128xf32>
    %165 = vector.multi_reduction <add>, %164, %cst_55 [0] : vector<64x128xf32> to vector<128xf32>
    %166 = vector.shape_cast %165 : vector<128xf32> to vector<1x128xf32>
    %cst_56 = arith.constant 6.400000e+01 : f32
    %167 = vector.broadcast %cst_56 : f32 to vector<1x128xf32>
    %168 = arith.divf %166, %167 : vector<1x128xf32>
    %169 = vector.broadcast %168 : vector<1x128xf32> to vector<64x128xf32>
    %170 = arith.subf %164, %169 : vector<64x128xf32>
    %171 = vector.broadcast %168 : vector<1x128xf32> to vector<64x128xf32>
    %172 = arith.subf %164, %171 : vector<64x128xf32>
    %173 = arith.mulf %170, %172 : vector<64x128xf32>
    %cst_57 = arith.constant dense<0.000000e+00> : vector<128xf32>
    %174 = vector.multi_reduction <add>, %173, %cst_57 [0] : vector<64x128xf32> to vector<128xf32>
    %175 = vector.shape_cast %174 : vector<128xf32> to vector<1x128xf32>
    %cst_58 = arith.constant 6.400000e+01 : f32
    %176 = vector.broadcast %cst_58 : f32 to vector<1x128xf32>
    %177 = arith.divf %175, %176 : vector<1x128xf32>
    %178 = vector.broadcast %168 : vector<1x128xf32> to vector<64x128xf32>
    %179 = arith.subf %164, %178 : vector<64x128xf32>
    %cst_59 = arith.constant 9.99999974E-6 : f32
    %180 = vector.broadcast %cst_59 : f32 to vector<1x128xf32>
    %181 = arith.addf %177, %180 : vector<1x128xf32>
    %182 = math.rsqrt %181 : vector<1x128xf32>
    %183 = vector.broadcast %182 : vector<1x128xf32> to vector<64x128xf32>
    %184 = arith.mulf %179, %183 : vector<64x128xf32>
    %c0_60 = arith.constant 0 : index
    %c0_61 = arith.constant 0 : index
    %185 = vector.load %arg6[%c0_60, %c0_61] : memref<64x128xf32, #tpu.memory_space<vmem>>, vector<64x128xf32>
    tpu.vector_store %arg6[%c0_60, %c0_61], %184 {strides = array<i32>} : memref<64x128xf32, #tpu.memory_space<vmem>>, vector<64x128xf32>,
    return
  }
  func.func @transform_0(%arg0: i32) -> i32 {
    %c0_i32 = arith.constant 0 : i32
    %c0_i32_0 = arith.constant 0 : i32
    return %c0_i32 : i32
  }
  func.func @transform_1(%arg0: i32) -> (i32, i32) {
    %c0_i32 = arith.constant 0 : i32
    %c0_i32_0 = arith.constant 0 : i32
    return %arg0, %c0_i32 : i32, i32
  }
  func.func @transform_2(%arg0: i32) -> (i32, i32, i32) {
    %c0_i32 = arith.constant 0 : i32
    %c0_i32_0 = arith.constant 0 : i32
    %c0_i32_1 = arith.constant 0 : i32
    %c0_i32_2 = arith.constant 0 : i32
    return %c0_i32, %c0_i32_0, %c0_i32_1 : i32, i32, i32
  }
  func.func @transform_3(%arg0: i32) -> (i32, i32) {
    %c0_i32 = arith.constant 0 : i32
    %c0_i32_0 = arith.constant 0 : i32
    %c0_i32_1 = arith.constant 0 : i32
    return %c0_i32, %c0_i32_0 : i32, i32
  }
  func.func @transform_4(%arg0: i32) -> (i32, i32) {
    %c0_i32 = arith.constant 0 : i32
    %c0_i32_0 = arith.constant 0 : i32
    %c0_i32_1 = arith.constant 0 : i32
    return %c0_i32, %c0_i32_0 : i32, i32
  }
  func.func @transform_5(%arg0: i32) -> (i32, i32) {
    %c0_i32 = arith.constant 0 : i32
    %c0_i32_0 = arith.constant 0 : i32
    return %arg0, %c0_i32 : i32, i32
  }
}

</mosaic_0001>

<llo_original>
// kernel: tpu_custom_call.1
$region0: #{tpu_custom_call.1}
  #allocation0 [shape = 'u32[]', space=smem, size = 0x4, offset = 0x4, fixed_abs, tag = 'smem constant byte address 0x4 - core index']
  #allocation1 [shape = 'u32[144,128]{1,0:T(1,128)}', space=vmem, size = 0x12000, scoped, tag = 'internal scratch']
  %s0 = inlined_call_operand.hbm [shape: f32[4], index: 0, kind: input, shape index: {}]
  %s1 = inlined_call_operand.hbm [shape: f32[256,256], index: 1, kind: input, shape index: {}]
  %s2 = inlined_call_operand.hbm [shape: bf16[5,256,256], index: 2, kind: input, shape index: {}]
  %s3 = inlined_call_operand.hbm [shape: f32[16,256], index: 3, kind: input, shape index: {}]
  %s4 = inlined_call_operand.hbm [shape: bf16[640,128], index: 4, kind: input, shape index: {}]
  %s5 = inlined_call_operand.hbm [shape: f32[256,128], index: 5, kind: output, shape index: {}]
  %s6 = sld [smem:[#allocation0]]
  $region73: #{tpu_custom_call.1} parent=0
    _
  %s8 = ssub.s32 1, %s6
  %s9 = scalar_select 0, %s8, %s6
  $region1: #{tpu_custom_call.1} parent=0
    #allocation2 [shape = 'u8[512]{0}', space=smem, size = 0x200, scoped, tag = 'input window, operand 0, single buffered']
    #allocation3 [shape = 's32[2]{0}', space=sflag, size = 0x8, scoped, tag = 'scoped memory for tpu_custom_call.1']
    #allocation4 [shape = 's32[2]{0}', space=sflag, size = 0x8, scoped, tag = 'scoped memory for tpu_custom_call.1']
    #allocation5 [shape = 's32[2]{0}', space=sflag, size = 0x8, scoped, tag = 'scoped memory for tpu_custom_call.1']
    #allocation6 [shape = 'u8[131072]{0}', space=vmem, size = 0x20000, scoped, tag = 'input window, operand 1']
    #allocation7 [shape = 'u8[655360]{0}', space=vmem, size = 0xa0000, scoped, tag = 'input window, operand 2, single buffered']
    #allocation8 [shape = 's32[1]{0}', space=sflag, size = 0x4, scoped, tag = 'scoped memory for tpu_custom_call.1']
    #allocation9 [shape = 'u8[16384]{0}', space=vmem, size = 0x4000, scoped, tag = 'input window, operand 3, single buffered']
    #allocation10 [shape = 'u8[163840]{0}', space=vmem, size = 0x28000, scoped, tag = 'input window, operand 4, single buffered']
    #allocation11 [shape = 's32[1]{0}', space=sflag, size = 0x4, scoped, tag = 'scoped memory for tpu_custom_call.1']
    #allocation12 [shape = 'u8[65536]{0}', space=vmem, size = 0x10000, scoped, tag = 'output window, operand 0']
    %10 = vsyncpa [#allocation5], 0
    %11 = vsyncpa [#allocation3], 0
    %s12 = scalar_lea.sflag [#allocation3], 1
    %13 = vsyncpa %s12, 0
    %14 = vsyncpa [#allocation8], 0
    %15 = vsyncpa [#allocation11], 0
    %16 = vsyncpa [#allocation4], 0
    %s17 = scalar_lea.sflag [#allocation4], 1
    %18 = vsyncpa %s17, 0
    loop: start=0, step=1, limit=6
    $region2: #{tpu_custom_call.1} parent=1 // loop_pre_header
      _
    $region3: #{tpu_custom_call.1} parent=1 // loop_header
      %s20 = sphi 0, %s24
      %p21 = scmp.ge.s32.totalorder %s20, 6
      %s28 = sphi 0, %s28
      %s30 = sphi 0, %s28
      %s31 = sphi 0, %s30
      %s45 = sphi 0, %s31
      %s51 = sphi 0, %s53
      %s54 = sphi 0, %s51
      %s55 = sphi 0, %s54
      %s71 = sphi 0, %s55
      %s75 = sphi 0, %s75
      %s77 = sphi 0, %s75
      %s78 = sphi 0, %s77
      %s92 = sphi 0, %s78
      %s96 = sphi 0, %s96
      %s98 = sphi 0, %s96
      %s99 = sphi 0, %s98
      %s113 = sphi 0, %s99
      %s117 = sphi 0, %s117
      %s119 = sphi 0, %s117
      %s120 = sphi 0, %s119
      %s134 = sphi 0, %s120
      %s140 = sphi 0, %s142
      %s143 = sphi 0, %s140
      %s144 = sphi 0, %s143
      %s160 = sphi 0, %s144
    $region4: #{tpu_custom_call.1} parent=1 // loop_header_branch
      %23 = sbr.rel (%p21) target = $region8
    $region5: #{tpu_custom_call.1} parent=1 // loop_body
      %s25 = ssub.s32 %s20, 1
      %s26 = ssub.s32 %s20, 2
      %s27 = sadd.s32 %s20, 1
      %s29 = sadd.s32 %s28, 1
      %p32 = scmp.eq.s32.totalorder %s20, 3
      %p33 = scmp.ne.s32.totalorder %s28, %s30
      %p34 = scmp.eq.s32.totalorder %s20, 0
      %p35 = por %p33, %p34
      %p36 = scmp.ne.s32.totalorder %s28, %s30
      %p37 = scmp.eq.s32.totalorder %s25, 3
      %p38 = por %p36, %p37
      %p39 = scmp.ne.s32.totalorder %s30, %s31
      %p40 = scmp.eq.s32.totalorder %s25, 0
      %p41 = por %p39, %p40
      %p42 = scmp.ne.s32.totalorder %s30, %s31
      %p43 = scmp.eq.s32.totalorder %s26, 3
      %p44 = por %p42, %p43
      %p46 = scmp.ne.s32.totalorder %s31, %s45
      %p47 = scmp.eq.s32.totalorder %s26, 0
      %p48 = por %p46, %p47
      %s49 = ssub.s32 %s20, %s27
      %p50 = scmp.eq.s32.totalorder %s49, 0
      %s52 = sadd.s32 %s51, 1
      %s53 = scalar_select %p50, %s51, %s52
      %p56 = pneg %p50
      %p57 = scmp.eq.s32.totalorder %s20, 3
      %p58 = por %p56, %p57
      %p59 = scmp.ne.s32.totalorder %s51, %s54
      %p60 = scmp.eq.s32.totalorder %s20, 0
      %p61 = por %p59, %p60
      %p62 = scmp.ne.s32.totalorder %s51, %s54
      %p63 = scmp.eq.s32.totalorder %s25, 3
      %p64 = por %p62, %p63
      %p65 = scmp.ne.s32.totalorder %s54, %s55
      %p66 = scmp.eq.s32.totalorder %s25, 0
      %p67 = por %p65, %p66
      %p68 = scmp.ne.s32.totalorder %s54, %s55
      %p69 = scmp.eq.s32.totalorder %s26, 3
      %p70 = por %p68, %p69
      %p72 = scmp.ne.s32.totalorder %s55, %s71
      %p73 = scmp.eq.s32.totalorder %s26, 0
      %p74 = por %p72, %p73
      %s76 = sadd.s32 %s75, 1
      %p79 = scmp.eq.s32.totalorder %s20, 3
      %p80 = scmp.ne.s32.totalorder %s75, %s77
      %p81 = scmp.eq.s32.totalorder %s20, 0
      %p82 = por %p80, %p81
      %p83 = scmp.ne.s32.totalorder %s75, %s77
      %p84 = scmp.eq.s32.totalorder %s25, 3
      %p85 = por %p83, %p84
      %p86 = scmp.ne.s32.totalorder %s77, %s78
      %p87 = scmp.eq.s32.totalorder %s25, 0
      %p88 = por %p86, %p87
      %p89 = scmp.ne.s32.totalorder %s77, %s78
      %p90 = scmp.eq.s32.totalorder %s26, 3
      %p91 = por %p89, %p90
      %p93 = scmp.ne.s32.totalorder %s78, %s92
      %p94 = scmp.eq.s32.totalorder %s26, 0
      %p95 = por %p93, %p94
      %s97 = sadd.s32 %s96, 1
      %p100 = scmp.eq.s32.totalorder %s20, 3
      %p101 = scmp.ne.s32.totalorder %s96, %s98
      %p102 = scmp.eq.s32.totalorder %s20, 0
      %p103 = por %p101, %p102
      %p104 = scmp.ne.s32.totalorder %s96, %s98
      %p105 = scmp.eq.s32.totalorder %s25, 3
      %p106 = por %p104, %p105
      %p107 = scmp.ne.s32.totalorder %s98, %s99
      %p108 = scmp.eq.s32.totalorder %s25, 0
      %p109 = por %p107, %p108
      %p110 = scmp.ne.s32.totalorder %s98, %s99
      %p111 = scmp.eq.s32.totalorder %s26, 3
      %p112 = por %p110, %p111
      %p114 = scmp.ne.s32.totalorder %s99, %s113
      %p115 = scmp.eq.s32.totalorder %s26, 0
      %p116 = por %p114, %p115
      %s118 = sadd.s32 %s117, 1
      %p121 = scmp.eq.s32.totalorder %s20, 3
      %p122 = scmp.ne.s32.totalorder %s117, %s119
      %p123 = scmp.eq.s32.totalorder %s20, 0
      %p124 = por %p122, %p123
      %p125 = scmp.ne.s32.totalorder %s117, %s119
      %p126 = scmp.eq.s32.totalorder %s25, 3
      %p127 = por %p125, %p126
      %p128 = scmp.ne.s32.totalorder %s119, %s120
      %p129 = scmp.eq.s32.totalorder %s25, 0
      %p130 = por %p128, %p129
      %p131 = scmp.ne.s32.totalorder %s119, %s120
      %p132 = scmp.eq.s32.totalorder %s26, 3
      %p133 = por %p131, %p132
      %p135 = scmp.ne.s32.totalorder %s120, %s134
      %p136 = scmp.eq.s32.totalorder %s26, 0
      %p137 = por %p135, %p136
      %s138 = ssub.s32 %s20, %s27
      %p139 = scmp.eq.s32.totalorder %s138, 0
      %s141 = sadd.s32 %s140, 1
      %s142 = scalar_select %p139, %s140, %s141
      %p145 = pneg %p139
      %p146 = scmp.eq.s32.totalorder %s20, 3
      %p147 = por %p145, %p146
      %p148 = scmp.ne.s32.totalorder %s140, %s143
      %p149 = scmp.eq.s32.totalorder %s20, 0
      %p150 = por %p148, %p149
      %p151 = scmp.ne.s32.totalorder %s140, %s143
      %p152 = scmp.eq.s32.totalorder %s25, 3
      %p153 = por %p151, %p152
      %p154 = scmp.ne.s32.totalorder %s143, %s144
      %p155 = scmp.eq.s32.totalorder %s25, 0
      %p156 = por %p154, %p155
      %p157 = scmp.ne.s32.totalorder %s143, %s144
      %p158 = scmp.eq.s32.totalorder %s26, 3
      %p159 = por %p157, %p158
      %p161 = scmp.ne.s32.totalorder %s144, %s160
      %p162 = scmp.eq.s32.totalorder %s26, 0
      %p163 = por %p161, %p162
      %p164 = scmp.le.s32.totalorder 1, %s20
      %p165 = scmp.lt.s32.totalorder %s20, 5
      %p166 = pnand %p164, %p165
      %p167 = pneg %p166
      // Predicated region
      $region9: #{tpu_custom_call.1} parent=5 // pred_check
        _
      $region10: #{tpu_custom_call.1} parent=5 // pred_check_branch
        %169 = sbr.rel (%p166) target = $region12
      $region11: #{tpu_custom_call.1} parent=5 // pred_region
        %s170 = ssub.s32 %s20, 1
        // Predicated region
        $region13: #{tpu_custom_call.1} parent=11 // pred_check
          %p171 = pneg %p41
        $region14: #{tpu_custom_call.1} parent=11 // pred_check_branch
          %173 = sbr.rel (%p171) target = $region16
        $region15: #{tpu_custom_call.1} parent=11 // pred_region
          %s175 = ssub.s32 16, 16
          %176 = vsyncadd [#allocation5], %s175
          %179 = dma.hbm_to_smem %s0, 16, [#allocation2], [#allocation5]
        $region16: #{tpu_custom_call.1} parent=11 // pred_fallthru
          _
        // Predicated region
        $region17: #{tpu_custom_call.1} parent=11 // pred_check
          %p180 = pneg %p88
        $region18: #{tpu_custom_call.1} parent=11 // pred_check_branch
          %182 = sbr.rel (%p180) target = $region20
        $region19: #{tpu_custom_call.1} parent=11 // pred_region
          %s184 = ssub.s32 20480, 20480
          %185 = vsyncadd [#allocation8], %s184
          %s186 = sshll.u32 [#allocation7], 4
          %s187 = int_to_ptr.vmem [resolvable:$true] %s186
          %192 = dma.hbm_to_vmem [thread:$0]  %s2, 20480, %s187, [#allocation8], 128, 128, 8
        $region20: #{tpu_custom_call.1} parent=11 // pred_fallthru
          _
        // Predicated region
        $region21: #{tpu_custom_call.1} parent=11 // pred_check
          %p193 = pneg %p109
        $region22: #{tpu_custom_call.1} parent=11 // pred_check_branch
          %195 = sbr.rel (%p193) target = $region24
        $region23: #{tpu_custom_call.1} parent=11 // pred_region
          %s197 = ssub.s32 512, 512
          %198 = vsyncadd [#allocation8], %s197
          %s199 = sshll.u32 [#allocation9], 4
          %s200 = int_to_ptr.vmem [resolvable:$true] %s199
          %205 = dma.hbm_to_vmem [thread:$0]  %s3, 512, %s200, [#allocation8], 256, 256, 16
        $region24: #{tpu_custom_call.1} parent=11 // pred_fallthru
          _
        // Predicated region
        $region25: #{tpu_custom_call.1} parent=11 // pred_check
          %p206 = pneg %p130
        $region26: #{tpu_custom_call.1} parent=11 // pred_check_branch
          %208 = sbr.rel (%p206) target = $region28
        $region27: #{tpu_custom_call.1} parent=11 // pred_region
          %s210 = ssub.s32 5120, 5120
          %211 = vsyncadd [#allocation11], %s210
          %s212 = sshll.u32 [#allocation10], 4
          %s213 = int_to_ptr.vmem [resolvable:$true] %s212
          %218 = dma.hbm_to_vmem [thread:$0]  %s4, 5120, %s213, [#allocation11], 64, 64, 4
        $region28: #{tpu_custom_call.1} parent=11 // pred_fallthru
          _
      $region12: #{tpu_custom_call.1} parent=5 // pred_fallthru
        _
      %p219 = scmp.lt.s32.totalorder %s20, 4
      // Predicated region
      $region29: #{tpu_custom_call.1} parent=5 // pred_check
        %p220 = pneg %p219
      $region30: #{tpu_custom_call.1} parent=5 // pred_check_branch
        %222 = sbr.rel (%p220) target = $region32
      $region31: #{tpu_custom_call.1} parent=5 // pred_region
        // Predicated region
        $region33: #{tpu_custom_call.1} parent=31 // pred_check
          %p223 = pneg %p61
        $region34: #{tpu_custom_call.1} parent=31 // pred_check_branch
          %225 = sbr.rel (%p223) target = $region36
        $region35: #{tpu_custom_call.1} parent=31 // pred_region
          %s226 = sand.u32 %s51, 1
          %s227 = scalar_lea.sflag [#allocation3], %s226
          %s228 = sand.u32 %s51, 1
          %s229 = smul.addr %s228, 128
          %s230 = scalar_lea.vmem [#allocation6], %s229
          %s231 = smul.u32 8, %s20
          %s233 = ssub.s32 2048, 2048
          %234 = vsyncadd %s227, %s233
          %s235 = smul.addr %s231, 2
          %s236 = smul.addr %s235, 128
          %s237 = scalar_lea.hbm %s1, %s236
          %s238 = sshll.u32 %s230, 4
          %s239 = int_to_ptr.vmem [resolvable:$true] %s238
          %244 = dma.hbm_to_vmem [thread:$0]  %s237, 2048, %s239, %s227, 256, 256, 16
        $region36: #{tpu_custom_call.1} parent=31 // pred_fallthru
          _
      $region32: #{tpu_custom_call.1} parent=5 // pred_fallthru
        _
      %p245 = scmp.le.s32.totalorder 1, %s20
      %p246 = scmp.lt.s32.totalorder %s20, 5
      %p247 = pnand %p245, %p246
      %p248 = pneg %p247
      // Predicated region
      $region37: #{tpu_custom_call.1} parent=5 // pred_check
        _
      $region38: #{tpu_custom_call.1} parent=5 // pred_check_branch
        %250 = sbr.rel (%p247) target = $region40
      $region39: #{tpu_custom_call.1} parent=5 // pred_region
        %s251 = ssub.s32 %s20, 1
        // Predicated region
        $region41: #{tpu_custom_call.1} parent=39 // pred_check
          %p252 = pneg %p41
        $region42: #{tpu_custom_call.1} parent=39 // pred_check_branch
          %254 = sbr.rel (%p252) target = $region44
        $region43: #{tpu_custom_call.1} parent=39 // pred_region
          %255 = dma.done [#allocation5], 16
        $region44: #{tpu_custom_call.1} parent=39 // pred_fallthru
          _
        %s256 = sand.u32 %s54, 1
        %s257 = scalar_lea.sflag [#allocation3], %s256
        %s258 = sand.u32 %s54, 1
        %s259 = smul.addr %s258, 128
        %s260 = scalar_lea.vmem [#allocation6], %s259
        // Predicated region
        $region45: #{tpu_custom_call.1} parent=39 // pred_check
          %p261 = pneg %p67
        $region46: #{tpu_custom_call.1} parent=39 // pred_check_branch
          %263 = sbr.rel (%p261) target = $region48
        $region47: #{tpu_custom_call.1} parent=39 // pred_region
          %264 = dma.done %s257, 2048
        $region48: #{tpu_custom_call.1} parent=39 // pred_fallthru
          _
        // Predicated region
        $region49: #{tpu_custom_call.1} parent=39 // pred_check
          %p265 = pneg %p88
        $region50: #{tpu_custom_call.1} parent=39 // pred_check_branch
          %267 = sbr.rel (%p265) target = $region52
        $region51: #{tpu_custom_call.1} parent=39 // pred_region
          %268 = dma.done [#allocation8], 20480
        $region52: #{tpu_custom_call.1} parent=39 // pred_fallthru
          _
        // Predicated region
        $region53: #{tpu_custom_call.1} parent=39 // pred_check
          %p269 = pneg %p109
        $region54: #{tpu_custom_call.1} parent=39 // pred_check_branch
          %271 = sbr.rel (%p269) target = $region56
        $region55: #{tpu_custom_call.1} parent=39 // pred_region
          %272 = dma.done [#allocation8], 512
        $region56: #{tpu_custom_call.1} parent=39 // pred_fallthru
          _
        // Predicated region
        $region57: #{tpu_custom_call.1} parent=39 // pred_check
          %p273 = pneg %p130
        $region58: #{tpu_custom_call.1} parent=39 // pred_check_branch
          %275 = sbr.rel (%p273) target = $region60
        $region59: #{tpu_custom_call.1} parent=39 // pred_region
          %276 = dma.done [#allocation11], 5120
        $region60: #{tpu_custom_call.1} parent=39 // pred_fallthru
          _
        %277 = sfence
        %p278 = pneg %p41
        %p279 = pneg %p38
        %s280 = sand.u32 %s54, 1
        %s281 = scalar_lea.sflag [#allocation3], %s280
        %s282 = sand.u32 %s54, 1
        %s283 = smul.addr %s282, 128
        %s284 = scalar_lea.vmem [#allocation6], %s283
        %p285 = pneg %p67
        %p286 = pneg %p64
        %p287 = pneg %p88
        %p288 = pneg %p85
        %p289 = pneg %p109
        %p290 = pneg %p106
        %p291 = pneg %p130
        %p292 = pneg %p127
        %p293 = pneg %p156
        %p294 = pneg %p153
        %s295 = sand.u32 %s143, 1
        %s296 = scalar_lea.sflag [#allocation4], %s295
        %s297 = sand.u32 %s143, 1
        %s298 = smul.addr %s297, 64
        %s299 = scalar_lea.vmem [#allocation12], %s298
        %s300 = smul.u32 8, %s25
        %s301 = smul.u32 8, %s25
        %v304 = vld [vmem:[%s260] sm:$0xff]
        %v305 = vld [vmem:[%s260 + $0x8] sm:$0xff]
        %v306 = vld [vmem:[%s260 + $0x10] sm:$0xff]
        %v307 = vld [vmem:[%s260 + $0x18] sm:$0xff]
        %v308 = vld [vmem:[%s260 + $0x20] sm:$0xff]
        %v309 = vld [vmem:[%s260 + $0x28] sm:$0xff]
        %v310 = vld [vmem:[%s260 + $0x30] sm:$0xff]
        %v311 = vld [vmem:[%s260 + $0x38] sm:$0xff]
        %v312 = vld [vmem:[%s260 + $0x40] sm:$0xff]
        %v313 = vld [vmem:[%s260 + $0x48] sm:$0xff]
        %v314 = vld [vmem:[%s260 + $0x50] sm:$0xff]
        %v315 = vld [vmem:[%s260 + $0x58] sm:$0xff]
        %v316 = vld [vmem:[%s260 + $0x60] sm:$0xff]
        %v317 = vld [vmem:[%s260 + $0x68] sm:$0xff]
        %v318 = vld [vmem:[%s260 + $0x70] sm:$0xff]
        %v319 = vld [vmem:[%s260 + $0x78] sm:$0xff]
        %v320 = vld [vmem:[#allocation9] sm:$0xff]
        %v321 = vld [vmem:[#allocation9 + $0x8] sm:$0xff]
        %v322 = vld [vmem:[#allocation9 + $0x10] sm:$0xff]
        %v323 = vld [vmem:[#allocation9 + $0x18] sm:$0xff]
        %s324 = sld [smem:[#allocation2]]
        %s325 = sld [smem:[#allocation2 + $0x1]]
        %s326 = sld [smem:[#allocation2 + $0x2]]
        %s327 = sld [smem:[#allocation2 + $0x3]]
        %v328 = vld [vmem:[#allocation7] sm:$0xff]
        %v329 = vld [vmem:[#allocation7 + $0x8] sm:$0xff]
        %v330 = vld [vmem:[#allocation7 + $0x10] sm:$0xff]
        %v331 = vld [vmem:[#allocation7 + $0x18] sm:$0xff]
        %v332 = vld [vmem:[#allocation7 + $0x20] sm:$0xff]
        %v333 = vld [vmem:[#allocation7 + $0x28] sm:$0xff]
        %v334 = vld [vmem:[#allocation7 + $0x30] sm:$0xff]
        %v335 = vld [vmem:[#allocation7 + $0x38] sm:$0xff]
        %v336 = vld [vmem:[#allocation7 + $0x40] sm:$0xff]
        %v337 = vld [vmem:[#allocation7 + $0x48] sm:$0xff]
        %v338 = vld [vmem:[#allocation7 + $0x50] sm:$0xff]
        %v339 = vld [vmem:[#allocation7 + $0x58] sm:$0xff]
        %v340 = vld [vmem:[#allocation7 + $0x60] sm:$0xff]
        %v341 = vld [vmem:[#allocation7 + $0x68] sm:$0xff]
        %v342 = vld [vmem:[#allocation7 + $0x70] sm:$0xff]
        %v343 = vld [vmem:[#allocation7 + $0x78] sm:$0xff]
        %v344 = vld [vmem:[#allocation7 + $0x80] sm:$0xff]
        %v345 = vld [vmem:[#allocation7 + $0x88] sm:$0xff]
        %v346 = vld [vmem:[#allocation7 + $0x90] sm:$0xff]
        %v347 = vld [vmem:[#allocation7 + $0x98] sm:$0xff]
        %v348 = vld [vmem:[#allocation7 + $0xa0] sm:$0xff]
        %v349 = vld [vmem:[#allocation7 + $0xa8] sm:$0xff]
        %v350 = vld [vmem:[#allocation7 + $0xb0] sm:$0xff]
        %v351 = vld [vmem:[#allocation7 + $0xb8] sm:$0xff]
        %v352 = vld [vmem:[#allocation7 + $0xc0] sm:$0xff]
        %v353 = vld [vmem:[#allocation7 + $0xc8] sm:$0xff]
        %v354 = vld [vmem:[#allocation7 + $0xd0] sm:$0xff]
        %v355 = vld [vmem:[#allocation7 + $0xd8] sm:$0xff]
        %v356 = vld [vmem:[#allocation7 + $0xe0] sm:$0xff]
        %v357 = vld [vmem:[#allocation7 + $0xe8] sm:$0xff]
        %v358 = vld [vmem:[#allocation7 + $0xf0] sm:$0xff]
        %v359 = vld [vmem:[#allocation7 + $0xf8] sm:$0xff]
        %s360 = scalar_lea.vmem [#allocation7], 256
        %v361 = vld [vmem:[%s360] sm:$0xff]
        %v362 = vld [vmem:[%s360 + $0x8] sm:$0xff]
        %v363 = vld [vmem:[%s360 + $0x10] sm:$0xff]
        %v364 = vld [vmem:[%s360 + $0x18] sm:$0xff]
        %v365 = vld [vmem:[%s360 + $0x20] sm:$0xff]
        %v366 = vld [vmem:[%s360 + $0x28] sm:$0xff]
        %v367 = vld [vmem:[%s360 + $0x30] sm:$0xff]
        %v368 = vld [vmem:[%s360 + $0x38] sm:$0xff]
        %v369 = vld [vmem:[%s360 + $0x40] sm:$0xff]
        %v370 = vld [vmem:[%s360 + $0x48] sm:$0xff]
        %v371 = vld [vmem:[%s360 + $0x50] sm:$0xff]
        %v372 = vld [vmem:[%s360 + $0x58] sm:$0xff]
        %v373 = vld [vmem:[%s360 + $0x60] sm:$0xff]
        %v374 = vld [vmem:[%s360 + $0x68] sm:$0xff]
        %v375 = vld [vmem:[%s360 + $0x70] sm:$0xff]
        %v376 = vld [vmem:[%s360 + $0x78] sm:$0xff]
        %v377 = vld [vmem:[%s360 + $0x80] sm:$0xff]
        %v378 = vld [vmem:[%s360 + $0x88] sm:$0xff]
        %v379 = vld [vmem:[%s360 + $0x90] sm:$0xff]
        %v380 = vld [vmem:[%s360 + $0x98] sm:$0xff]
        %v381 = vld [vmem:[%s360 + $0xa0] sm:$0xff]
        %v382 = vld [vmem:[%s360 + $0xa8] sm:$0xff]
        %v383 = vld [vmem:[%s360 + $0xb0] sm:$0xff]
        %v384 = vld [vmem:[%s360 + $0xb8] sm:$0xff]
        %v385 = vld [vmem:[%s360 + $0xc0] sm:$0xff]
        %v386 = vld [vmem:[%s360 + $0xc8] sm:$0xff]
        %v387 = vld [vmem:[%s360 + $0xd0] sm:$0xff]
        %v388 = vld [vmem:[%s360 + $0xd8] sm:$0xff]
        %v389 = vld [vmem:[%s360 + $0xe0] sm:$0xff]
        %v390 = vld [vmem:[%s360 + $0xe8] sm:$0xff]
        %v391 = vld [vmem:[%s360 + $0xf0] sm:$0xff]
        %v392 = vld [vmem:[%s360 + $0xf8] sm:$0xff]
        %s393 = scalar_lea.vmem [#allocation7], 512
        %v394 = vld [vmem:[%s393] sm:$0xff]
        %v395 = vld [vmem:[%s393 + $0x8] sm:$0xff]
        %v396 = vld [vmem:[%s393 + $0x10] sm:$0xff]
        %v397 = vld [vmem:[%s393 + $0x18] sm:$0xff]
        %v398 = vld [vmem:[%s393 + $0x20] sm:$0xff]
        %v399 = vld [vmem:[%s393 + $0x28] sm:$0xff]
        %v400 = vld [vmem:[%s393 + $0x30] sm:$0xff]
        %v401 = vld [vmem:[%s393 + $0x38] sm:$0xff]
        %v402 = vld [vmem:[%s393 + $0x40] sm:$0xff]
        %v403 = vld [vmem:[%s393 + $0x48] sm:$0xff]
        %v404 = vld [vmem:[%s393 + $0x50] sm:$0xff]
        %v405 = vld [vmem:[%s393 + $0x58] sm:$0xff]
        %v406 = vld [vmem:[%s393 + $0x60] sm:$0xff]
        %v407 = vld [vmem:[%s393 + $0x68] sm:$0xff]
        %v408 = vld [vmem:[%s393 + $0x70] sm:$0xff]
        %v409 = vld [vmem:[%s393 + $0x78] sm:$0xff]
        %v410 = vld [vmem:[%s393 + $0x80] sm:$0xff]
        %v411 = vld [vmem:[%s393 + $0x88] sm:$0xff]
        %v412 = vld [vmem:[%s393 + $0x90] sm:$0xff]
        %v413 = vld [vmem:[%s393 + $0x98] sm:$0xff]
        %v414 = vld [vmem:[%s393 + $0xa0] sm:$0xff]
        %v415 = vld [vmem:[%s393 + $0xa8] sm:$0xff]
        %v416 = vld [vmem:[%s393 + $0xb0] sm:$0xff]
        %v417 = vld [vmem:[%s393 + $0xb8] sm:$0xff]
        %v418 = vld [vmem:[%s393 + $0xc0] sm:$0xff]
        %v419 = vld [vmem:[%s393 + $0xc8] sm:$0xff]
        %v420 = vld [vmem:[%s393 + $0xd0] sm:$0xff]
        %v421 = vld [vmem:[%s393 + $0xd8] sm:$0xff]
        %v422 = vld [vmem:[%s393 + $0xe0] sm:$0xff]
        %v423 = vld [vmem:[%s393 + $0xe8] sm:$0xff]
        %v424 = vld [vmem:[%s393 + $0xf0] sm:$0xff]
        %v425 = vld [vmem:[%s393 + $0xf8] sm:$0xff]
        %s426 = scalar_lea.vmem [#allocation7], 768
        %v427 = vld [vmem:[%s426] sm:$0xff]
        %v428 = vld [vmem:[%s426 + $0x8] sm:$0xff]
        %v429 = vld [vmem:[%s426 + $0x10] sm:$0xff]
        %v430 = vld [vmem:[%s426 + $0x18] sm:$0xff]
        %v431 = vld [vmem:[%s426 + $0x20] sm:$0xff]
        %v432 = vld [vmem:[%s426 + $0x28] sm:$0xff]
        %v433 = vld [vmem:[%s426 + $0x30] sm:$0xff]
        %v434 = vld [vmem:[%s426 + $0x38] sm:$0xff]
        %v435 = vld [vmem:[%s426 + $0x40] sm:$0xff]
        %v436 = vld [vmem:[%s426 + $0x48] sm:$0xff]
        %v437 = vld [vmem:[%s426 + $0x50] sm:$0xff]
        %v438 = vld [vmem:[%s426 + $0x58] sm:$0xff]
        %v439 = vld [vmem:[%s426 + $0x60] sm:$0xff]
        %v440 = vld [vmem:[%s426 + $0x68] sm:$0xff]
        %v441 = vld [vmem:[%s426 + $0x70] sm:$0xff]
        %v442 = vld [vmem:[%s426 + $0x78] sm:$0xff]
        %v443 = vld [vmem:[%s426 + $0x80] sm:$0xff]
        %v444 = vld [vmem:[%s426 + $0x88] sm:$0xff]
        %v445 = vld [vmem:[%s426 + $0x90] sm:$0xff]
        %v446 = vld [vmem:[%s426 + $0x98] sm:$0xff]
        %v447 = vld [vmem:[%s426 + $0xa0] sm:$0xff]
        %v448 = vld [vmem:[%s426 + $0xa8] sm:$0xff]
        %v449 = vld [vmem:[%s426 + $0xb0] sm:$0xff]
        %v450 = vld [vmem:[%s426 + $0xb8] sm:$0xff]
        %v451 = vld [vmem:[%s426 + $0xc0] sm:$0xff]
        %v452 = vld [vmem:[%s426 + $0xc8] sm:$0xff]
        %v453 = vld [vmem:[%s426 + $0xd0] sm:$0xff]
        %v454 = vld [vmem:[%s426 + $0xd8] sm:$0xff]
        %v455 = vld [vmem:[%s426 + $0xe0] sm:$0xff]
        %v456 = vld [vmem:[%s426 + $0xe8] sm:$0xff]
        %v457 = vld [vmem:[%s426 + $0xf0] sm:$0xff]
        %v458 = vld [vmem:[%s426 + $0xf8] sm:$0xff]
        %s459 = scalar_lea.vmem [#allocation7], 1024
        %v460 = vld [vmem:[%s459] sm:$0xff]
        %v461 = vld [vmem:[%s459 + $0x8] sm:$0xff]
        %v462 = vld [vmem:[%s459 + $0x10] sm:$0xff]
        %v463 = vld [vmem:[%s459 + $0x18] sm:$0xff]
        %v464 = vld [vmem:[%s459 + $0x20] sm:$0xff]
        %v465 = vld [vmem:[%s459 + $0x28] sm:$0xff]
        %v466 = vld [vmem:[%s459 + $0x30] sm:$0xff]
        %v467 = vld [vmem:[%s459 + $0x38] sm:$0xff]
        %v468 = vld [vmem:[%s459 + $0x40] sm:$0xff]
        %v469 = vld [vmem:[%s459 + $0x48] sm:$0xff]
        %v470 = vld [vmem:[%s459 + $0x50] sm:$0xff]
        %v471 = vld [vmem:[%s459 + $0x58] sm:$0xff]
        %v472 = vld [vmem:[%s459 + $0x60] sm:$0xff]
        %v473 = vld [vmem:[%s459 + $0x68] sm:$0xff]
        %v474 = vld [vmem:[%s459 + $0x70] sm:$0xff]
        %v475 = vld [vmem:[%s459 + $0x78] sm:$0xff]
        %v476 = vld [vmem:[%s459 + $0x80] sm:$0xff]
        %v477 = vld [vmem:[%s459 + $0x88] sm:$0xff]
        %v478 = vld [vmem:[%s459 + $0x90] sm:$0xff]
        %v479 = vld [vmem:[%s459 + $0x98] sm:$0xff]
        %v480 = vld [vmem:[%s459 + $0xa0] sm:$0xff]
        %v481 = vld [vmem:[%s459 + $0xa8] sm:$0xff]
        %v482 = vld [vmem:[%s459 + $0xb0] sm:$0xff]
        %v483 = vld [vmem:[%s459 + $0xb8] sm:$0xff]
        %v484 = vld [vmem:[%s459 + $0xc0] sm:$0xff]
        %v485 = vld [vmem:[%s459 + $0xc8] sm:$0xff]
        %v486 = vld [vmem:[%s459 + $0xd0] sm:$0xff]
        %v487 = vld [vmem:[%s459 + $0xd8] sm:$0xff]
        %v488 = vld [vmem:[%s459 + $0xe0] sm:$0xff]
        %v489 = vld [vmem:[%s459 + $0xe8] sm:$0xff]
        %v490 = vld [vmem:[%s459 + $0xf0] sm:$0xff]
        %v491 = vld [vmem:[%s459 + $0xf8] sm:$0xff]
        %v492 = vpack.c.bf16 %v306, %v304
        %v493 = vpack.c.bf16 %v307, %v305
        %v494 = vpack.c.bf16 %v310, %v308
        %v495 = vpack.c.bf16 %v311, %v309
        %v496 = vpack.c.bf16 %v314, %v312
        %v497 = vpack.c.bf16 %v315, %v313
        %v498 = vpack.c.bf16 %v318, %v316
        %v499 = vpack.c.bf16 %v319, %v317
        %v532 = vunpack.c.l.b16 %v328
        %v533 = vunpack.c.h.b16 %v328
        %v534 = vunpack.c.l.b16 %v329
        %v535 = vunpack.c.h.b16 %v329
        %v536 = vunpack.c.l.b16 %v330
        %v537 = vunpack.c.h.b16 %v330
        %v538 = vunpack.c.l.b16 %v331
        %v539 = vunpack.c.h.b16 %v331
        %v540 = vunpack.c.l.b16 %v332
        %v541 = vunpack.c.h.b16 %v332
        %v542 = vunpack.c.l.b16 %v333
        %v543 = vunpack.c.h.b16 %v333
        %v544 = vunpack.c.l.b16 %v334
        %v545 = vunpack.c.h.b16 %v334
        %v546 = vunpack.c.l.b16 %v335
        %v547 = vunpack.c.h.b16 %v335
        %v548 = vunpack.c.l.b16 %v336
        %v549 = vunpack.c.h.b16 %v336
        %v550 = vunpack.c.l.b16 %v337
        %v551 = vunpack.c.h.b16 %v337
        %v552 = vunpack.c.l.b16 %v338
        %v553 = vunpack.c.h.b16 %v338
        %v554 = vunpack.c.l.b16 %v339
        %v555 = vunpack.c.h.b16 %v339
        %v556 = vunpack.c.l.b16 %v340
        %v557 = vunpack.c.h.b16 %v340
        %v558 = vunpack.c.l.b16 %v341
        %v559 = vunpack.c.h.b16 %v341
        %v560 = vunpack.c.l.b16 %v342
        %v561 = vunpack.c.h.b16 %v342
        %v562 = vunpack.c.l.b16 %v343
        %v563 = vunpack.c.h.b16 %v343
        %v564 = vunpack.c.l.b16 %v344
        %v565 = vunpack.c.h.b16 %v344
        %v566 = vunpack.c.l.b16 %v345
        %v567 = vunpack.c.h.b16 %v345
        %v568 = vunpack.c.l.b16 %v346
        %v569 = vunpack.c.h.b16 %v346
        %v570 = vunpack.c.l.b16 %v347
        %v571 = vunpack.c.h.b16 %v347
        %v572 = vunpack.c.l.b16 %v348
        %v573 = vunpack.c.h.b16 %v348
        %v574 = vunpack.c.l.b16 %v349
        %v575 = vunpack.c.h.b16 %v349
        %v576 = vunpack.c.l.b16 %v350
        %v577 = vunpack.c.h.b16 %v350
        %v578 = vunpack.c.l.b16 %v351
        %v579 = vunpack.c.h.b16 %v351
        %v580 = vunpack.c.l.b16 %v352
        %v581 = vunpack.c.h.b16 %v352
        %v582 = vunpack.c.l.b16 %v353
        %v583 = vunpack.c.h.b16 %v353
        %v584 = vunpack.c.l.b16 %v354
        %v585 = vunpack.c.h.b16 %v354
        %v586 = vunpack.c.l.b16 %v355
        %v587 = vunpack.c.h.b16 %v355
        %v588 = vunpack.c.l.b16 %v356
        %v589 = vunpack.c.h.b16 %v356
        %v590 = vunpack.c.l.b16 %v357
        %v591 = vunpack.c.h.b16 %v357
        %v592 = vunpack.c.l.b16 %v358
        %v593 = vunpack.c.h.b16 %v358
        %v594 = vunpack.c.l.b16 %v359
        %v595 = vunpack.c.h.b16 %v359
        %v596 = vpack.c.b16 %v534, %v532
        %v597 = vpack.c.b16 %v535, %v533
        %v598 = vpack.c.b16 %v538, %v536
        %v599 = vpack.c.b16 %v539, %v537
        %v600 = vpack.c.b16 %v542, %v540
        %v601 = vpack.c.b16 %v543, %v541
        %v602 = vpack.c.b16 %v546, %v544
        %v603 = vpack.c.b16 %v547, %v545
        %v604 = vpack.c.b16 %v550, %v548
        %v605 = vpack.c.b16 %v551, %v549
        %v606 = vpack.c.b16 %v554, %v552
        %v607 = vpack.c.b16 %v555, %v553
        %v608 = vpack.c.b16 %v558, %v556
        %v609 = vpack.c.b16 %v559, %v557
        %v610 = vpack.c.b16 %v562, %v560
        %v611 = vpack.c.b16 %v563, %v561
        %v612 = vpack.c.b16 %v566, %v564
        %v613 = vpack.c.b16 %v567, %v565
        %v614 = vpack.c.b16 %v570, %v568
        %v615 = vpack.c.b16 %v571, %v569
        %v616 = vpack.c.b16 %v574, %v572
        %v617 = vpack.c.b16 %v575, %v573
        %v618 = vpack.c.b16 %v578, %v576
        %v619 = vpack.c.b16 %v579, %v577
        %v620 = vpack.c.b16 %v582, %v580
        %v621 = vpack.c.b16 %v583, %v581
        %v622 = vpack.c.b16 %v586, %v584
        %v623 = vpack.c.b16 %v587, %v585
        %v624 = vpack.c.b16 %v590, %v588
        %v625 = vpack.c.b16 %v591, %v589
        %v626 = vpack.c.b16 %v594, %v592
        %v627 = vpack.c.b16 %v595, %v593
        %660 = vmatprep.subr.bf16.mxu0 %v597
        %661 = vmatpush1.bf16.msra.mxu0 %v596
        %662 = vmatprep.subr.bf16.mxu0 %v599
        %663 = vmatpush1.bf16.msra.mxu0 %v598
        %664 = vmatprep.subr.bf16.mxu0 %v601
        %665 = vmatpush1.bf16.msra.mxu0 %v600
        %666 = vmatprep.subr.bf16.mxu0 %v603
        %667 = vmatpush1.bf16.msra.mxu0 %v602
        %668 = vmatprep.subr.bf16.mxu0 %v605
        %669 = vmatpush1.bf16.msra.mxu0 %v604
        %670 = vmatprep.subr.bf16.mxu0 %v607
        %671 = vmatpush1.bf16.msra.mxu0 %v606
        %672 = vmatprep.subr.bf16.mxu0 %v609
        %673 = vmatpush1.bf16.msra.mxu0 %v608
        %674 = vmatprep.subr.bf16.mxu0 %v611
        %675 = vmatpush1.bf16.msra.mxu0 %v610
        %676 = vmatprep.subr.bf16.mxu0 %v613
        %677 = vmatpush1.bf16.msra.mxu0 %v612
        %678 = vmatprep.subr.bf16.mxu0 %v615
        %679 = vmatpush1.bf16.msra.mxu0 %v614
        %680 = vmatprep.subr.bf16.mxu0 %v617
        %681 = vmatpush1.bf16.msra.mxu0 %v616
        %682 = vmatprep.subr.bf16.mxu0 %v619
        %683 = vmatpush1.bf16.msra.mxu0 %v618
        %684 = vmatprep.subr.bf16.mxu0 %v621
        %685 = vmatpush1.bf16.msra.mxu0 %v620
        %686 = vmatprep.subr.bf16.mxu0 %v623
        %687 = vmatpush1.bf16.msra.mxu0 %v622
        %688 = vmatprep.subr.bf16.mxu0 %v625
        %689 = vmatpush1.bf16.msra.mxu0 %v624
        %690 = vmatprep.subr.bf16.mxu0 %v627
        %691 = vmatpush1.bf16.msra.mxu0 %v626
        %692 = vmatprep.mubr.bf16.mxu0 %v493
        %693 = vmatmul.mubr.bf16.gmra.mrb[0].mxu0 %v492
        %v694 = vpop.f32.mrb[0].mxu0
        %v695 = vadd.f32 0.0, %v694
        %v696 = vpop.f32.mrb[0].mxu0
        %v697 = vadd.f32 0.0, %v696
        %v698 = vpop.f32.mrb[0].mxu0
        %v699 = vadd.f32 0.0, %v698
        %v700 = vpop.f32.mrb[0].mxu0
        %v701 = vadd.f32 0.0, %v700
        %702 = vmatprep.mubr.bf16.mxu0 %v495
        %703 = vmatmul.mubr.bf16.gmra.mrb[0].mxu0 %v494
        %v704 = vpop.f32.mrb[0].mxu0
        %v705 = vadd.f32 0.0, %v704
        %v706 = vpop.f32.mrb[0].mxu0
        %v707 = vadd.f32 0.0, %v706
        %v708 = vpop.f32.mrb[0].mxu0
        %v709 = vadd.f32 0.0, %v708
        %v710 = vpop.f32.mrb[0].mxu0
        %v711 = vadd.f32 0.0, %v710
        %712 = vmatprep.mubr.bf16.mxu0 %v497
        %713 = vmatmul.mubr.bf16.gmra.mrb[0].mxu0 %v496
        %v714 = vpop.f32.mrb[0].mxu0
        %v715 = vadd.f32 0.0, %v714
        %v716 = vpop.f32.mrb[0].mxu0
        %v717 = vadd.f32 0.0, %v716
        %v718 = vpop.f32.mrb[0].mxu0
        %v719 = vadd.f32 0.0, %v718
        %v720 = vpop.f32.mrb[0].mxu0
        %v721 = vadd.f32 0.0, %v720
        %722 = vmatprep.mubr.bf16.mxu0 %v499
        %723 = vmatmul.mubr.bf16.gmra.mrb[0].mxu0 %v498
        %v724 = vpop.f32.mrb[0].mxu0
        %v725 = vadd.f32 0.0, %v724
        %v726 = vpop.f32.mrb[0].mxu0
        %v727 = vadd.f32 0.0, %v726
        %v728 = vpop.f32.mrb[0].mxu0
        %v729 = vadd.f32 0.0, %v728
        %v730 = vpop.f32.mrb[0].mxu0
        %v731 = vadd.f32 0.0, %v730
        %732 = vdwg.mxu0
        %v733 = vpack.c.bf16 %v699, %v695
        %v734 = vpack.c.bf16 %v701, %v697
        %v735 = vpack.c.bf16 %v709, %v705
        %v736 = vpack.c.bf16 %v711, %v707
        %v737 = vpack.c.bf16 %v719, %v715
        %v738 = vpack.c.bf16 %v721, %v717
        %v739 = vpack.c.bf16 %v729, %v725
        %v740 = vpack.c.bf16 %v731, %v727
        %v741 = vlaneseq
        %v742 = vshrl.u32 %v741, 7
        %v743 = vsub.s32 0, %v742
        %v744 = vrot.slane %v320, %v743
        %v745 = vlaneseq
        %v746 = vshrl.u32 %v745, 7
        %v747 = vsub.s32 0, %v746
        %v748 = vrot.slane %v321, %v747
        %v781 = vunpack.c.l.b16 %v361
        %v782 = vunpack.c.h.b16 %v361
        %v783 = vunpack.c.l.b16 %v362
        %v784 = vunpack.c.h.b16 %v362
        %v785 = vunpack.c.l.b16 %v363
        %v786 = vunpack.c.h.b16 %v363
        %v787 = vunpack.c.l.b16 %v364
        %v788 = vunpack.c.h.b16 %v364
        %v789 = vunpack.c.l.b16 %v365
        %v790 = vunpack.c.h.b16 %v365
        %v791 = vunpack.c.l.b16 %v366
        %v792 = vunpack.c.h.b16 %v366
        %v793 = vunpack.c.l.b16 %v367
        %v794 = vunpack.c.h.b16 %v367
        %v795 = vunpack.c.l.b16 %v368
        %v796 = vunpack.c.h.b16 %v368
        %v797 = vunpack.c.l.b16 %v369
        %v798 = vunpack.c.h.b16 %v369
        %v799 = vunpack.c.l.b16 %v370
        %v800 = vunpack.c.h.b16 %v370
        %v801 = vunpack.c.l.b16 %v371
        %v802 = vunpack.c.h.b16 %v371
        %v803 = vunpack.c.l.b16 %v372
        %v804 = vunpack.c.h.b16 %v372
        %v805 = vunpack.c.l.b16 %v373
        %v806 = vunpack.c.h.b16 %v373
        %v807 = vunpack.c.l.b16 %v374
        %v808 = vunpack.c.h.b16 %v374
        %v809 = vunpack.c.l.b16 %v375
        %v810 = vunpack.c.h.b16 %v375
        %v811 = vunpack.c.l.b16 %v376
        %v812 = vunpack.c.h.b16 %v376
        %v813 = vunpack.c.l.b16 %v377
        %v814 = vunpack.c.h.b16 %v377
        %v815 = vunpack.c.l.b16 %v378
        %v816 = vunpack.c.h.b16 %v378
        %v817 = vunpack.c.l.b16 %v379
        %v818 = vunpack.c.h.b16 %v379
        %v819 = vunpack.c.l.b16 %v380
        %v820 = vunpack.c.h.b16 %v380
        %v821 = vunpack.c.l.b16 %v381
        %v822 = vunpack.c.h.b16 %v381
        %v823 = vunpack.c.l.b16 %v382
        %v824 = vunpack.c.h.b16 %v382
        %v825 = vunpack.c.l.b16 %v383
        %v826 = vunpack.c.h.b16 %v383
        %v827 = vunpack.c.l.b16 %v384
        %v828 = vunpack.c.h.b16 %v384
        %v829 = vunpack.c.l.b16 %v385
        %v830 = vunpack.c.h.b16 %v385
        %v831 = vunpack.c.l.b16 %v386
        %v832 = vunpack.c.h.b16 %v386
        %v833 = vunpack.c.l.b16 %v387
        %v834 = vunpack.c.h.b16 %v387
        %v835 = vunpack.c.l.b16 %v388
        %v836 = vunpack.c.h.b16 %v388
        %v837 = vunpack.c.l.b16 %v389
        %v838 = vunpack.c.h.b16 %v389
        %v839 = vunpack.c.l.b16 %v390
        %v840 = vunpack.c.h.b16 %v390
        %v841 = vunpack.c.l.b16 %v391
        %v842 = vunpack.c.h.b16 %v391
        %v843 = vunpack.c.l.b16 %v392
        %v844 = vunpack.c.h.b16 %v392
        %v845 = vpack.c.b16 %v783, %v781
        %v846 = vpack.c.b16 %v784, %v782
        %v847 = vpack.c.b16 %v787, %v785
        %v848 = vpack.c.b16 %v788, %v786
        %v849 = vpack.c.b16 %v791, %v789
        %v850 = vpack.c.b16 %v792, %v790
        %v851 = vpack.c.b16 %v795, %v793
        %v852 = vpack.c.b16 %v796, %v794
        %v853 = vpack.c.b16 %v799, %v797
        %v854 = vpack.c.b16 %v800, %v798
        %v855 = vpack.c.b16 %v803, %v801
        %v856 = vpack.c.b16 %v804, %v802
        %v857 = vpack.c.b16 %v807, %v805
        %v858 = vpack.c.b16 %v808, %v806
        %v859 = vpack.c.b16 %v811, %v809
        %v860 = vpack.c.b16 %v812, %v810
        %v861 = vpack.c.b16 %v815, %v813
        %v862 = vpack.c.b16 %v816, %v814
        %v863 = vpack.c.b16 %v819, %v817
        %v864 = vpack.c.b16 %v820, %v818
        %v865 = vpack.c.b16 %v823, %v821
        %v866 = vpack.c.b16 %v824, %v822
        %v867 = vpack.c.b16 %v827, %v825
        %v868 = vpack.c.b16 %v828, %v826
        %v869 = vpack.c.b16 %v831, %v829
        %v870 = vpack.c.b16 %v832, %v830
        %v871 = vpack.c.b16 %v835, %v833
        %v872 = vpack.c.b16 %v836, %v834
        %v873 = vpack.c.b16 %v839, %v837
        %v874 = vpack.c.b16 %v840, %v838
        %v875 = vpack.c.b16 %v843, %v841
        %v876 = vpack.c.b16 %v844, %v842
        %909 = vmatprep.subr.bf16.mxu0 %v846
        %910 = vmatpush1.bf16.msra.mxu0 %v845
        %911 = vmatprep.subr.bf16.mxu0 %v848
        %912 = vmatpush1.bf16.msra.mxu0 %v847
        %913 = vmatprep.subr.bf16.mxu0 %v850
        %914 = vmatpush1.bf16.msra.mxu0 %v849
        %915 = vmatprep.subr.bf16.mxu0 %v852
        %916 = vmatpush1.bf16.msra.mxu0 %v851
        %917 = vmatprep.subr.bf16.mxu0 %v854
        %918 = vmatpush1.bf16.msra.mxu0 %v853
        %919 = vmatprep.subr.bf16.mxu0 %v856
        %920 = vmatpush1.bf16.msra.mxu0 %v855
        %921 = vmatprep.subr.bf16.mxu0 %v858
        %922 = vmatpush1.bf16.msra.mxu0 %v857
        %923 = vmatprep.subr.bf16.mxu0 %v860
        %924 = vmatpush1.bf16.msra.mxu0 %v859
        %925 = vmatprep.subr.bf16.mxu0 %v862
        %926 = vmatpush1.bf16.msra.mxu0 %v861
        %927 = vmatprep.subr.bf16.mxu0 %v864
        %928 = vmatpush1.bf16.msra.mxu0 %v863
        %929 = vmatprep.subr.bf16.mxu0 %v866
        %930 = vmatpush1.bf16.msra.mxu0 %v865
        %931 = vmatprep.subr.bf16.mxu0 %v868
        %932 = vmatpush1.bf16.msra.mxu0 %v867
        %933 = vmatprep.subr.bf16.mxu0 %v870
        %934 = vmatpush1.bf16.msra.mxu0 %v869
        %935 = vmatprep.subr.bf16.mxu0 %v872
        %936 = vmatpush1.bf16.msra.mxu0 %v871
        %937 = vmatprep.subr.bf16.mxu0 %v874
        %938 = vmatpush1.bf16.msra.mxu0 %v873
        %939 = vmatprep.subr.bf16.mxu0 %v876
        %940 = vmatpush1.bf16.msra.mxu0 %v875
        %941 = vmatprep.mubr.bf16.mxu0 %v734
        %942 = vmatmul.mubr.bf16.gmra.mrb[0].mxu0 %v733
        %v943 = vpop.f32.mrb[0].mxu0
        %v944 = vadd.f32 %v744, %v943
        %v945 = vpop.f32.mrb[0].mxu0
        %v946 = vadd.f32 %v748, %v945
        %v947 = vpop.f32.mrb[0].mxu0
        %v948 = vadd.f32 %v744, %v947
        %v949 = vpop.f32.mrb[0].mxu0
        %v950 = vadd.f32 %v748, %v949
        %951 = vmatprep.mubr.bf16.mxu0 %v736
        %952 = vmatmul.mubr.bf16.gmra.mrb[0].mxu0 %v735
        %v953 = vpop.f32.mrb[0].mxu0
        %v954 = vadd.f32 %v744, %v953
        %v955 = vpop.f32.mrb[0].mxu0
        %v956 = vadd.f32 %v748, %v955
        %v957 = vpop.f32.mrb[0].mxu0
        %v958 = vadd.f32 %v744, %v957
        %v959 = vpop.f32.mrb[0].mxu0
        %v960 = vadd.f32 %v748, %v959
        %961 = vmatprep.mubr.bf16.mxu0 %v738
        %962 = vmatmul.mubr.bf16.gmra.mrb[0].mxu0 %v737
        %v963 = vpop.f32.mrb[0].mxu0
        %v964 = vadd.f32 %v744, %v963
        %v965 = vpop.f32.mrb[0].mxu0
        %v966 = vadd.f32 %v748, %v965
        %v967 = vpop.f32.mrb[0].mxu0
        %v968 = vadd.f32 %v744, %v967
        %v969 = vpop.f32.mrb[0].mxu0
        %v970 = vadd.f32 %v748, %v969
        %971 = vmatprep.mubr.bf16.mxu0 %v740
        %972 = vmatmul.mubr.bf16.gmra.mrb[0].mxu0 %v739
        %v973 = vpop.f32.mrb[0].mxu0
        %v974 = vadd.f32 %v744, %v973
        %v975 = vpop.f32.mrb[0].mxu0
        %v976 = vadd.f32 %v748, %v975
        %v977 = vpop.f32.mrb[0].mxu0
        %v978 = vadd.f32 %v744, %v977
        %v979 = vpop.f32.mrb[0].mxu0
        %v980 = vadd.f32 %v748, %v979
        %981 = vdwg.mxu0
        %v982 = vadd.f32 %v944, %v946
        %983 = vadd.xlane.f32.xlu0 %v982
        %v984 = vpop.xlane.xlu0 %983
        %v985 = vadd.f32 %v948, %v950
        %986 = vadd.xlane.f32.xlu0 %v985
        %v987 = vpop.xlane.xlu0 %986
        %v988 = vadd.f32 %v954, %v956
        %989 = vadd.xlane.f32.xlu0 %v988
        %v990 = vpop.xlane.xlu0 %989
        %v991 = vadd.f32 %v958, %v960
        %992 = vadd.xlane.f32.xlu0 %v991
        %v993 = vpop.xlane.xlu0 %992
        %v994 = vadd.f32 %v964, %v966
        %995 = vadd.xlane.f32.xlu0 %v994
        %v996 = vpop.xlane.xlu0 %995
        %v997 = vadd.f32 %v968, %v970
        %998 = vadd.xlane.f32.xlu0 %v997
        %v999 = vpop.xlane.xlu0 %998
        %v1000 = vadd.f32 %v974, %v976
        %1001 = vadd.xlane.f32.xlu0 %v1000
        %v1002 = vpop.xlane.xlu0 %1001
        %v1003 = vadd.f32 %v978, %v980
        %1004 = vadd.xlane.f32.xlu0 %v1003
        %v1005 = vpop.xlane.xlu0 %1004
        %v1006 = vmul.f32 %v984, 0.00625
        %v1007 = vmul.f32 %v987, 0.00625
        %v1008 = vmul.f32 %v990, 0.00625
        %v1009 = vmul.f32 %v993, 0.00625
        %v1010 = vmul.f32 %v996, 0.00625
        %v1011 = vmul.f32 %v999, 0.00625
        %v1012 = vmul.f32 %v1002, 0.00625
        %v1013 = vmul.f32 %v1005, 0.00625
        %v1014 = vsub.f32 %v944, %v1006
        %v1015 = vsub.f32 %v946, %v1006
        %v1016 = vsub.f32 %v948, %v1007
        %v1017 = vsub.f32 %v950, %v1007
        %v1018 = vsub.f32 %v954, %v1008
        %v1019 = vsub.f32 %v956, %v1008
        %v1020 = vsub.f32 %v958, %v1009
        %v1021 = vsub.f32 %v960, %v1009
        %v1022 = vsub.f32 %v964, %v1010
        %v1023 = vsub.f32 %v966, %v1010
        %v1024 = vsub.f32 %v968, %v1011
        %v1025 = vsub.f32 %v970, %v1011
        %v1026 = vsub.f32 %v974, %v1012
        %v1027 = vsub.f32 %v976, %v1012
        %v1028 = vsub.f32 %v978, %v1013
        %v1029 = vsub.f32 %v980, %v1013
        %v1030 = vlaneseq
        %v1031 = vshrl.u32 %v1030, 7
        %v1032 = vsub.s32 7, %v1031
        %v1033 = vrot.slane %v320, %v1032
        %v1034 = vlaneseq
        %v1035 = vshrl.u32 %v1034, 7
        %v1036 = vsub.s32 7, %v1035
        %v1037 = vrot.slane %v321, %v1036
        %v1038 = vmul.f32 %v1014, %v1033
        %v1039 = vmul.f32 %v1015, %v1037
        %v1040 = vmul.f32 %v1016, %v1033
        %v1041 = vmul.f32 %v1017, %v1037
        %v1042 = vmul.f32 %v1018, %v1033
        %v1043 = vmul.f32 %v1019, %v1037
        %v1044 = vmul.f32 %v1020, %v1033
        %v1045 = vmul.f32 %v1021, %v1037
        %v1046 = vmul.f32 %v1022, %v1033
        %v1047 = vmul.f32 %v1023, %v1037
        %v1048 = vmul.f32 %v1024, %v1033
        %v1049 = vmul.f32 %v1025, %v1037
        %v1050 = vmul.f32 %v1026, %v1033
        %v1051 = vmul.f32 %v1027, %v1037
        %v1052 = vmul.f32 %v1028, %v1033
        %v1053 = vmul.f32 %v1029, %v1037
        %v1054 = vmul.f32 %v1038, %v1038
        %v1055 = vmul.f32 %v1039, %v1039
        %v1056 = vmul.f32 %v1040, %v1040
        %v1057 = vmul.f32 %v1041, %v1041
        %v1058 = vmul.f32 %v1042, %v1042
        %v1059 = vmul.f32 %v1043, %v1043
        %v1060 = vmul.f32 %v1044, %v1044
        %v1061 = vmul.f32 %v1045, %v1045
        %v1062 = vmul.f32 %v1046, %v1046
        %v1063 = vmul.f32 %v1047, %v1047
        %v1064 = vmul.f32 %v1048, %v1048
        %v1065 = vmul.f32 %v1049, %v1049
        %v1066 = vmul.f32 %v1050, %v1050
        %v1067 = vmul.f32 %v1051, %v1051
        %v1068 = vmul.f32 %v1052, %v1052
        %v1069 = vmul.f32 %v1053, %v1053
        %v1070 = vadd.f32 %v1054, %v1055
        %1071 = vadd.xlane.f32.xlu0 %v1070
        %v1072 = vpop.xlane.xlu0 %1071
        %v1073 = vadd.f32 %v1056, %v1057
        %1074 = vadd.xlane.f32.xlu0 %v1073
        %v1075 = vpop.xlane.xlu0 %1074
        %v1076 = vadd.f32 %v1058, %v1059
        %1077 = vadd.xlane.f32.xlu0 %v1076
        %v1078 = vpop.xlane.xlu0 %1077
        %v1079 = vadd.f32 %v1060, %v1061
        %1080 = vadd.xlane.f32.xlu0 %v1079
        %v1081 = vpop.xlane.xlu0 %1080
        %v1082 = vadd.f32 %v1062, %v1063
        %1083 = vadd.xlane.f32.xlu0 %v1082
        %v1084 = vpop.xlane.xlu0 %1083
        %v1085 = vadd.f32 %v1064, %v1065
        %1086 = vadd.xlane.f32.xlu0 %v1085
        %v1087 = vpop.xlane.xlu0 %1086
        %v1088 = vadd.f32 %v1066, %v1067
        %1089 = vadd.xlane.f32.xlu0 %v1088
        %v1090 = vpop.xlane.xlu0 %1089
        %v1091 = vadd.f32 %v1068, %v1069
        %1092 = vadd.xlane.f32.xlu0 %v1091
        %v1093 = vpop.xlane.xlu0 %1092
        %v1094 = vmul.f32 %v1072, 0.00625
        %v1095 = vmul.f32 %v1075, 0.00625
        %v1096 = vmul.f32 %v1078, 0.00625
        %v1097 = vmul.f32 %v1081, 0.00625
        %v1098 = vmul.f32 %v1084, 0.00625
        %v1099 = vmul.f32 %v1087, 0.00625
        %v1100 = vmul.f32 %v1090, 0.00625
        %v1101 = vmul.f32 %v1093, 0.00625
        %v1102 = vadd.f32 %v1094, 1e-05
        %v1103 = vadd.f32 %v1095, 1e-05
        %v1104 = vadd.f32 %v1096, 1e-05
        %v1105 = vadd.f32 %v1097, 1e-05
        %v1106 = vadd.f32 %v1098, 1e-05
        %v1107 = vadd.f32 %v1099, 1e-05
        %v1108 = vadd.f32 %v1100, 1e-05
        %v1109 = vadd.f32 %v1101, 1e-05
        %v1110 = vrsqrt.pop %v1102
        %v1111 = vrsqrt.pop %v1103
        %v1112 = vrsqrt.pop %v1104
        %v1113 = vrsqrt.pop %v1105
        %v1114 = vrsqrt.pop %v1106
        %v1115 = vrsqrt.pop %v1107
        %v1116 = vrsqrt.pop %v1108
        %v1117 = vrsqrt.pop %v1109
        %v1118 = vmul.f32 %v1014, %v1110
        %v1119 = vmul.f32 %v1015, %v1110
        %v1120 = vmul.f32 %v1016, %v1111
        %v1121 = vmul.f32 %v1017, %v1111
        %v1122 = vmul.f32 %v1018, %v1112
        %v1123 = vmul.f32 %v1019, %v1112
        %v1124 = vmul.f32 %v1020, %v1113
        %v1125 = vmul.f32 %v1021, %v1113
        %v1126 = vmul.f32 %v1022, %v1114
        %v1127 = vmul.f32 %v1023, %v1114
        %v1128 = vmul.f32 %v1024, %v1115
        %v1129 = vmul.f32 %v1025, %v1115
        %v1130 = vmul.f32 %v1026, %v1116
        %v1131 = vmul.f32 %v1027, %v1116
        %v1132 = vmul.f32 %v1028, %v1117
        %v1133 = vmul.f32 %v1029, %v1117
        %v1134 = vlaneseq
        %v1135 = vshrl.u32 %v1134, 7
        %v1136 = vsub.s32 1, %v1135
        %v1137 = vrot.slane %v320, %v1136
        %v1138 = vlaneseq
        %v1139 = vshrl.u32 %v1138, 7
        %v1140 = vsub.s32 1, %v1139
        %v1141 = vrot.slane %v321, %v1140
        %v1142 = vmul.f32 %v1118, %v1137
        %v1143 = vmul.f32 %v1119, %v1141
        %v1144 = vmul.f32 %v1120, %v1137
        %v1145 = vmul.f32 %v1121, %v1141
        %v1146 = vmul.f32 %v1122, %v1137
        %v1147 = vmul.f32 %v1123, %v1141
        %v1148 = vmul.f32 %v1124, %v1137
        %v1149 = vmul.f32 %v1125, %v1141
        %v1150 = vmul.f32 %v1126, %v1137
        %v1151 = vmul.f32 %v1127, %v1141
        %v1152 = vmul.f32 %v1128, %v1137
        %v1153 = vmul.f32 %v1129, %v1141
        %v1154 = vmul.f32 %v1130, %v1137
        %v1155 = vmul.f32 %v1131, %v1141
        %v1156 = vmul.f32 %v1132, %v1137
        %v1157 = vmul.f32 %v1133, %v1141
        %v1158 = vlaneseq
        %v1159 = vshrl.u32 %v1158, 7
        %v1160 = vsub.s32 2, %v1159
        %v1161 = vrot.slane %v320, %v1160
        %v1162 = vlaneseq
        %v1163 = vshrl.u32 %v1162, 7
        %v1164 = vsub.s32 2, %v1163
        %v1165 = vrot.slane %v321, %v1164
        %v1166 = vadd.f32 %v1142, %v1161
        %v1167 = vadd.f32 %v1143, %v1165
        %v1168 = vadd.f32 %v1144, %v1161
        %v1169 = vadd.f32 %v1145, %v1165
        %v1170 = vadd.f32 %v1146, %v1161
        %v1171 = vadd.f32 %v1147, %v1165
        %v1172 = vadd.f32 %v1148, %v1161
        %v1173 = vadd.f32 %v1149, %v1165
        %v1174 = vadd.f32 %v1150, %v1161
        %v1175 = vadd.f32 %v1151, %v1165
        %v1176 = vadd.f32 %v1152, %v1161
        %v1177 = vadd.f32 %v1153, %v1165
        %v1178 = vadd.f32 %v1154, %v1161
        %v1179 = vadd.f32 %v1155, %v1165
        %v1180 = vadd.f32 %v1156, %v1161
        %v1181 = vadd.f32 %v1157, %v1165
        %vm1182 = vcmp.gt.f32.partialorder %v1166, 0.0
        %vm1183 = vcmp.gt.f32.partialorder %v1167, 0.0
        %vm1184 = vcmp.gt.f32.partialorder %v1168, 0.0
        %vm1185 = vcmp.gt.f32.partialorder %v1169, 0.0
        %vm1186 = vcmp.gt.f32.partialorder %v1170, 0.0
        %vm1187 = vcmp.gt.f32.partialorder %v1171, 0.0
        %vm1188 = vcmp.gt.f32.partialorder %v1172, 0.0
        %vm1189 = vcmp.gt.f32.partialorder %v1173, 0.0
        %vm1190 = vcmp.gt.f32.partialorder %v1174, 0.0
        %vm1191 = vcmp.gt.f32.partialorder %v1175, 0.0
        %vm1192 = vcmp.gt.f32.partialorder %v1176, 0.0
        %vm1193 = vcmp.gt.f32.partialorder %v1177, 0.0
        %vm1194 = vcmp.gt.f32.partialorder %v1178, 0.0
        %vm1195 = vcmp.gt.f32.partialorder %v1179, 0.0
        %vm1196 = vcmp.gt.f32.partialorder %v1180, 0.0
        %vm1197 = vcmp.gt.f32.partialorder %v1181, 0.0
        %v1198 = vstv %s324
        %v1199 = vmul.f32 %v1198, %v1166
        %v1200 = vmul.f32 %v1198, %v1167
        %v1201 = vmul.f32 %v1198, %v1168
        %v1202 = vmul.f32 %v1198, %v1169
        %v1203 = vmul.f32 %v1198, %v1170
        %v1204 = vmul.f32 %v1198, %v1171
        %v1205 = vmul.f32 %v1198, %v1172
        %v1206 = vmul.f32 %v1198, %v1173
        %v1207 = vmul.f32 %v1198, %v1174
        %v1208 = vmul.f32 %v1198, %v1175
        %v1209 = vmul.f32 %v1198, %v1176
        %v1210 = vmul.f32 %v1198, %v1177
        %v1211 = vmul.f32 %v1198, %v1178
        %v1212 = vmul.f32 %v1198, %v1179
        %v1213 = vmul.f32 %v1198, %v1180
        %v1214 = vmul.f32 %v1198, %v1181
        %v1215 = vsel %vm1182, %v1166, %v1199
        %v1216 = vsel %vm1183, %v1167, %v1200
        %v1217 = vsel %vm1184, %v1168, %v1201
        %v1218 = vsel %vm1185, %v1169, %v1202
        %v1219 = vsel %vm1186, %v1170, %v1203
        %v1220 = vsel %vm1187, %v1171, %v1204
        %v1221 = vsel %vm1188, %v1172, %v1205
        %v1222 = vsel %vm1189, %v1173, %v1206
        %v1223 = vsel %vm1190, %v1174, %v1207
        %v1224 = vsel %vm1191, %v1175, %v1208
        %v1225 = vsel %vm1192, %v1176, %v1209
        %v1226 = vsel %vm1193, %v1177, %v1210
        %v1227 = vsel %vm1194, %v1178, %v1211
        %v1228 = vsel %vm1195, %v1179, %v1212
        %v1229 = vsel %vm1196, %v1180, %v1213
        %v1230 = vsel %vm1197, %v1181, %v1214
        %v1231 = vpack.c.bf16 %v1217, %v1215
        %v1232 = vpack.c.bf16 %v1218, %v1216
        %v1233 = vpack.c.bf16 %v1221, %v1219
        %v1234 = vpack.c.bf16 %v1222, %v1220
        %v1235 = vpack.c.bf16 %v1225, %v1223
        %v1236 = vpack.c.bf16 %v1226, %v1224
        %v1237 = vpack.c.bf16 %v1229, %v1227
        %v1238 = vpack.c.bf16 %v1230, %v1228
        %v1239 = vlaneseq
        %v1240 = vshrl.u32 %v1239, 7
        %v1241 = vsub.s32 3, %v1240
        %v1242 = vrot.slane %v320, %v1241
        %v1243 = vlaneseq
        %v1244 = vshrl.u32 %v1243, 7
        %v1245 = vsub.s32 3, %v1244
        %v1246 = vrot.slane %v321, %v1245
        %v1279 = vunpack.c.l.b16 %v394
        %v1280 = vunpack.c.h.b16 %v394
        %v1281 = vunpack.c.l.b16 %v395
        %v1282 = vunpack.c.h.b16 %v395
        %v1283 = vunpack.c.l.b16 %v396
        %v1284 = vunpack.c.h.b16 %v396
        %v1285 = vunpack.c.l.b16 %v397
        %v1286 = vunpack.c.h.b16 %v397
        %v1287 = vunpack.c.l.b16 %v398
        %v1288 = vunpack.c.h.b16 %v398
        %v1289 = vunpack.c.l.b16 %v399
        %v1290 = vunpack.c.h.b16 %v399
        %v1291 = vunpack.c.l.b16 %v400
        %v1292 = vunpack.c.h.b16 %v400
        %v1293 = vunpack.c.l.b16 %v401
        %v1294 = vunpack.c.h.b16 %v401
        %v1295 = vunpack.c.l.b16 %v402
        %v1296 = vunpack.c.h.b16 %v402
        %v1297 = vunpack.c.l.b16 %v403
        %v1298 = vunpack.c.h.b16 %v403
        %v1299 = vunpack.c.l.b16 %v404
        %v1300 = vunpack.c.h.b16 %v404
        %v1301 = vunpack.c.l.b16 %v405
        %v1302 = vunpack.c.h.b16 %v405
        %v1303 = vunpack.c.l.b16 %v406
        %v1304 = vunpack.c.h.b16 %v406
        %v1305 = vunpack.c.l.b16 %v407
        %v1306 = vunpack.c.h.b16 %v407
        %v1307 = vunpack.c.l.b16 %v408
        %v1308 = vunpack.c.h.b16 %v408
        %v1309 = vunpack.c.l.b16 %v409
        %v1310 = vunpack.c.h.b16 %v409
        %v1311 = vunpack.c.l.b16 %v410
        %v1312 = vunpack.c.h.b16 %v410
        %v1313 = vunpack.c.l.b16 %v411
        %v1314 = vunpack.c.h.b16 %v411
        %v1315 = vunpack.c.l.b16 %v412
        %v1316 = vunpack.c.h.b16 %v412
        %v1317 = vunpack.c.l.b16 %v413
        %v1318 = vunpack.c.h.b16 %v413
        %v1319 = vunpack.c.l.b16 %v414
        %v1320 = vunpack.c.h.b16 %v414
        %v1321 = vunpack.c.l.b16 %v415
        %v1322 = vunpack.c.h.b16 %v415
        %v1323 = vunpack.c.l.b16 %v416
        %v1324 = vunpack.c.h.b16 %v416
        %v1325 = vunpack.c.l.b16 %v417
        %v1326 = vunpack.c.h.b16 %v417
        %v1327 = vunpack.c.l.b16 %v418
        %v1328 = vunpack.c.h.b16 %v418
        %v1329 = vunpack.c.l.b16 %v419
        %v1330 = vunpack.c.h.b16 %v419
        %v1331 = vunpack.c.l.b16 %v420
        %v1332 = vunpack.c.h.b16 %v420
        %v1333 = vunpack.c.l.b16 %v421
        %v1334 = vunpack.c.h.b16 %v421
        %v1335 = vunpack.c.l.b16 %v422
        %v1336 = vunpack.c.h.b16 %v422
        %v1337 = vunpack.c.l.b16 %v423
        %v1338 = vunpack.c.h.b16 %v423
        %v1339 = vunpack.c.l.b16 %v424
        %v1340 = vunpack.c.h.b16 %v424
        %v1341 = vunpack.c.l.b16 %v425
        %v1342 = vunpack.c.h.b16 %v425
        %v1343 = vpack.c.b16 %v1281, %v1279
        %v1344 = vpack.c.b16 %v1282, %v1280
        %v1345 = vpack.c.b16 %v1285, %v1283
        %v1346 = vpack.c.b16 %v1286, %v1284
        %v1347 = vpack.c.b16 %v1289, %v1287
        %v1348 = vpack.c.b16 %v1290, %v1288
        %v1349 = vpack.c.b16 %v1293, %v1291
        %v1350 = vpack.c.b16 %v1294, %v1292
        %v1351 = vpack.c.b16 %v1297, %v1295
        %v1352 = vpack.c.b16 %v1298, %v1296
        %v1353 = vpack.c.b16 %v1301, %v1299
        %v1354 = vpack.c.b16 %v1302, %v1300
        %v1355 = vpack.c.b16 %v1305, %v1303
        %v1356 = vpack.c.b16 %v1306, %v1304
        %v1357 = vpack.c.b16 %v1309, %v1307
        %v1358 = vpack.c.b16 %v1310, %v1308
        %v1359 = vpack.c.b16 %v1313, %v1311
        %v1360 = vpack.c.b16 %v1314, %v1312
        %v1361 = vpack.c.b16 %v1317, %v1315
        %v1362 = vpack.c.b16 %v1318, %v1316
        %v1363 = vpack.c.b16 %v1321, %v1319
        %v1364 = vpack.c.b16 %v1322, %v1320
        %v1365 = vpack.c.b16 %v1325, %v1323
        %v1366 = vpack.c.b16 %v1326, %v1324
        %v1367 = vpack.c.b16 %v1329, %v1327
        %v1368 = vpack.c.b16 %v1330, %v1328
        %v1369 = vpack.c.b16 %v1333, %v1331
        %v1370 = vpack.c.b16 %v1334, %v1332
        %v1371 = vpack.c.b16 %v1337, %v1335
        %v1372 = vpack.c.b16 %v1338, %v1336
        %v1373 = vpack.c.b16 %v1341, %v1339
        %v1374 = vpack.c.b16 %v1342, %v1340
        %1407 = vmatprep.subr.bf16.mxu0 %v1344
        %1408 = vmatpush1.bf16.msra.mxu0 %v1343
        %1409 = vmatprep.subr.bf16.mxu0 %v1346
        %1410 = vmatpush1.bf16.msra.mxu0 %v1345
        %1411 = vmatprep.subr.bf16.mxu0 %v1348
        %1412 = vmatpush1.bf16.msra.mxu0 %v1347
        %1413 = vmatprep.subr.bf16.mxu0 %v1350
        %1414 = vmatpush1.bf16.msra.mxu0 %v1349
        %1415 = vmatprep.subr.bf16.mxu0 %v1352
        %1416 = vmatpush1.bf16.msra.mxu0 %v1351
        %1417 = vmatprep.subr.bf16.mxu0 %v1354
        %1418 = vmatpush1.bf16.msra.mxu0 %v1353
        %1419 = vmatprep.subr.bf16.mxu0 %v1356
        %1420 = vmatpush1.bf16.msra.mxu0 %v1355
        %1421 = vmatprep.subr.bf16.mxu0 %v1358
        %1422 = vmatpush1.bf16.msra.mxu0 %v1357
        %1423 = vmatprep.subr.bf16.mxu0 %v1360
        %1424 = vmatpush1.bf16.msra.mxu0 %v1359
        %1425 = vmatprep.subr.bf16.mxu0 %v1362
        %1426 = vmatpush1.bf16.msra.mxu0 %v1361
        %1427 = vmatprep.subr.bf16.mxu0 %v1364
        %1428 = vmatpush1.bf16.msra.mxu0 %v1363
        %1429 = vmatprep.subr.bf16.mxu0 %v1366
        %1430 = vmatpush1.bf16.msra.mxu0 %v1365
        %1431 = vmatprep.subr.bf16.mxu0 %v1368
        %1432 = vmatpush1.bf16.msra.mxu0 %v1367
        %1433 = vmatprep.subr.bf16.mxu0 %v1370
        %1434 = vmatpush1.bf16.msra.mxu0 %v1369
        %1435 = vmatprep.subr.bf16.mxu0 %v1372
        %1436 = vmatpush1.bf16.msra.mxu0 %v1371
        %1437 = vmatprep.subr.bf16.mxu0 %v1374
        %1438 = vmatpush1.bf16.msra.mxu0 %v1373
        %1439 = vmatprep.mubr.bf16.mxu0 %v1232
        %1440 = vmatmul.mubr.bf16.gmra.mrb[0].mxu0 %v1231
        %v1441 = vpop.f32.mrb[0].mxu0
        %v1442 = vadd.f32 %v1242, %v1441
        %v1443 = vpop.f32.mrb[0].mxu0
        %v1444 = vadd.f32 %v1246, %v1443
        %v1445 = vpop.f32.mrb[0].mxu0
        %v1446 = vadd.f32 %v1242, %v1445
        %v1447 = vpop.f32.mrb[0].mxu0
        %v1448 = vadd.f32 %v1246, %v1447
        %1449 = vmatprep.mubr.bf16.mxu0 %v1234
        %1450 = vmatmul.mubr.bf16.gmra.mrb[0].mxu0 %v1233
        %v1451 = vpop.f32.mrb[0].mxu0
        %v1452 = vadd.f32 %v1242, %v1451
        %v1453 = vpop.f32.mrb[0].mxu0
        %v1454 = vadd.f32 %v1246, %v1453
        %v1455 = vpop.f32.mrb[0].mxu0
        %v1456 = vadd.f32 %v1242, %v1455
        %v1457 = vpop.f32.mrb[0].mxu0
        %v1458 = vadd.f32 %v1246, %v1457
        %1459 = vmatprep.mubr.bf16.mxu0 %v1236
        %1460 = vmatmul.mubr.bf16.gmra.mrb[0].mxu0 %v1235
        %v1461 = vpop.f32.mrb[0].mxu0
        %v1462 = vadd.f32 %v1242, %v1461
        %v1463 = vpop.f32.mrb[0].mxu0
        %v1464 = vadd.f32 %v1246, %v1463
        %v1465 = vpop.f32.mrb[0].mxu0
        %v1466 = vadd.f32 %v1242, %v1465
        %v1467 = vpop.f32.mrb[0].mxu0
        %v1468 = vadd.f32 %v1246, %v1467
        %1469 = vmatprep.mubr.bf16.mxu0 %v1238
        %1470 = vmatmul.mubr.bf16.gmra.mrb[0].mxu0 %v1237
        %v1471 = vpop.f32.mrb[0].mxu0
        %v1472 = vadd.f32 %v1242, %v1471
        %v1473 = vpop.f32.mrb[0].mxu0
        %v1474 = vadd.f32 %v1246, %v1473
        %v1475 = vpop.f32.mrb[0].mxu0
        %v1476 = vadd.f32 %v1242, %v1475
        %v1477 = vpop.f32.mrb[0].mxu0
        %v1478 = vadd.f32 %v1246, %v1477
        %1479 = vdwg.mxu0
        %v1480 = vadd.f32 %v1442, %v1444
        %1481 = vadd.xlane.f32.xlu0 %v1480
        %v1482 = vpop.xlane.xlu0 %1481
        %v1483 = vadd.f32 %v1446, %v1448
        %1484 = vadd.xlane.f32.xlu0 %v1483
        %v1485 = vpop.xlane.xlu0 %1484
        %v1486 = vadd.f32 %v1452, %v1454
        %1487 = vadd.xlane.f32.xlu0 %v1486
        %v1488 = vpop.xlane.xlu0 %1487
        %v1489 = vadd.f32 %v1456, %v1458
        %1490 = vadd.xlane.f32.xlu0 %v1489
        %v1491 = vpop.xlane.xlu0 %1490
        %v1492 = vadd.f32 %v1462, %v1464
        %1493 = vadd.xlane.f32.xlu0 %v1492
        %v1494 = vpop.xlane.xlu0 %1493
        %v1495 = vadd.f32 %v1466, %v1468
        %1496 = vadd.xlane.f32.xlu0 %v1495
        %v1497 = vpop.xlane.xlu0 %1496
        %v1498 = vadd.f32 %v1472, %v1474
        %1499 = vadd.xlane.f32.xlu0 %v1498
        %v1500 = vpop.xlane.xlu0 %1499
        %v1501 = vadd.f32 %v1476, %v1478
        %1502 = vadd.xlane.f32.xlu0 %v1501
        %v1503 = vpop.xlane.xlu0 %1502
        %v1504 = vmul.f32 %v1482, 0.00625
        %v1505 = vmul.f32 %v1485, 0.00625
        %v1506 = vmul.f32 %v1488, 0.00625
        %v1507 = vmul.f32 %v1491, 0.00625
        %v1508 = vmul.f32 %v1494, 0.00625
        %v1509 = vmul.f32 %v1497, 0.00625
        %v1510 = vmul.f32 %v1500, 0.00625
        %v1511 = vmul.f32 %v1503, 0.00625
        %v1512 = vsub.f32 %v1442, %v1504
        %v1513 = vsub.f32 %v1444, %v1504
        %v1514 = vsub.f32 %v1446, %v1505
        %v1515 = vsub.f32 %v1448, %v1505
        %v1516 = vsub.f32 %v1452, %v1506
        %v1517 = vsub.f32 %v1454, %v1506
        %v1518 = vsub.f32 %v1456, %v1507
        %v1519 = vsub.f32 %v1458, %v1507
        %v1520 = vsub.f32 %v1462, %v1508
        %v1521 = vsub.f32 %v1464, %v1508
        %v1522 = vsub.f32 %v1466, %v1509
        %v1523 = vsub.f32 %v1468, %v1509
        %v1524 = vsub.f32 %v1472, %v1510
        %v1525 = vsub.f32 %v1474, %v1510
        %v1526 = vsub.f32 %v1476, %v1511
        %v1527 = vsub.f32 %v1478, %v1511
        %v1528 = vmul.f32 %v1512, %v1033
        %v1529 = vmul.f32 %v1513, %v1037
        %v1530 = vmul.f32 %v1514, %v1033
        %v1531 = vmul.f32 %v1515, %v1037
        %v1532 = vmul.f32 %v1516, %v1033
        %v1533 = vmul.f32 %v1517, %v1037
        %v1534 = vmul.f32 %v1518, %v1033
        %v1535 = vmul.f32 %v1519, %v1037
        %v1536 = vmul.f32 %v1520, %v1033
        %v1537 = vmul.f32 %v1521, %v1037
        %v1538 = vmul.f32 %v1522, %v1033
        %v1539 = vmul.f32 %v1523, %v1037
        %v1540 = vmul.f32 %v1524, %v1033
        %v1541 = vmul.f32 %v1525, %v1037
        %v1542 = vmul.f32 %v1526, %v1033
        %v1543 = vmul.f32 %v1527, %v1037
        %v1544 = vmul.f32 %v1528, %v1528
        %v1545 = vmul.f32 %v1529, %v1529
        %v1546 = vmul.f32 %v1530, %v1530
        %v1547 = vmul.f32 %v1531, %v1531
        %v1548 = vmul.f32 %v1532, %v1532
        %v1549 = vmul.f32 %v1533, %v1533
        %v1550 = vmul.f32 %v1534, %v1534
        %v1551 = vmul.f32 %v1535, %v1535
        %v1552 = vmul.f32 %v1536, %v1536
        %v1553 = vmul.f32 %v1537, %v1537
        %v1554 = vmul.f32 %v1538, %v1538
        %v1555 = vmul.f32 %v1539, %v1539
        %v1556 = vmul.f32 %v1540, %v1540
        %v1557 = vmul.f32 %v1541, %v1541
        %v1558 = vmul.f32 %v1542, %v1542
        %v1559 = vmul.f32 %v1543, %v1543
        %v1560 = vadd.f32 %v1544, %v1545
        %1561 = vadd.xlane.f32.xlu0 %v1560
        %v1562 = vpop.xlane.xlu0 %1561
        %v1563 = vadd.f32 %v1546, %v1547
        %1564 = vadd.xlane.f32.xlu0 %v1563
        %v1565 = vpop.xlane.xlu0 %1564
        %v1566 = vadd.f32 %v1548, %v1549
        %1567 = vadd.xlane.f32.xlu0 %v1566
        %v1568 = vpop.xlane.xlu0 %1567
        %v1569 = vadd.f32 %v1550, %v1551
        %1570 = vadd.xlane.f32.xlu0 %v1569
        %v1571 = vpop.xlane.xlu0 %1570
        %v1572 = vadd.f32 %v1552, %v1553
        %1573 = vadd.xlane.f32.xlu0 %v1572
        %v1574 = vpop.xlane.xlu0 %1573
        %v1575 = vadd.f32 %v1554, %v1555
        %1576 = vadd.xlane.f32.xlu0 %v1575
        %v1577 = vpop.xlane.xlu0 %1576
        %v1578 = vadd.f32 %v1556, %v1557
        %1579 = vadd.xlane.f32.xlu0 %v1578
        %v1580 = vpop.xlane.xlu0 %1579
        %v1581 = vadd.f32 %v1558, %v1559
        %1582 = vadd.xlane.f32.xlu0 %v1581
        %v1583 = vpop.xlane.xlu0 %1582
        %v1584 = vmul.f32 %v1562, 0.00625
        %v1585 = vmul.f32 %v1565, 0.00625
        %v1586 = vmul.f32 %v1568, 0.00625
        %v1587 = vmul.f32 %v1571, 0.00625
        %v1588 = vmul.f32 %v1574, 0.00625
        %v1589 = vmul.f32 %v1577, 0.00625
        %v1590 = vmul.f32 %v1580, 0.00625
        %v1591 = vmul.f32 %v1583, 0.00625
        %v1592 = vadd.f32 %v1584, 1e-05
        %v1593 = vadd.f32 %v1585, 1e-05
        %v1594 = vadd.f32 %v1586, 1e-05
        %v1595 = vadd.f32 %v1587, 1e-05
        %v1596 = vadd.f32 %v1588, 1e-05
        %v1597 = vadd.f32 %v1589, 1e-05
        %v1598 = vadd.f32 %v1590, 1e-05
        %v1599 = vadd.f32 %v1591, 1e-05
        %v1600 = vrsqrt.pop %v1592
        %v1601 = vrsqrt.pop %v1593
        %v1602 = vrsqrt.pop %v1594
        %v1603 = vrsqrt.pop %v1595
        %v1604 = vrsqrt.pop %v1596
        %v1605 = vrsqrt.pop %v1597
        %v1606 = vrsqrt.pop %v1598
        %v1607 = vrsqrt.pop %v1599
        %v1608 = vmul.f32 %v1512, %v1600
        %v1609 = vmul.f32 %v1513, %v1600
        %v1610 = vmul.f32 %v1514, %v1601
        %v1611 = vmul.f32 %v1515, %v1601
        %v1612 = vmul.f32 %v1516, %v1602
        %v1613 = vmul.f32 %v1517, %v1602
        %v1614 = vmul.f32 %v1518, %v1603
        %v1615 = vmul.f32 %v1519, %v1603
        %v1616 = vmul.f32 %v1520, %v1604
        %v1617 = vmul.f32 %v1521, %v1604
        %v1618 = vmul.f32 %v1522, %v1605
        %v1619 = vmul.f32 %v1523, %v1605
        %v1620 = vmul.f32 %v1524, %v1606
        %v1621 = vmul.f32 %v1525, %v1606
        %v1622 = vmul.f32 %v1526, %v1607
        %v1623 = vmul.f32 %v1527, %v1607
        %v1624 = vlaneseq
        %v1625 = vshrl.u32 %v1624, 7
        %v1626 = vsub.s32 4, %v1625
        %v1627 = vrot.slane %v320, %v1626
        %v1628 = vlaneseq
        %v1629 = vshrl.u32 %v1628, 7
        %v1630 = vsub.s32 4, %v1629
        %v1631 = vrot.slane %v321, %v1630
        %v1632 = vmul.f32 %v1608, %v1627
        %v1633 = vmul.f32 %v1609, %v1631
        %v1634 = vmul.f32 %v1610, %v1627
        %v1635 = vmul.f32 %v1611, %v1631
        %v1636 = vmul.f32 %v1612, %v1627
        %v1637 = vmul.f32 %v1613, %v1631
        %v1638 = vmul.f32 %v1614, %v1627
        %v1639 = vmul.f32 %v1615, %v1631
        %v1640 = vmul.f32 %v1616, %v1627
        %v1641 = vmul.f32 %v1617, %v1631
        %v1642 = vmul.f32 %v1618, %v1627
        %v1643 = vmul.f32 %v1619, %v1631
        %v1644 = vmul.f32 %v1620, %v1627
        %v1645 = vmul.f32 %v1621, %v1631
        %v1646 = vmul.f32 %v1622, %v1627
        %v1647 = vmul.f32 %v1623, %v1631
        %v1648 = vlaneseq
        %v1649 = vshrl.u32 %v1648, 7
        %v1650 = vsub.s32 5, %v1649
        %v1651 = vrot.slane %v320, %v1650
        %v1652 = vlaneseq
        %v1653 = vshrl.u32 %v1652, 7
        %v1654 = vsub.s32 5, %v1653
        %v1655 = vrot.slane %v321, %v1654
        %v1656 = vadd.f32 %v1632, %v1651
        %v1657 = vadd.f32 %v1633, %v1655
        %v1658 = vadd.f32 %v1634, %v1651
        %v1659 = vadd.f32 %v1635, %v1655
        %v1660 = vadd.f32 %v1636, %v1651
        %v1661 = vadd.f32 %v1637, %v1655
        %v1662 = vadd.f32 %v1638, %v1651
        %v1663 = vadd.f32 %v1639, %v1655
        %v1664 = vadd.f32 %v1640, %v1651
        %v1665 = vadd.f32 %v1641, %v1655
        %v1666 = vadd.f32 %v1642, %v1651
        %v1667 = vadd.f32 %v1643, %v1655
        %v1668 = vadd.f32 %v1644, %v1651
        %v1669 = vadd.f32 %v1645, %v1655
        %v1670 = vadd.f32 %v1646, %v1651
        %v1671 = vadd.f32 %v1647, %v1655
        %vm1672 = vcmp.gt.f32.partialorder %v1656, 0.0
        %vm1673 = vcmp.gt.f32.partialorder %v1657, 0.0
        %vm1674 = vcmp.gt.f32.partialorder %v1658, 0.0
        %vm1675 = vcmp.gt.f32.partialorder %v1659, 0.0
        %vm1676 = vcmp.gt.f32.partialorder %v1660, 0.0
        %vm1677 = vcmp.gt.f32.partialorder %v1661, 0.0
        %vm1678 = vcmp.gt.f32.partialorder %v1662, 0.0
        %vm1679 = vcmp.gt.f32.partialorder %v1663, 0.0
        %vm1680 = vcmp.gt.f32.partialorder %v1664, 0.0
        %vm1681 = vcmp.gt.f32.partialorder %v1665, 0.0
        %vm1682 = vcmp.gt.f32.partialorder %v1666, 0.0
        %vm1683 = vcmp.gt.f32.partialorder %v1667, 0.0
        %vm1684 = vcmp.gt.f32.partialorder %v1668, 0.0
        %vm1685 = vcmp.gt.f32.partialorder %v1669, 0.0
        %vm1686 = vcmp.gt.f32.partialorder %v1670, 0.0
        %vm1687 = vcmp.gt.f32.partialorder %v1671, 0.0
        %v1688 = vstv %s325
        %v1689 = vmul.f32 %v1688, %v1656
        %v1690 = vmul.f32 %v1688, %v1657
        %v1691 = vmul.f32 %v1688, %v1658
        %v1692 = vmul.f32 %v1688, %v1659
        %v1693 = vmul.f32 %v1688, %v1660
        %v1694 = vmul.f32 %v1688, %v1661
        %v1695 = vmul.f32 %v1688, %v1662
        %v1696 = vmul.f32 %v1688, %v1663
        %v1697 = vmul.f32 %v1688, %v1664
        %v1698 = vmul.f32 %v1688, %v1665
        %v1699 = vmul.f32 %v1688, %v1666
        %v1700 = vmul.f32 %v1688, %v1667
        %v1701 = vmul.f32 %v1688, %v1668
        %v1702 = vmul.f32 %v1688, %v1669
        %v1703 = vmul.f32 %v1688, %v1670
        %v1704 = vmul.f32 %v1688, %v1671
        %v1705 = vsel %vm1672, %v1656, %v1689
        %v1706 = vsel %vm1673, %v1657, %v1690
        %v1707 = vsel %vm1674, %v1658, %v1691
        %v1708 = vsel %vm1675, %v1659, %v1692
        %v1709 = vsel %vm1676, %v1660, %v1693
        %v1710 = vsel %vm1677, %v1661, %v1694
        %v1711 = vsel %vm1678, %v1662, %v1695
        %v1712 = vsel %vm1679, %v1663, %v1696
        %v1713 = vsel %vm1680, %v1664, %v1697
        %v1714 = vsel %vm1681, %v1665, %v1698
        %v1715 = vsel %vm1682, %v1666, %v1699
        %v1716 = vsel %vm1683, %v1667, %v1700
        %v1717 = vsel %vm1684, %v1668, %v1701
        %v1718 = vsel %vm1685, %v1669, %v1702
        %v1719 = vsel %vm1686, %v1670, %v1703
        %v1720 = vsel %vm1687, %v1671, %v1704
        %v1721 = vpack.c.bf16 %v1707, %v1705
        %v1722 = vpack.c.bf16 %v1708, %v1706
        %v1723 = vpack.c.bf16 %v1711, %v1709
        %v1724 = vpack.c.bf16 %v1712, %v1710
        %v1725 = vpack.c.bf16 %v1715, %v1713
        %v1726 = vpack.c.bf16 %v1716, %v1714
        %v1727 = vpack.c.bf16 %v1719, %v1717
        %v1728 = vpack.c.bf16 %v1720, %v1718
        %v1729 = vlaneseq
        %v1730 = vshrl.u32 %v1729, 7
        %v1731 = vsub.s32 6, %v1730
        %v1732 = vrot.slane %v320, %v1731
        %v1733 = vlaneseq
        %v1734 = vshrl.u32 %v1733, 7
        %v1735 = vsub.s32 6, %v1734
        %v1736 = vrot.slane %v321, %v1735
        %v1769 = vunpack.c.l.b16 %v427
        %v1770 = vunpack.c.h.b16 %v427
        %v1771 = vunpack.c.l.b16 %v428
        %v1772 = vunpack.c.h.b16 %v428
        %v1773 = vunpack.c.l.b16 %v429
        %v1774 = vunpack.c.h.b16 %v429
        %v1775 = vunpack.c.l.b16 %v430
        %v1776 = vunpack.c.h.b16 %v430
        %v1777 = vunpack.c.l.b16 %v431
        %v1778 = vunpack.c.h.b16 %v431
        %v1779 = vunpack.c.l.b16 %v432
        %v1780 = vunpack.c.h.b16 %v432
        %v1781 = vunpack.c.l.b16 %v433
        %v1782 = vunpack.c.h.b16 %v433
        %v1783 = vunpack.c.l.b16 %v434
        %v1784 = vunpack.c.h.b16 %v434
        %v1785 = vunpack.c.l.b16 %v435
        %v1786 = vunpack.c.h.b16 %v435
        %v1787 = vunpack.c.l.b16 %v436
        %v1788 = vunpack.c.h.b16 %v436
        %v1789 = vunpack.c.l.b16 %v437
        %v1790 = vunpack.c.h.b16 %v437
        %v1791 = vunpack.c.l.b16 %v438
        %v1792 = vunpack.c.h.b16 %v438
        %v1793 = vunpack.c.l.b16 %v439
        %v1794 = vunpack.c.h.b16 %v439
        %v1795 = vunpack.c.l.b16 %v440
        %v1796 = vunpack.c.h.b16 %v440
        %v1797 = vunpack.c.l.b16 %v441
        %v1798 = vunpack.c.h.b16 %v441
        %v1799 = vunpack.c.l.b16 %v442
        %v1800 = vunpack.c.h.b16 %v442
        %v1801 = vunpack.c.l.b16 %v443
        %v1802 = vunpack.c.h.b16 %v443
        %v1803 = vunpack.c.l.b16 %v444
        %v1804 = vunpack.c.h.b16 %v444
        %v1805 = vunpack.c.l.b16 %v445
        %v1806 = vunpack.c.h.b16 %v445
        %v1807 = vunpack.c.l.b16 %v446
        %v1808 = vunpack.c.h.b16 %v446
        %v1809 = vunpack.c.l.b16 %v447
        %v1810 = vunpack.c.h.b16 %v447
        %v1811 = vunpack.c.l.b16 %v448
        %v1812 = vunpack.c.h.b16 %v448
        %v1813 = vunpack.c.l.b16 %v449
        %v1814 = vunpack.c.h.b16 %v449
        %v1815 = vunpack.c.l.b16 %v450
        %v1816 = vunpack.c.h.b16 %v450
        %v1817 = vunpack.c.l.b16 %v451
        %v1818 = vunpack.c.h.b16 %v451
        %v1819 = vunpack.c.l.b16 %v452
        %v1820 = vunpack.c.h.b16 %v452
        %v1821 = vunpack.c.l.b16 %v453
        %v1822 = vunpack.c.h.b16 %v453
        %v1823 = vunpack.c.l.b16 %v454
        %v1824 = vunpack.c.h.b16 %v454
        %v1825 = vunpack.c.l.b16 %v455
        %v1826 = vunpack.c.h.b16 %v455
        %v1827 = vunpack.c.l.b16 %v456
        %v1828 = vunpack.c.h.b16 %v456
        %v1829 = vunpack.c.l.b16 %v457
        %v1830 = vunpack.c.h.b16 %v457
        %v1831 = vunpack.c.l.b16 %v458
        %v1832 = vunpack.c.h.b16 %v458
        %v1833 = vpack.c.b16 %v1771, %v1769
        %v1834 = vpack.c.b16 %v1772, %v1770
        %v1835 = vpack.c.b16 %v1775, %v1773
        %v1836 = vpack.c.b16 %v1776, %v1774
        %v1837 = vpack.c.b16 %v1779, %v1777
        %v1838 = vpack.c.b16 %v1780, %v1778
        %v1839 = vpack.c.b16 %v1783, %v1781
        %v1840 = vpack.c.b16 %v1784, %v1782
        %v1841 = vpack.c.b16 %v1787, %v1785
        %v1842 = vpack.c.b16 %v1788, %v1786
        %v1843 = vpack.c.b16 %v1791, %v1789
        %v1844 = vpack.c.b16 %v1792, %v1790
        %v1845 = vpack.c.b16 %v1795, %v1793
        %v1846 = vpack.c.b16 %v1796, %v1794
        %v1847 = vpack.c.b16 %v1799, %v1797
        %v1848 = vpack.c.b16 %v1800, %v1798
        %v1849 = vpack.c.b16 %v1803, %v1801
        %v1850 = vpack.c.b16 %v1804, %v1802
        %v1851 = vpack.c.b16 %v1807, %v1805
        %v1852 = vpack.c.b16 %v1808, %v1806
        %v1853 = vpack.c.b16 %v1811, %v1809
        %v1854 = vpack.c.b16 %v1812, %v1810
        %v1855 = vpack.c.b16 %v1815, %v1813
        %v1856 = vpack.c.b16 %v1816, %v1814
        %v1857 = vpack.c.b16 %v1819, %v1817
        %v1858 = vpack.c.b16 %v1820, %v1818
        %v1859 = vpack.c.b16 %v1823, %v1821
        %v1860 = vpack.c.b16 %v1824, %v1822
        %v1861 = vpack.c.b16 %v1827, %v1825
        %v1862 = vpack.c.b16 %v1828, %v1826
        %v1863 = vpack.c.b16 %v1831, %v1829
        %v1864 = vpack.c.b16 %v1832, %v1830
        %1897 = vmatprep.subr.bf16.mxu0 %v1834
        %1898 = vmatpush1.bf16.msra.mxu0 %v1833
        %1899 = vmatprep.subr.bf16.mxu0 %v1836
        %1900 = vmatpush1.bf16.msra.mxu0 %v1835
        %1901 = vmatprep.subr.bf16.mxu0 %v1838
        %1902 = vmatpush1.bf16.msra.mxu0 %v1837
        %1903 = vmatprep.subr.bf16.mxu0 %v1840
        %1904 = vmatpush1.bf16.msra.mxu0 %v1839
        %1905 = vmatprep.subr.bf16.mxu0 %v1842
        %1906 = vmatpush1.bf16.msra.mxu0 %v1841
        %1907 = vmatprep.subr.bf16.mxu0 %v1844
        %1908 = vmatpush1.bf16.msra.mxu0 %v1843
        %1909 = vmatprep.subr.bf16.mxu0 %v1846
        %1910 = vmatpush1.bf16.msra.mxu0 %v1845
        %1911 = vmatprep.subr.bf16.mxu0 %v1848
        %1912 = vmatpush1.bf16.msra.mxu0 %v1847
        %1913 = vmatprep.subr.bf16.mxu0 %v1850
        %1914 = vmatpush1.bf16.msra.mxu0 %v1849
        %1915 = vmatprep.subr.bf16.mxu0 %v1852
        %1916 = vmatpush1.bf16.msra.mxu0 %v1851
        %1917 = vmatprep.subr.bf16.mxu0 %v1854
        %1918 = vmatpush1.bf16.msra.mxu0 %v1853
        %1919 = vmatprep.subr.bf16.mxu0 %v1856
        %1920 = vmatpush1.bf16.msra.mxu0 %v1855
        %1921 = vmatprep.subr.bf16.mxu0 %v1858
        %1922 = vmatpush1.bf16.msra.mxu0 %v1857
        %1923 = vmatprep.subr.bf16.mxu0 %v1860
        %1924 = vmatpush1.bf16.msra.mxu0 %v1859
        %1925 = vmatprep.subr.bf16.mxu0 %v1862
        %1926 = vmatpush1.bf16.msra.mxu0 %v1861
        %1927 = vmatprep.subr.bf16.mxu0 %v1864
        %1928 = vmatpush1.bf16.msra.mxu0 %v1863
        %1929 = vmatprep.mubr.bf16.mxu0 %v1722
        %1930 = vmatmul.mubr.bf16.gmra.mrb[0].mxu0 %v1721
        %v1931 = vpop.f32.mrb[0].mxu0
        %v1932 = vadd.f32 %v1732, %v1931
        %v1933 = vpop.f32.mrb[0].mxu0
        %v1934 = vadd.f32 %v1736, %v1933
        %v1935 = vpop.f32.mrb[0].mxu0
        %v1936 = vadd.f32 %v1732, %v1935
        %v1937 = vpop.f32.mrb[0].mxu0
        %v1938 = vadd.f32 %v1736, %v1937
        %1939 = vmatprep.mubr.bf16.mxu0 %v1724
        %1940 = vmatmul.mubr.bf16.gmra.mrb[0].mxu0 %v1723
        %v1941 = vpop.f32.mrb[0].mxu0
        %v1942 = vadd.f32 %v1732, %v1941
        %v1943 = vpop.f32.mrb[0].mxu0
        %v1944 = vadd.f32 %v1736, %v1943
        %v1945 = vpop.f32.mrb[0].mxu0
        %v1946 = vadd.f32 %v1732, %v1945
        %v1947 = vpop.f32.mrb[0].mxu0
        %v1948 = vadd.f32 %v1736, %v1947
        %1949 = vmatprep.mubr.bf16.mxu0 %v1726
        %1950 = vmatmul.mubr.bf16.gmra.mrb[0].mxu0 %v1725
        %v1951 = vpop.f32.mrb[0].mxu0
        %v1952 = vadd.f32 %v1732, %v1951
        %v1953 = vpop.f32.mrb[0].mxu0
        %v1954 = vadd.f32 %v1736, %v1953
        %v1955 = vpop.f32.mrb[0].mxu0
        %v1956 = vadd.f32 %v1732, %v1955
        %v1957 = vpop.f32.mrb[0].mxu0
        %v1958 = vadd.f32 %v1736, %v1957
        %1959 = vmatprep.mubr.bf16.mxu0 %v1728
        %1960 = vmatmul.mubr.bf16.gmra.mrb[0].mxu0 %v1727
        %v1961 = vpop.f32.mrb[0].mxu0
        %v1962 = vadd.f32 %v1732, %v1961
        %v1963 = vpop.f32.mrb[0].mxu0
        %v1964 = vadd.f32 %v1736, %v1963
        %v1965 = vpop.f32.mrb[0].mxu0
        %v1966 = vadd.f32 %v1732, %v1965
        %v1967 = vpop.f32.mrb[0].mxu0
        %v1968 = vadd.f32 %v1736, %v1967
        %1969 = vdwg.mxu0
        %v1970 = vtanh.pop %v1932
        %v1971 = vtanh.pop %v1934
        %v1972 = vtanh.pop %v1936
        %v1973 = vtanh.pop %v1938
        %v1974 = vtanh.pop %v1942
        %v1975 = vtanh.pop %v1944
        %v1976 = vtanh.pop %v1946
        %v1977 = vtanh.pop %v1948
        %v1978 = vtanh.pop %v1952
        %v1979 = vtanh.pop %v1954
        %v1980 = vtanh.pop %v1956
        %v1981 = vtanh.pop %v1958
        %v1982 = vtanh.pop %v1962
        %v1983 = vtanh.pop %v1964
        %v1984 = vtanh.pop %v1966
        %v1985 = vtanh.pop %v1968
        %v1986 = vpack.c.bf16 %v1972, %v1970
        %v1987 = vpack.c.bf16 %v1973, %v1971
        %v1988 = vpack.c.bf16 %v1976, %v1974
        %v1989 = vpack.c.bf16 %v1977, %v1975
        %v1990 = vpack.c.bf16 %v1980, %v1978
        %v1991 = vpack.c.bf16 %v1981, %v1979
        %v1992 = vpack.c.bf16 %v1984, %v1982
        %v1993 = vpack.c.bf16 %v1985, %v1983
        %vm1994 = vcmask 523264
        %v1996 = vsel %vm1994, 1065369472, 0
        %1998 = vmatprep.subr.bf16.mxu0 %v1987
        %1999 = vmatpush1.bf16.msra.mxu0 %v1986
        %2000 = vmatprep.subr.bf16.mxu0 %v1989
        %2001 = vmatpush1.bf16.msra.mxu0 %v1988
        %2002 = vmatprep.subr.bf16.mxu0 %v1991
        %2003 = vmatpush1.bf16.msra.mxu0 %v1990
        %2004 = vmatprep.subr.bf16.mxu0 %v1993
        %2005 = vmatpush1.bf16.msra.mxu0 %v1992
        %2006 = vmatprep.subr.bf16.mxu0 0
        %2007 = vmatpush1.bf16.msra.mxu0 0
        %2008 = vmatprep.subr.bf16.mxu0 0
        %2009 = vmatpush1.bf16.msra.mxu0 0
        %2010 = vmatprep.subr.bf16.mxu0 0
        %2011 = vmatpush1.bf16.msra.mxu0 0
        %2012 = vmatprep.subr.bf16.mxu0 0
        %2013 = vmatpush1.bf16.msra.mxu0 0
        %2014 = vmatprep.subr.bf16.mxu0 0
        %2015 = vmatpush1.bf16.msra.mxu0 0
        %2016 = vmatprep.subr.bf16.mxu0 0
        %2017 = vmatpush1.bf16.msra.mxu0 0
        %2018 = vmatprep.subr.bf16.mxu0 0
        %2019 = vmatpush1.bf16.msra.mxu0 0
        %2020 = vmatprep.subr.bf16.mxu0 0
        %2021 = vmatpush1.bf16.msra.mxu0 0
        %2022 = vmatprep.subr.bf16.mxu0 0
        %2023 = vmatpush1.bf16.msra.mxu0 0
        %2024 = vmatprep.subr.bf16.mxu0 0
        %2025 = vmatpush1.bf16.msra.mxu0 0
        %2026 = vmatprep.subr.bf16.mxu0 0
        %2027 = vmatpush1.bf16.msra.mxu0 0
        %2028 = vmatprep.subr.bf16.mxu0 0
        %2029 = vmatpush1.bf16.msra.mxu0 0
        %2030 = vmatprep.mubr.bf16.mxu0 0
        %2031 = vmatmul.mubr.bf16.gmra.mrb[0].mxu0 %v1996
        %v2032 = vpop.f32.mrb[0].mxu0
        %v2033 = vadd.f32 0.0, %v2032
        %v2034 = vpop.f32.mrb[0].mxu0
        %v2035 = vadd.f32 0.0, %v2034
        %v2036 = vpop.f32.mrb[0].mxu0
        %v2037 = vpop.f32.mrb[0].mxu0
        %2038 = vdwg.mxu0
        %v2039 = vpack.c.bf16 %v2033, %v2033
        %v2040 = vpack.c.bf16 %v2035, %v2035
        %v2073 = vunpack.c.l.b16 %v460
        %v2074 = vunpack.c.h.b16 %v460
        %v2075 = vunpack.c.l.b16 %v461
        %v2076 = vunpack.c.h.b16 %v461
        %v2077 = vunpack.c.l.b16 %v462
        %v2078 = vunpack.c.h.b16 %v462
        %v2079 = vunpack.c.l.b16 %v463
        %v2080 = vunpack.c.h.b16 %v463
        %v2081 = vunpack.c.l.b16 %v464
        %v2082 = vunpack.c.h.b16 %v464
        %v2083 = vunpack.c.l.b16 %v465
        %v2084 = vunpack.c.h.b16 %v465
        %v2085 = vunpack.c.l.b16 %v466
        %v2086 = vunpack.c.h.b16 %v466
        %v2087 = vunpack.c.l.b16 %v467
        %v2088 = vunpack.c.h.b16 %v467
        %v2089 = vunpack.c.l.b16 %v468
        %v2090 = vunpack.c.h.b16 %v468
        %v2091 = vunpack.c.l.b16 %v469
        %v2092 = vunpack.c.h.b16 %v469
        %v2093 = vunpack.c.l.b16 %v470
        %v2094 = vunpack.c.h.b16 %v470
        %v2095 = vunpack.c.l.b16 %v471
        %v2096 = vunpack.c.h.b16 %v471
        %v2097 = vunpack.c.l.b16 %v472
        %v2098 = vunpack.c.h.b16 %v472
        %v2099 = vunpack.c.l.b16 %v473
        %v2100 = vunpack.c.h.b16 %v473
        %v2101 = vunpack.c.l.b16 %v474
        %v2102 = vunpack.c.h.b16 %v474
        %v2103 = vunpack.c.l.b16 %v475
        %v2104 = vunpack.c.h.b16 %v475
        %v2105 = vunpack.c.l.b16 %v476
        %v2106 = vunpack.c.h.b16 %v476
        %v2107 = vunpack.c.l.b16 %v477
        %v2108 = vunpack.c.h.b16 %v477
        %v2109 = vunpack.c.l.b16 %v478
        %v2110 = vunpack.c.h.b16 %v478
        %v2111 = vunpack.c.l.b16 %v479
        %v2112 = vunpack.c.h.b16 %v479
        %v2113 = vunpack.c.l.b16 %v480
        %v2114 = vunpack.c.h.b16 %v480
        %v2115 = vunpack.c.l.b16 %v481
        %v2116 = vunpack.c.h.b16 %v481
        %v2117 = vunpack.c.l.b16 %v482
        %v2118 = vunpack.c.h.b16 %v482
        %v2119 = vunpack.c.l.b16 %v483
        %v2120 = vunpack.c.h.b16 %v483
        %v2121 = vunpack.c.l.b16 %v484
        %v2122 = vunpack.c.h.b16 %v484
        %v2123 = vunpack.c.l.b16 %v485
        %v2124 = vunpack.c.h.b16 %v485
        %v2125 = vunpack.c.l.b16 %v486
        %v2126 = vunpack.c.h.b16 %v486
        %v2127 = vunpack.c.l.b16 %v487
        %v2128 = vunpack.c.h.b16 %v487
        %v2129 = vunpack.c.l.b16 %v488
        %v2130 = vunpack.c.h.b16 %v488
        %v2131 = vunpack.c.l.b16 %v489
        %v2132 = vunpack.c.h.b16 %v489
        %v2133 = vunpack.c.l.b16 %v490
        %v2134 = vunpack.c.h.b16 %v490
        %v2135 = vunpack.c.l.b16 %v491
        %v2136 = vunpack.c.h.b16 %v491
        %v2137 = vpack.c.b16 %v2075, %v2073
        %v2138 = vpack.c.b16 %v2076, %v2074
        %v2139 = vpack.c.b16 %v2079, %v2077
        %v2140 = vpack.c.b16 %v2080, %v2078
        %v2141 = vpack.c.b16 %v2083, %v2081
        %v2142 = vpack.c.b16 %v2084, %v2082
        %v2143 = vpack.c.b16 %v2087, %v2085
        %v2144 = vpack.c.b16 %v2088, %v2086
        %v2145 = vpack.c.b16 %v2091, %v2089
        %v2146 = vpack.c.b16 %v2092, %v2090
        %v2147 = vpack.c.b16 %v2095, %v2093
        %v2148 = vpack.c.b16 %v2096, %v2094
        %v2149 = vpack.c.b16 %v2099, %v2097
        %v2150 = vpack.c.b16 %v2100, %v2098
        %v2151 = vpack.c.b16 %v2103, %v2101
        %v2152 = vpack.c.b16 %v2104, %v2102
        %v2153 = vpack.c.b16 %v2107, %v2105
        %v2154 = vpack.c.b16 %v2108, %v2106
        %v2155 = vpack.c.b16 %v2111, %v2109
        %v2156 = vpack.c.b16 %v2112, %v2110
        %v2157 = vpack.c.b16 %v2115, %v2113
        %v2158 = vpack.c.b16 %v2116, %v2114
        %v2159 = vpack.c.b16 %v2119, %v2117
        %v2160 = vpack.c.b16 %v2120, %v2118
        %v2161 = vpack.c.b16 %v2123, %v2121
        %v2162 = vpack.c.b16 %v2124, %v2122
        %v2163 = vpack.c.b16 %v2127, %v2125
        %v2164 = vpack.c.b16 %v2128, %v2126
        %v2165 = vpack.c.b16 %v2131, %v2129
        %v2166 = vpack.c.b16 %v2132, %v2130
        %v2167 = vpack.c.b16 %v2135, %v2133
        %v2168 = vpack.c.b16 %v2136, %v2134
        %2201 = vmatprep.subr.bf16.mxu0 %v2138
        %2202 = vmatpush1.bf16.msra.mxu0 %v2137
        %2203 = vmatprep.subr.bf16.mxu0 %v2140
        %2204 = vmatpush1.bf16.msra.mxu0 %v2139
        %2205 = vmatprep.subr.bf16.mxu0 %v2142
        %2206 = vmatpush1.bf16.msra.mxu0 %v2141
        %2207 = vmatprep.subr.bf16.mxu0 %v2144
        %2208 = vmatpush1.bf16.msra.mxu0 %v2143
        %2209 = vmatprep.subr.bf16.mxu0 %v2146
        %2210 = vmatpush1.bf16.msra.mxu0 %v2145
        %2211 = vmatprep.subr.bf16.mxu0 %v2148
        %2212 = vmatpush1.bf16.msra.mxu0 %v2147
        %2213 = vmatprep.subr.bf16.mxu0 %v2150
        %2214 = vmatpush1.bf16.msra.mxu0 %v2149
        %2215 = vmatprep.subr.bf16.mxu0 %v2152
        %2216 = vmatpush1.bf16.msra.mxu0 %v2151
        %2217 = vmatprep.subr.bf16.mxu0 %v2154
        %2218 = vmatpush1.bf16.msra.mxu0 %v2153
        %2219 = vmatprep.subr.bf16.mxu0 %v2156
        %2220 = vmatpush1.bf16.msra.mxu0 %v2155
        %2221 = vmatprep.subr.bf16.mxu0 %v2158
        %2222 = vmatpush1.bf16.msra.mxu0 %v2157
        %2223 = vmatprep.subr.bf16.mxu0 %v2160
        %2224 = vmatpush1.bf16.msra.mxu0 %v2159
        %2225 = vmatprep.subr.bf16.mxu0 %v2162
        %2226 = vmatpush1.bf16.msra.mxu0 %v2161
        %2227 = vmatprep.subr.bf16.mxu0 %v2164
        %2228 = vmatpush1.bf16.msra.mxu0 %v2163
        %2229 = vmatprep.subr.bf16.mxu0 %v2166
        %2230 = vmatpush1.bf16.msra.mxu0 %v2165
        %2231 = vmatprep.subr.bf16.mxu0 %v2168
        %2232 = vmatpush1.bf16.msra.mxu0 %v2167
        %2233 = vmatprep.mubr.bf16.mxu0 %v2040
        %2234 = vmatmul.mubr.bf16.gmra.mrb[0].mxu0 %v2039
        %v2235 = vpop.f32.mrb[0].mxu0
        %v2236 = vadd.f32 %v322, %v2235
        %v2237 = vpop.f32.mrb[0].mxu0
        %v2238 = vadd.f32 %v323, %v2237
        %v2239 = vpop.f32.mrb[0].mxu0
        %v2240 = vpop.f32.mrb[0].mxu0
        %2241 = vdwg.mxu0
        %vm2242 = vcmask 1040384
        %v2243 = vsel %vm2242, %v2236, -inf
        %v2244 = vsel %vm2242, %v2238, -inf
        %v2245 = vmax.f32 %v2243, %v2244
        %2246 = vmax.xlane.f32.xlu0 %v2245
        %v2247 = vpop.xlane.xlu0 %2246
        %v2248 = vsub.f32 %v2236, %v2247
        %v2249 = vsub.f32 %v2238, %v2247
        %v2250 = vmul.f32 %v2248, 1.442695
        %v2251 = vpow.pop %v2250
        %v2252 = vmul.f32 %v2249, 1.442695
        %v2253 = vpow.pop %v2252
        %v2254 = vsel %vm2242, %v2251, 0.0
        %v2255 = vsel %vm2242, %v2253, 0.0
        %v2256 = vadd.f32 %v2254, %v2255
        %2257 = vadd.xlane.f32.xlu0 %v2256
        %v2258 = vpop.xlane.xlu0 %2257
        %v2259 = vrcp.pop %v2258
        %v2260 = vmul.f32 32.0, %v2259
        %v2261 = vmul.f32 %v2251, %v2260
        %v2262 = vmul.f32 %v2253, %v2260
        %v2263 = vld [vmem:[#allocation10 + $0xc0] sm:$0xf]
        %v2264 = vld [vmem:[#allocation10 + $0xc4] sm:$0xf]
        %v2265 = vld [vmem:[#allocation10 + $0xc8] sm:$0xf]
        %v2266 = vld [vmem:[#allocation10 + $0xcc] sm:$0xf]
        %v2267 = vld [vmem:[#allocation10 + $0xd0] sm:$0xf]
        %v2268 = vld [vmem:[#allocation10 + $0xd4] sm:$0xf]
        %v2269 = vld [vmem:[#allocation10 + $0xd8] sm:$0xf]
        %v2270 = vld [vmem:[#allocation10 + $0xdc] sm:$0xf]
        %v2271 = vld [vmem:[#allocation10 + $0xe0] sm:$0xf]
        %v2272 = vld [vmem:[#allocation10 + $0xe4] sm:$0xf]
        %v2273 = vld [vmem:[#allocation10 + $0xe8] sm:$0xf]
        %v2274 = vld [vmem:[#allocation10 + $0xec] sm:$0xf]
        %v2275 = vld [vmem:[#allocation10 + $0xf0] sm:$0xf]
        %v2276 = vld [vmem:[#allocation10 + $0xf4] sm:$0xf]
        %v2277 = vld [vmem:[#allocation10 + $0xf8] sm:$0xf]
        %v2278 = vld [vmem:[#allocation10 + $0xfc] sm:$0xf]
        %v2279 = vld [vmem:[#allocation10 + $0x100] sm:$0xf]
        %v2280 = vld [vmem:[#allocation10 + $0x104] sm:$0xf]
        %v2281 = vld [vmem:[#allocation10 + $0x108] sm:$0xf]
        %v2282 = vld [vmem:[#allocation10 + $0x10c] sm:$0xf]
        %v2283 = vld [vmem:[#allocation10 + $0x110] sm:$0xf]
        %v2284 = vld [vmem:[#allocation10 + $0x114] sm:$0xf]
        %v2285 = vld [vmem:[#allocation10 + $0x118] sm:$0xf]
        %v2286 = vld [vmem:[#allocation10 + $0x11c] sm:$0xf]
        %v2287 = vld [vmem:[#allocation10 + $0x120] sm:$0xf]
        %v2288 = vld [vmem:[#allocation10 + $0x124] sm:$0xf]
        %v2289 = vld [vmem:[#allocation10 + $0x128] sm:$0xf]
        %v2290 = vld [vmem:[#allocation10 + $0x12c] sm:$0xf]
        %v2291 = vld [vmem:[#allocation10 + $0x130] sm:$0xf]
        %v2292 = vld [vmem:[#allocation10 + $0x134] sm:$0xf]
        %v2293 = vld [vmem:[#allocation10 + $0x138] sm:$0xf]
        %v2294 = vld [vmem:[#allocation10 + $0x13c] sm:$0xf]
        %v2295 = vlaneseq
        %v2296 = vshrl.u32 %v2295, 7
        %v2297 = vsub.s32 0, %v2296
        %v2298 = vrot.slane %v2261, %v2297
        %v2299 = vlaneseq
        %v2300 = vshrl.u32 %v2299, 7
        %v2301 = vsub.s32 0, %v2300
        %v2302 = vrot.slane %v2262, %v2301
        %v2303 = vmul.f32 %v1705, %v2298
        %v2304 = vmul.f32 %v1706, %v2302
        %v2305 = vmul.f32 %v1707, %v2298
        %v2306 = vmul.f32 %v1708, %v2302
        %v2307 = vmul.f32 %v1709, %v2298
        %v2308 = vmul.f32 %v1710, %v2302
        %v2309 = vmul.f32 %v1711, %v2298
        %v2310 = vmul.f32 %v1712, %v2302
        %v2311 = vmul.f32 %v1713, %v2298
        %v2312 = vmul.f32 %v1714, %v2302
        %v2313 = vmul.f32 %v1715, %v2298
        %v2314 = vmul.f32 %v1716, %v2302
        %v2315 = vmul.f32 %v1717, %v2298
        %v2316 = vmul.f32 %v1718, %v2302
        %v2317 = vmul.f32 %v1719, %v2298
        %v2318 = vmul.f32 %v1720, %v2302
        %v2319 = vpack.c.bf16 %v2305, %v2303
        %v2320 = vpack.c.bf16 %v2306, %v2304
        %v2321 = vpack.c.bf16 %v2309, %v2307
        %v2322 = vpack.c.bf16 %v2310, %v2308
        %v2323 = vpack.c.bf16 %v2313, %v2311
        %v2324 = vpack.c.bf16 %v2314, %v2312
        %v2325 = vpack.c.bf16 %v2317, %v2315
        %v2326 = vpack.c.bf16 %v2318, %v2316
        %v2359 = vunpack.c.l.b16 %v2263
        %v2360 = vunpack.c.l.b16 %v2264
        %v2361 = vunpack.c.l.b16 %v2265
        %v2362 = vunpack.c.l.b16 %v2266
        %v2363 = vunpack.c.l.b16 %v2267
        %v2364 = vunpack.c.l.b16 %v2268
        %v2365 = vunpack.c.l.b16 %v2269
        %v2366 = vunpack.c.l.b16 %v2270
        %v2367 = vunpack.c.l.b16 %v2271
        %v2368 = vunpack.c.l.b16 %v2272
        %v2369 = vunpack.c.l.b16 %v2273
        %v2370 = vunpack.c.l.b16 %v2274
        %v2371 = vunpack.c.l.b16 %v2275
        %v2372 = vunpack.c.l.b16 %v2276
        %v2373 = vunpack.c.l.b16 %v2277
        %v2374 = vunpack.c.l.b16 %v2278
        %v2375 = vunpack.c.l.b16 %v2279
        %v2376 = vunpack.c.l.b16 %v2280
        %v2377 = vunpack.c.l.b16 %v2281
        %v2378 = vunpack.c.l.b16 %v2282
        %v2379 = vunpack.c.l.b16 %v2283
        %v2380 = vunpack.c.l.b16 %v2284
        %v2381 = vunpack.c.l.b16 %v2285
        %v2382 = vunpack.c.l.b16 %v2286
        %v2383 = vunpack.c.l.b16 %v2287
        %v2384 = vunpack.c.l.b16 %v2288
        %v2385 = vunpack.c.l.b16 %v2289
        %v2386 = vunpack.c.l.b16 %v2290
        %v2387 = vunpack.c.l.b16 %v2291
        %v2388 = vunpack.c.l.b16 %v2292
        %v2389 = vunpack.c.l.b16 %v2293
        %v2390 = vunpack.c.l.b16 %v2294
        %v2391 = vpack.c.b16 %v2360, %v2359
        %v2392 = vpack.c.b16 %v2362, %v2361
        %v2393 = vpack.c.b16 %v2364, %v2363
        %v2394 = vpack.c.b16 %v2366, %v2365
        %v2395 = vpack.c.b16 %v2368, %v2367
        %v2396 = vpack.c.b16 %v2370, %v2369
        %v2397 = vpack.c.b16 %v2372, %v2371
        %v2398 = vpack.c.b16 %v2374, %v2373
        %v2399 = vpack.c.b16 %v2376, %v2375
        %v2400 = vpack.c.b16 %v2378, %v2377
        %v2401 = vpack.c.b16 %v2380, %v2379
        %v2402 = vpack.c.b16 %v2382, %v2381
        %v2403 = vpack.c.b16 %v2384, %v2383
        %v2404 = vpack.c.b16 %v2386, %v2385
        %v2405 = vpack.c.b16 %v2388, %v2387
        %v2406 = vpack.c.b16 %v2390, %v2389
        %2423 = vmatprep.subr.bf16.mxu0 0
        %2424 = vmatpush1.bf16.msra.mxu0 %v2391
        %2425 = vmatprep.subr.bf16.mxu0 0
        %2426 = vmatpush1.bf16.msra.mxu0 %v2392
        %2427 = vmatprep.subr.bf16.mxu0 0
        %2428 = vmatpush1.bf16.msra.mxu0 %v2393
        %2429 = vmatprep.subr.bf16.mxu0 0
        %2430 = vmatpush1.bf16.msra.mxu0 %v2394
        %2431 = vmatprep.subr.bf16.mxu0 0
        %2432 = vmatpush1.bf16.msra.mxu0 %v2395
        %2433 = vmatprep.subr.bf16.mxu0 0
        %2434 = vmatpush1.bf16.msra.mxu0 %v2396
        %2435 = vmatprep.subr.bf16.mxu0 0
        %2436 = vmatpush1.bf16.msra.mxu0 %v2397
        %2437 = vmatprep.subr.bf16.mxu0 0
        %2438 = vmatpush1.bf16.msra.mxu0 %v2398
        %2439 = vmatprep.subr.bf16.mxu0 0
        %2440 = vmatpush1.bf16.msra.mxu0 %v2399
        %2441 = vmatprep.subr.bf16.mxu0 0
        %2442 = vmatpush1.bf16.msra.mxu0 %v2400
        %2443 = vmatprep.subr.bf16.mxu0 0
        %2444 = vmatpush1.bf16.msra.mxu0 %v2401
        %2445 = vmatprep.subr.bf16.mxu0 0
        %2446 = vmatpush1.bf16.msra.mxu0 %v2402
        %2447 = vmatprep.subr.bf16.mxu0 0
        %2448 = vmatpush1.bf16.msra.mxu0 %v2403
        %2449 = vmatprep.subr.bf16.mxu0 0
        %2450 = vmatpush1.bf16.msra.mxu0 %v2404
        %2451 = vmatprep.subr.bf16.mxu0 0
        %2452 = vmatpush1.bf16.msra.mxu0 %v2405
        %2453 = vmatprep.subr.bf16.mxu0 0
        %2454 = vmatpush1.bf16.msra.mxu0 %v2406
        %2455 = vmatprep.mubr.bf16.mxu0 %v2320
        %2456 = vmatmul.mubr.bf16.gmra.mrb[0].mxu0 %v2319
        %v2457 = vpop.f32.mrb[0].mxu0
        %v2458 = vadd.f32 0.0, %v2457
        %v2459 = vpop.f32.mrb[0].mxu0
        %v2460 = vpop.f32.mrb[0].mxu0
        %v2461 = vadd.f32 0.0, %v2460
        %v2462 = vpop.f32.mrb[0].mxu0
        %2463 = vmatprep.mubr.bf16.mxu0 %v2322
        %2464 = vmatmul.mubr.bf16.gmra.mrb[0].mxu0 %v2321
        %v2465 = vpop.f32.mrb[0].mxu0
        %v2466 = vadd.f32 0.0, %v2465
        %v2467 = vpop.f32.mrb[0].mxu0
        %v2468 = vpop.f32.mrb[0].mxu0
        %v2469 = vadd.f32 0.0, %v2468
        %v2470 = vpop.f32.mrb[0].mxu0
        %2471 = vmatprep.mubr.bf16.mxu0 %v2324
        %2472 = vmatmul.mubr.bf16.gmra.mrb[0].mxu0 %v2323
        %v2473 = vpop.f32.mrb[0].mxu0
        %v2474 = vadd.f32 0.0, %v2473
        %v2475 = vpop.f32.mrb[0].mxu0
        %v2476 = vpop.f32.mrb[0].mxu0
        %v2477 = vadd.f32 0.0, %v2476
        %v2478 = vpop.f32.mrb[0].mxu0
        %2479 = vmatprep.mubr.bf16.mxu0 %v2326
        %2480 = vmatmul.mubr.bf16.gmra.mrb[0].mxu0 %v2325
        %v2481 = vpop.f32.mrb[0].mxu0
        %v2482 = vadd.f32 0.0, %v2481
        %v2483 = vpop.f32.mrb[0].mxu0
        %v2484 = vpop.f32.mrb[0].mxu0
        %v2485 = vadd.f32 0.0, %v2484
        %v2486 = vpop.f32.mrb[0].mxu0
        %2487 = vdwg.mxu0
        %v2488 = vld [vmem:[#allocation10] sm:$0xf]
        %v2489 = vld [vmem:[#allocation10 + $0x4] sm:$0xf]
        %v2490 = vld [vmem:[#allocation10 + $0x8] sm:$0xf]
        %v2491 = vld [vmem:[#allocation10 + $0xc] sm:$0xf]
        %v2492 = vld [vmem:[#allocation10 + $0x10] sm:$0xf]
        %v2493 = vld [vmem:[#allocation10 + $0x14] sm:$0xf]
        %v2494 = vld [vmem:[#allocation10 + $0x18] sm:$0xf]
        %v2495 = vld [vmem:[#allocation10 + $0x1c] sm:$0xf]
        %v2496 = vld [vmem:[#allocation10 + $0x20] sm:$0xf]
        %v2497 = vld [vmem:[#allocation10 + $0x24] sm:$0xf]
        %v2498 = vld [vmem:[#allocation10 + $0x28] sm:$0xf]
        %v2499 = vld [vmem:[#allocation10 + $0x2c] sm:$0xf]
        %v2500 = vld [vmem:[#allocation10 + $0x30] sm:$0xf]
        %v2501 = vld [vmem:[#allocation10 + $0x34] sm:$0xf]
        %v2502 = vld [vmem:[#allocation10 + $0x38] sm:$0xf]
        %v2503 = vld [vmem:[#allocation10 + $0x3c] sm:$0xf]
        %v2504 = vpack.c.bf16 %v2461, %v2458
        %v2505 = vpack.c.bf16 %v2469, %v2466
        %v2506 = vpack.c.bf16 %v2477, %v2474
        %v2507 = vpack.c.bf16 %v2485, %v2482
        %v2508 = vlaneseq
        %v2509 = vshrl.u32 %v2508, 7
        %v2510 = vsub.s32 1, %v2509
        %v2511 = vrot.slane %v322, %v2510
        %v2528 = vunpack.c.l.b16 %v2488
        %v2529 = vunpack.c.l.b16 %v2489
        %v2530 = vunpack.c.l.b16 %v2490
        %v2531 = vunpack.c.l.b16 %v2491
        %v2532 = vunpack.c.l.b16 %v2492
        %v2533 = vunpack.c.l.b16 %v2493
        %v2534 = vunpack.c.l.b16 %v2494
        %v2535 = vunpack.c.l.b16 %v2495
        %v2536 = vunpack.c.l.b16 %v2496
        %v2537 = vunpack.c.l.b16 %v2497
        %v2538 = vunpack.c.l.b16 %v2498
        %v2539 = vunpack.c.l.b16 %v2499
        %v2540 = vunpack.c.l.b16 %v2500
        %v2541 = vunpack.c.l.b16 %v2501
        %v2542 = vunpack.c.l.b16 %v2502
        %v2543 = vunpack.c.l.b16 %v2503
        %v2544 = vpack.c.b16 %v2529, %v2528
        %v2545 = vpack.c.b16 %v2531, %v2530
        %v2546 = vpack.c.b16 %v2533, %v2532
        %v2547 = vpack.c.b16 %v2535, %v2534
        %v2548 = vpack.c.b16 %v2537, %v2536
        %v2549 = vpack.c.b16 %v2539, %v2538
        %v2550 = vpack.c.b16 %v2541, %v2540
        %v2551 = vpack.c.b16 %v2543, %v2542
        %2560 = vmatprep.subr.bf16.mxu0 0
        %2561 = vmatpush1.bf16.msra.mxu0 %v2544
        %2562 = vmatprep.subr.bf16.mxu0 0
        %2563 = vmatpush1.bf16.msra.mxu0 %v2545
        %2564 = vmatprep.subr.bf16.mxu0 0
        %2565 = vmatpush1.bf16.msra.mxu0 %v2546
        %2566 = vmatprep.subr.bf16.mxu0 0
        %2567 = vmatpush1.bf16.msra.mxu0 %v2547
        %2568 = vmatprep.subr.bf16.mxu0 0
        %2569 = vmatpush1.bf16.msra.mxu0 %v2548
        %2570 = vmatprep.subr.bf16.mxu0 0
        %2571 = vmatpush1.bf16.msra.mxu0 %v2549
        %2572 = vmatprep.subr.bf16.mxu0 0
        %2573 = vmatpush1.bf16.msra.mxu0 %v2550
        %2574 = vmatprep.subr.bf16.mxu0 0
        %2575 = vmatpush1.bf16.msra.mxu0 %v2551
        %2576 = vmatprep.subr.bf16.mxu0 0
        %2577 = vmatpush1.bf16.msra.mxu0 0
        %2578 = vmatprep.subr.bf16.mxu0 0
        %2579 = vmatpush1.bf16.msra.mxu0 0
        %2580 = vmatprep.subr.bf16.mxu0 0
        %2581 = vmatpush1.bf16.msra.mxu0 0
        %2582 = vmatprep.subr.bf16.mxu0 0
        %2583 = vmatpush1.bf16.msra.mxu0 0
        %2584 = vmatprep.subr.bf16.mxu0 0
        %2585 = vmatpush1.bf16.msra.mxu0 0
        %2586 = vmatprep.subr.bf16.mxu0 0
        %2587 = vmatpush1.bf16.msra.mxu0 0
        %2588 = vmatprep.subr.bf16.mxu0 0
        %2589 = vmatpush1.bf16.msra.mxu0 0
        %2590 = vmatprep.subr.bf16.mxu0 0
        %2591 = vmatpush1.bf16.msra.mxu0 0
        %2592 = vmatprep.mubr.bf16.mxu0 0
        %2593 = vmatmul.mubr.bf16.gmra.mrb[0].mxu0 %v2504
        %v2594 = vpop.f32.mrb[0].mxu0
        %v2595 = vadd.f32 %v2511, %v2594
        %v2596 = vpop.f32.mrb[0].mxu0
        %v2597 = vpop.f32.mrb[0].mxu0
        %v2598 = vadd.f32 %v2511, %v2597
        %v2599 = vpop.f32.mrb[0].mxu0
        %2600 = vmatprep.mubr.bf16.mxu0 0
        %2601 = vmatmul.mubr.bf16.gmra.mrb[0].mxu0 %v2505
        %v2602 = vpop.f32.mrb[0].mxu0
        %v2603 = vadd.f32 %v2511, %v2602
        %v2604 = vpop.f32.mrb[0].mxu0
        %v2605 = vpop.f32.mrb[0].mxu0
        %v2606 = vadd.f32 %v2511, %v2605
        %v2607 = vpop.f32.mrb[0].mxu0
        %2608 = vmatprep.mubr.bf16.mxu0 0
        %2609 = vmatmul.mubr.bf16.gmra.mrb[0].mxu0 %v2506
        %v2610 = vpop.f32.mrb[0].mxu0
        %v2611 = vadd.f32 %v2511, %v2610
        %v2612 = vpop.f32.mrb[0].mxu0
        %v2613 = vpop.f32.mrb[0].mxu0
        %v2614 = vadd.f32 %v2511, %v2613
        %v2615 = vpop.f32.mrb[0].mxu0
        %2616 = vmatprep.mubr.bf16.mxu0 0
        %2617 = vmatmul.mubr.bf16.gmra.mrb[0].mxu0 %v2507
        %v2618 = vpop.f32.mrb[0].mxu0
        %v2619 = vadd.f32 %v2511, %v2618
        %v2620 = vpop.f32.mrb[0].mxu0
        %v2621 = vpop.f32.mrb[0].mxu0
        %v2622 = vadd.f32 %v2511, %v2621
        %v2623 = vpop.f32.mrb[0].mxu0
        %2624 = vdwg.mxu0
        %vm2625 = vcmp.gt.f32.partialorder %v2595, 0.0
        %vm2626 = vcmp.gt.f32.partialorder %v2598, 0.0
        %vm2627 = vcmp.gt.f32.partialorder %v2603, 0.0
        %vm2628 = vcmp.gt.f32.partialorder %v2606, 0.0
        %vm2629 = vcmp.gt.f32.partialorder %v2611, 0.0
        %vm2630 = vcmp.gt.f32.partialorder %v2614, 0.0
        %vm2631 = vcmp.gt.f32.partialorder %v2619, 0.0
        %vm2632 = vcmp.gt.f32.partialorder %v2622, 0.0
        %v2633 = vstv %s326
        %v2634 = vmul.f32 %v2633, %v2595
        %v2635 = vmul.f32 %v2633, %v2598
        %v2636 = vmul.f32 %v2633, %v2603
        %v2637 = vmul.f32 %v2633, %v2606
        %v2638 = vmul.f32 %v2633, %v2611
        %v2639 = vmul.f32 %v2633, %v2614
        %v2640 = vmul.f32 %v2633, %v2619
        %v2641 = vmul.f32 %v2633, %v2622
        %v2642 = vsel %vm2625, %v2595, %v2634
        %v2643 = vsel %vm2626, %v2598, %v2635
        %v2644 = vsel %vm2627, %v2603, %v2636
        %v2645 = vsel %vm2628, %v2606, %v2637
        %v2646 = vsel %vm2629, %v2611, %v2638
        %v2647 = vsel %vm2630, %v2614, %v2639
        %v2648 = vsel %vm2631, %v2619, %v2640
        %v2649 = vsel %vm2632, %v2622, %v2641
        %v2650 = vld [vmem:[#allocation10 + $0x40] sm:$0xf]
        %v2651 = vld [vmem:[#allocation10 + $0x44] sm:$0xf]
        %v2652 = vld [vmem:[#allocation10 + $0x48] sm:$0xf]
        %v2653 = vld [vmem:[#allocation10 + $0x4c] sm:$0xf]
        %v2654 = vld [vmem:[#allocation10 + $0x50] sm:$0xf]
        %v2655 = vld [vmem:[#allocation10 + $0x54] sm:$0xf]
        %v2656 = vld [vmem:[#allocation10 + $0x58] sm:$0xf]
        %v2657 = vld [vmem:[#allocation10 + $0x5c] sm:$0xf]
        %v2658 = vld [vmem:[#allocation10 + $0x60] sm:$0xf]
        %v2659 = vld [vmem:[#allocation10 + $0x64] sm:$0xf]
        %v2660 = vld [vmem:[#allocation10 + $0x68] sm:$0xf]
        %v2661 = vld [vmem:[#allocation10 + $0x6c] sm:$0xf]
        %v2662 = vld [vmem:[#allocation10 + $0x70] sm:$0xf]
        %v2663 = vld [vmem:[#allocation10 + $0x74] sm:$0xf]
        %v2664 = vld [vmem:[#allocation10 + $0x78] sm:$0xf]
        %v2665 = vld [vmem:[#allocation10 + $0x7c] sm:$0xf]
        %v2666 = vld [vmem:[#allocation10 + $0x80] sm:$0xf]
        %v2667 = vld [vmem:[#allocation10 + $0x84] sm:$0xf]
        %v2668 = vld [vmem:[#allocation10 + $0x88] sm:$0xf]
        %v2669 = vld [vmem:[#allocation10 + $0x8c] sm:$0xf]
        %v2670 = vld [vmem:[#allocation10 + $0x90] sm:$0xf]
        %v2671 = vld [vmem:[#allocation10 + $0x94] sm:$0xf]
        %v2672 = vld [vmem:[#allocation10 + $0x98] sm:$0xf]
        %v2673 = vld [vmem:[#allocation10 + $0x9c] sm:$0xf]
        %v2674 = vld [vmem:[#allocation10 + $0xa0] sm:$0xf]
        %v2675 = vld [vmem:[#allocation10 + $0xa4] sm:$0xf]
        %v2676 = vld [vmem:[#allocation10 + $0xa8] sm:$0xf]
        %v2677 = vld [vmem:[#allocation10 + $0xac] sm:$0xf]
        %v2678 = vld [vmem:[#allocation10 + $0xb0] sm:$0xf]
        %v2679 = vld [vmem:[#allocation10 + $0xb4] sm:$0xf]
        %v2680 = vld [vmem:[#allocation10 + $0xb8] sm:$0xf]
        %v2681 = vld [vmem:[#allocation10 + $0xbc] sm:$0xf]
        %v2682 = vpack.c.bf16 %v2643, %v2642
        %v2683 = vpack.c.bf16 %v2645, %v2644
        %v2684 = vpack.c.bf16 %v2647, %v2646
        %v2685 = vpack.c.bf16 %v2649, %v2648
        %v2686 = vlaneseq
        %v2687 = vshrl.u32 %v2686, 7
        %v2688 = vsub.s32 2, %v2687
        %v2689 = vrot.slane %v322, %v2688
        %v2706 = vunpack.c.l.b16 %v2650
        %v2707 = vunpack.c.l.b16 %v2651
        %v2708 = vunpack.c.l.b16 %v2652
        %v2709 = vunpack.c.l.b16 %v2653
        %v2710 = vunpack.c.l.b16 %v2654
        %v2711 = vunpack.c.l.b16 %v2655
        %v2712 = vunpack.c.l.b16 %v2656
        %v2713 = vunpack.c.l.b16 %v2657
        %v2714 = vunpack.c.l.b16 %v2658
        %v2715 = vunpack.c.l.b16 %v2659
        %v2716 = vunpack.c.l.b16 %v2660
        %v2717 = vunpack.c.l.b16 %v2661
        %v2718 = vunpack.c.l.b16 %v2662
        %v2719 = vunpack.c.l.b16 %v2663
        %v2720 = vunpack.c.l.b16 %v2664
        %v2721 = vunpack.c.l.b16 %v2665
        %v2722 = vpack.c.b16 %v2707, %v2706
        %v2723 = vpack.c.b16 %v2709, %v2708
        %v2724 = vpack.c.b16 %v2711, %v2710
        %v2725 = vpack.c.b16 %v2713, %v2712
        %v2726 = vpack.c.b16 %v2715, %v2714
        %v2727 = vpack.c.b16 %v2717, %v2716
        %v2728 = vpack.c.b16 %v2719, %v2718
        %v2729 = vpack.c.b16 %v2721, %v2720
        %2738 = vmatprep.subr.bf16.mxu0 0
        %2739 = vmatpush1.bf16.msra.mxu0 %v2722
        %2740 = vmatprep.subr.bf16.mxu0 0
        %2741 = vmatpush1.bf16.msra.mxu0 %v2723
        %2742 = vmatprep.subr.bf16.mxu0 0
        %2743 = vmatpush1.bf16.msra.mxu0 %v2724
        %2744 = vmatprep.subr.bf16.mxu0 0
        %2745 = vmatpush1.bf16.msra.mxu0 %v2725
        %2746 = vmatprep.subr.bf16.mxu0 0
        %2747 = vmatpush1.bf16.msra.mxu0 %v2726
        %2748 = vmatprep.subr.bf16.mxu0 0
        %2749 = vmatpush1.bf16.msra.mxu0 %v2727
        %2750 = vmatprep.subr.bf16.mxu0 0
        %2751 = vmatpush1.bf16.msra.mxu0 %v2728
        %2752 = vmatprep.subr.bf16.mxu0 0
        %2753 = vmatpush1.bf16.msra.mxu0 %v2729
        %2754 = vmatprep.subr.bf16.mxu0 0
        %2755 = vmatpush1.bf16.msra.mxu0 0
        %2756 = vmatprep.subr.bf16.mxu0 0
        %2757 = vmatpush1.bf16.msra.mxu0 0
        %2758 = vmatprep.subr.bf16.mxu0 0
        %2759 = vmatpush1.bf16.msra.mxu0 0
        %2760 = vmatprep.subr.bf16.mxu0 0
        %2761 = vmatpush1.bf16.msra.mxu0 0
        %2762 = vmatprep.subr.bf16.mxu0 0
        %2763 = vmatpush1.bf16.msra.mxu0 0
        %2764 = vmatprep.subr.bf16.mxu0 0
        %2765 = vmatpush1.bf16.msra.mxu0 0
        %2766 = vmatprep.subr.bf16.mxu0 0
        %2767 = vmatpush1.bf16.msra.mxu0 0
        %2768 = vmatprep.subr.bf16.mxu0 0
        %2769 = vmatpush1.bf16.msra.mxu0 0
        %2770 = vmatprep.mubr.bf16.mxu0 0
        %2771 = vmatmul.mubr.bf16.gmra.mrb[0].mxu0 %v2682
        %v2772 = vpop.f32.mrb[0].mxu0
        %v2773 = vadd.f32 %v2689, %v2772
        %v2774 = vpop.f32.mrb[0].mxu0
        %v2775 = vpop.f32.mrb[0].mxu0
        %v2776 = vadd.f32 %v2689, %v2775
        %v2777 = vpop.f32.mrb[0].mxu0
        %2778 = vmatprep.mubr.bf16.mxu0 0
        %2779 = vmatmul.mubr.bf16.gmra.mrb[0].mxu0 %v2683
        %v2780 = vpop.f32.mrb[0].mxu0
        %v2781 = vadd.f32 %v2689, %v2780
        %v2782 = vpop.f32.mrb[0].mxu0
        %v2783 = vpop.f32.mrb[0].mxu0
        %v2784 = vadd.f32 %v2689, %v2783
        %v2785 = vpop.f32.mrb[0].mxu0
        %2786 = vmatprep.mubr.bf16.mxu0 0
        %2787 = vmatmul.mubr.bf16.gmra.mrb[0].mxu0 %v2684
        %v2788 = vpop.f32.mrb[0].mxu0
        %v2789 = vadd.f32 %v2689, %v2788
        %v2790 = vpop.f32.mrb[0].mxu0
        %v2791 = vpop.f32.mrb[0].mxu0
        %v2792 = vadd.f32 %v2689, %v2791
        %v2793 = vpop.f32.mrb[0].mxu0
        %2794 = vmatprep.mubr.bf16.mxu0 0
        %2795 = vmatmul.mubr.bf16.gmra.mrb[0].mxu0 %v2685
        %v2796 = vpop.f32.mrb[0].mxu0
        %v2797 = vadd.f32 %v2689, %v2796
        %v2798 = vpop.f32.mrb[0].mxu0
        %v2799 = vpop.f32.mrb[0].mxu0
        %v2800 = vadd.f32 %v2689, %v2799
        %v2801 = vpop.f32.mrb[0].mxu0
        %2802 = vdwg.mxu0
        %v2803 = vadd.f32 %v2773, %v2776
        %v2804 = vadd.f32 %v2803, %v2781
        %v2805 = vadd.f32 %v2804, %v2784
        %v2806 = vadd.f32 %v2805, %v2789
        %v2807 = vadd.f32 %v2806, %v2792
        %v2808 = vadd.f32 %v2807, %v2797
        %v2809 = vadd.f32 %v2808, %v2800
        %v2810 = vrot.slane %v2809, 4
        %v2811 = vadd.f32 %v2809, %v2810
        %v2812 = vrot.slane %v2811, 2
        %v2813 = vadd.f32 %v2811, %v2812
        %v2814 = vrot.slane %v2813, 1
        %v2815 = vadd.f32 %v2813, %v2814
        %v2816 = vrcp.pop 64.0
        %v2817 = vmul.f32 %v2815, %v2816
        %v2818 = vsub.f32 %v2773, %v2817
        %v2819 = vsub.f32 %v2776, %v2817
        %v2820 = vsub.f32 %v2781, %v2817
        %v2821 = vsub.f32 %v2784, %v2817
        %v2822 = vsub.f32 %v2789, %v2817
        %v2823 = vsub.f32 %v2792, %v2817
        %v2824 = vsub.f32 %v2797, %v2817
        %v2825 = vsub.f32 %v2800, %v2817
        %v2826 = vmul.f32 %v2818, %v2818
        %v2827 = vmul.f32 %v2819, %v2819
        %v2828 = vmul.f32 %v2820, %v2820
        %v2829 = vmul.f32 %v2821, %v2821
        %v2830 = vmul.f32 %v2822, %v2822
        %v2831 = vmul.f32 %v2823, %v2823
        %v2832 = vmul.f32 %v2824, %v2824
        %v2833 = vmul.f32 %v2825, %v2825
        %v2834 = vadd.f32 %v2826, %v2827
        %v2835 = vadd.f32 %v2834, %v2828
        %v2836 = vadd.f32 %v2835, %v2829
        %v2837 = vadd.f32 %v2836, %v2830
        %v2838 = vadd.f32 %v2837, %v2831
        %v2839 = vadd.f32 %v2838, %v2832
        %v2840 = vadd.f32 %v2839, %v2833
        %v2841 = vrot.slane %v2840, 4
        %v2842 = vadd.f32 %v2840, %v2841
        %v2843 = vrot.slane %v2842, 2
        %v2844 = vadd.f32 %v2842, %v2843
        %v2845 = vrot.slane %v2844, 1
        %v2846 = vadd.f32 %v2844, %v2845
        %v2847 = vmul.f32 %v2846, %v2816
        %v2848 = vadd.f32 %v2847, 1e-05
        %v2849 = vrsqrt.pop %v2848
        %v2850 = vmul.f32 %v2818, %v2849
        %v2851 = vmul.f32 %v2819, %v2849
        %v2852 = vmul.f32 %v2820, %v2849
        %v2853 = vmul.f32 %v2821, %v2849
        %v2854 = vmul.f32 %v2822, %v2849
        %v2855 = vmul.f32 %v2823, %v2849
        %v2856 = vmul.f32 %v2824, %v2849
        %v2857 = vmul.f32 %v2825, %v2849
        %vm2858 = vcmp.gt.f32.partialorder %v2850, 0.0
        %vm2859 = vcmp.gt.f32.partialorder %v2851, 0.0
        %vm2860 = vcmp.gt.f32.partialorder %v2852, 0.0
        %vm2861 = vcmp.gt.f32.partialorder %v2853, 0.0
        %vm2862 = vcmp.gt.f32.partialorder %v2854, 0.0
        %vm2863 = vcmp.gt.f32.partialorder %v2855, 0.0
        %vm2864 = vcmp.gt.f32.partialorder %v2856, 0.0
        %vm2865 = vcmp.gt.f32.partialorder %v2857, 0.0
        %v2866 = vstv %s327
        %v2867 = vmul.f32 %v2866, %v2850
        %v2868 = vmul.f32 %v2866, %v2851
        %v2869 = vmul.f32 %v2866, %v2852
        %v2870 = vmul.f32 %v2866, %v2853
        %v2871 = vmul.f32 %v2866, %v2854
        %v2872 = vmul.f32 %v2866, %v2855
        %v2873 = vmul.f32 %v2866, %v2856
        %v2874 = vmul.f32 %v2866, %v2857
        %v2875 = vsel %vm2858, %v2850, %v2867
        %v2876 = vsel %vm2859, %v2851, %v2868
        %v2877 = vsel %vm2860, %v2852, %v2869
        %v2878 = vsel %vm2861, %v2853, %v2870
        %v2879 = vsel %vm2862, %v2854, %v2871
        %v2880 = vsel %vm2863, %v2855, %v2872
        %v2881 = vsel %vm2864, %v2856, %v2873
        %v2882 = vsel %vm2865, %v2857, %v2874
        %v2883 = vpack.c.bf16 %v2876, %v2875
        %v2884 = vpack.c.bf16 %v2878, %v2877
        %v2885 = vpack.c.bf16 %v2880, %v2879
        %v2886 = vpack.c.bf16 %v2882, %v2881
        %v2903 = vunpack.c.l.b16 %v2666
        %v2904 = vunpack.c.l.b16 %v2667
        %v2905 = vunpack.c.l.b16 %v2668
        %v2906 = vunpack.c.l.b16 %v2669
        %v2907 = vunpack.c.l.b16 %v2670
        %v2908 = vunpack.c.l.b16 %v2671
        %v2909 = vunpack.c.l.b16 %v2672
        %v2910 = vunpack.c.l.b16 %v2673
        %v2911 = vunpack.c.l.b16 %v2674
        %v2912 = vunpack.c.l.b16 %v2675
        %v2913 = vunpack.c.l.b16 %v2676
        %v2914 = vunpack.c.l.b16 %v2677
        %v2915 = vunpack.c.l.b16 %v2678
        %v2916 = vunpack.c.l.b16 %v2679
        %v2917 = vunpack.c.l.b16 %v2680
        %v2918 = vunpack.c.l.b16 %v2681
        %v2919 = vpack.c.b16 %v2904, %v2903
        %v2920 = vpack.c.b16 %v2906, %v2905
        %v2921 = vpack.c.b16 %v2908, %v2907
        %v2922 = vpack.c.b16 %v2910, %v2909
        %v2923 = vpack.c.b16 %v2912, %v2911
        %v2924 = vpack.c.b16 %v2914, %v2913
        %v2925 = vpack.c.b16 %v2916, %v2915
        %v2926 = vpack.c.b16 %v2918, %v2917
        %2935 = vmatprep.subr.bf16.mxu0 0
        %2936 = vmatpush1.bf16.msra.mxu0 %v2919
        %2937 = vmatprep.subr.bf16.mxu0 0
        %2938 = vmatpush1.bf16.msra.mxu0 %v2920
        %2939 = vmatprep.subr.bf16.mxu0 0
        %2940 = vmatpush1.bf16.msra.mxu0 %v2921
        %2941 = vmatprep.subr.bf16.mxu0 0
        %2942 = vmatpush1.bf16.msra.mxu0 %v2922
        %2943 = vmatprep.subr.bf16.mxu0 0
        %2944 = vmatpush1.bf16.msra.mxu0 %v2923
        %2945 = vmatprep.subr.bf16.mxu0 0
        %2946 = vmatpush1.bf16.msra.mxu0 %v2924
        %2947 = vmatprep.subr.bf16.mxu0 0
        %2948 = vmatpush1.bf16.msra.mxu0 %v2925
        %2949 = vmatprep.subr.bf16.mxu0 0
        %2950 = vmatpush1.bf16.msra.mxu0 %v2926
        %2951 = vmatprep.subr.bf16.mxu0 0
        %2952 = vmatpush1.bf16.msra.mxu0 0
        %2953 = vmatprep.subr.bf16.mxu0 0
        %2954 = vmatpush1.bf16.msra.mxu0 0
        %2955 = vmatprep.subr.bf16.mxu0 0
        %2956 = vmatpush1.bf16.msra.mxu0 0
        %2957 = vmatprep.subr.bf16.mxu0 0
        %2958 = vmatpush1.bf16.msra.mxu0 0
        %2959 = vmatprep.subr.bf16.mxu0 0
        %2960 = vmatpush1.bf16.msra.mxu0 0
        %2961 = vmatprep.subr.bf16.mxu0 0
        %2962 = vmatpush1.bf16.msra.mxu0 0
        %2963 = vmatprep.subr.bf16.mxu0 0
        %2964 = vmatpush1.bf16.msra.mxu0 0
        %2965 = vmatprep.subr.bf16.mxu0 0
        %2966 = vmatpush1.bf16.msra.mxu0 0
        %2967 = vmatprep.mubr.bf16.mxu0 0
        %2968 = vmatmul.mubr.bf16.gmra.mrb[0].mxu0 %v2883
        %v2969 = vpop.f32.mrb[0].mxu0
        %v2970 = vadd.f32 0.0, %v2969
        %v2971 = vpop.f32.mrb[0].mxu0
        %v2972 = vpop.f32.mrb[0].mxu0
        %v2973 = vadd.f32 0.0, %v2972
        %v2974 = vpop.f32.mrb[0].mxu0
        %2975 = vmatprep.mubr.bf16.mxu0 0
        %2976 = vmatmul.mubr.bf16.gmra.mrb[0].mxu0 %v2884
        %v2977 = vpop.f32.mrb[0].mxu0
        %v2978 = vadd.f32 0.0, %v2977
        %v2979 = vpop.f32.mrb[0].mxu0
        %v2980 = vpop.f32.mrb[0].mxu0
        %v2981 = vadd.f32 0.0, %v2980
        %v2982 = vpop.f32.mrb[0].mxu0
        %2983 = vmatprep.mubr.bf16.mxu0 0
        %2984 = vmatmul.mubr.bf16.gmra.mrb[0].mxu0 %v2885
        %v2985 = vpop.f32.mrb[0].mxu0
        %v2986 = vadd.f32 0.0, %v2985
        %v2987 = vpop.f32.mrb[0].mxu0
        %v2988 = vpop.f32.mrb[0].mxu0
        %v2989 = vadd.f32 0.0, %v2988
        %v2990 = vpop.f32.mrb[0].mxu0
        %2991 = vmatprep.mubr.bf16.mxu0 0
        %2992 = vmatmul.mubr.bf16.gmra.mrb[0].mxu0 %v2886
        %v2993 = vpop.f32.mrb[0].mxu0
        %v2994 = vadd.f32 0.0, %v2993
        %v2995 = vpop.f32.mrb[0].mxu0
        %v2996 = vpop.f32.mrb[0].mxu0
        %v2997 = vadd.f32 0.0, %v2996
        %v2998 = vpop.f32.mrb[0].mxu0
        %2999 = vdwg.mxu0
        %v3000 = vadd.f32 %v2970, %v2973
        %v3001 = vadd.f32 %v3000, %v2978
        %v3002 = vadd.f32 %v3001, %v2981
        %v3003 = vadd.f32 %v3002, %v2986
        %v3004 = vadd.f32 %v3003, %v2989
        %v3005 = vadd.f32 %v3004, %v2994
        %v3006 = vadd.f32 %v3005, %v2997
        %v3007 = vrot.slane %v3006, 4
        %v3008 = vadd.f32 %v3006, %v3007
        %v3009 = vrot.slane %v3008, 2
        %v3010 = vadd.f32 %v3008, %v3009
        %v3011 = vrot.slane %v3010, 1
        %v3012 = vadd.f32 %v3010, %v3011
        %v3013 = vmul.f32 %v3012, %v2816
        %v3014 = vsub.f32 %v2970, %v3013
        %v3015 = vsub.f32 %v2973, %v3013
        %v3016 = vsub.f32 %v2978, %v3013
        %v3017 = vsub.f32 %v2981, %v3013
        %v3018 = vsub.f32 %v2986, %v3013
        %v3019 = vsub.f32 %v2989, %v3013
        %v3020 = vsub.f32 %v2994, %v3013
        %v3021 = vsub.f32 %v2997, %v3013
        %v3022 = vmul.f32 %v3014, %v3014
        %v3023 = vmul.f32 %v3015, %v3015
        %v3024 = vmul.f32 %v3016, %v3016
        %v3025 = vmul.f32 %v3017, %v3017
        %v3026 = vmul.f32 %v3018, %v3018
        %v3027 = vmul.f32 %v3019, %v3019
        %v3028 = vmul.f32 %v3020, %v3020
        %v3029 = vmul.f32 %v3021, %v3021
        %v3030 = vadd.f32 %v3022, %v3023
        %v3031 = vadd.f32 %v3030, %v3024
        %v3032 = vadd.f32 %v3031, %v3025
        %v3033 = vadd.f32 %v3032, %v3026
        %v3034 = vadd.f32 %v3033, %v3027
        %v3035 = vadd.f32 %v3034, %v3028
        %v3036 = vadd.f32 %v3035, %v3029
        %v3037 = vrot.slane %v3036, 4
        %v3038 = vadd.f32 %v3036, %v3037
        %v3039 = vrot.slane %v3038, 2
        %v3040 = vadd.f32 %v3038, %v3039
        %v3041 = vrot.slane %v3040, 1
        %v3042 = vadd.f32 %v3040, %v3041
        %v3043 = vmul.f32 %v3042, %v2816
        %v3044 = vadd.f32 %v3043, 1e-05
        %v3045 = vrsqrt.pop %v3044
        %v3046 = vmul.f32 %v3014, %v3045
        %v3047 = vmul.f32 %v3015, %v3045
        %v3048 = vmul.f32 %v3016, %v3045
        %v3049 = vmul.f32 %v3017, %v3045
        %v3050 = vmul.f32 %v3018, %v3045
        %v3051 = vmul.f32 %v3019, %v3045
        %v3052 = vmul.f32 %v3020, %v3045
        %v3053 = vmul.f32 %v3021, %v3045
        %3054 = vst [vmem:[%s299] sm:$0xff] %v3046
        %3055 = vst [vmem:[%s299 + $0x8] sm:$0xff] %v3047
        %3056 = vst [vmem:[%s299 + $0x10] sm:$0xff] %v3048
        %3057 = vst [vmem:[%s299 + $0x18] sm:$0xff] %v3049
        %3058 = vst [vmem:[%s299 + $0x20] sm:$0xff] %v3050
        %3059 = vst [vmem:[%s299 + $0x28] sm:$0xff] %v3051
        %3060 = vst [vmem:[%s299 + $0x30] sm:$0xff] %v3052
        %3061 = vst [vmem:[%s299 + $0x38] sm:$0xff] %v3053
        %s3062 = sand.u32 %s143, 1
        %s3063 = scalar_lea.sflag [#allocation4], %s3062
        %s3064 = sand.u32 %s143, 1
        %s3065 = smul.addr %s3064, 64
        %s3066 = scalar_lea.vmem [#allocation12], %s3065
        // Predicated region
        $region61: #{tpu_custom_call.1} parent=39 // pred_check
          %p3067 = pneg %p153
        $region62: #{tpu_custom_call.1} parent=39 // pred_check_branch
          %3069 = sbr.rel (%p3067) target = $region64
        $region63: #{tpu_custom_call.1} parent=39 // pred_region
          %s3070 = smul.u32 8, %s25
          %s3072 = ssub.s32 1024, 1024
          %3073 = vsyncadd %s3063, %s3072
          %s3074 = smul.addr %s3070, 128
          %s3075 = scalar_lea.hbm %s5, %s3074
          %s3076 = sshll.u32 %s3066, 4
          %s3077 = int_to_ptr.vmem [resolvable:$true] %s3076
          %3082 = dma.vmem_to_hbm [thread:$0]  %s3077, 1024, %s3075, %s3063, 128, 128, 8
        $region64: #{tpu_custom_call.1} parent=39 // pred_fallthru
          _
      $region40: #{tpu_custom_call.1} parent=5 // pred_fallthru
        _
      %p3083 = scmp.le.s32.totalorder 2, %s20
      // Predicated region
      $region65: #{tpu_custom_call.1} parent=5 // pred_check
        %p3084 = pneg %p3083
      $region66: #{tpu_custom_call.1} parent=5 // pred_check_branch
        %3086 = sbr.rel (%p3084) target = $region68
      $region67: #{tpu_custom_call.1} parent=5 // pred_region
        %s3087 = ssub.s32 %s20, 2
        // Predicated region
        $region69: #{tpu_custom_call.1} parent=67 // pred_check
          %p3088 = pneg %p159
        $region70: #{tpu_custom_call.1} parent=67 // pred_check_branch
          %3090 = sbr.rel (%p3088) target = $region72
        $region71: #{tpu_custom_call.1} parent=67 // pred_region
          %s3091 = sand.u32 %s144, 1
          %s3092 = scalar_lea.sflag [#allocation4], %s3091
          %s3093 = sand.u32 %s144, 1
          %s3094 = smul.addr %s3093, 64
          %s3095 = scalar_lea.vmem [#allocation12], %s3094
          %3096 = dma.done %s3092, 1024
        $region72: #{tpu_custom_call.1} parent=67 // pred_fallthru
          _
      $region68: #{tpu_custom_call.1} parent=5 // pred_fallthru
        _
    $region6: #{tpu_custom_call.1} parent=1 // loop_footer
      %s24 = sadd.s32 1, %s20
    $region7: #{tpu_custom_call.1} parent=1 // loop_footer_branch
      %19 = sbr.rel target = $region3
    $region8: #{tpu_custom_call.1} parent=1 // loop_exit
      _
    %3097 = vsyncpa [#allocation3], 1
    %s3098 = scalar_lea.sflag [#allocation3], 1
    %3099 = vsyncpa %s3098, 1
    %3100 = vsyncpa [#allocation8], 1
    %3101 = vsyncpa [#allocation11], 1
    %3102 = vsyncpa [#allocation4], 1
    %s3103 = scalar_lea.sflag [#allocation4], 1
    %3104 = vsyncpa %s3103, 1
    %3105 = vsyncpa [#allocation5], 1
    %s3106 = scalar_lea.sflag [#allocation5], 1
    %3107 = vsyncpa %s3106, 1

</llo_original>
